<compile_context>
chip_gen: v5e
topology: v5e:2x2
jax: 0.10.0
libtpu: 0.0.40
codegen_flags: <defaults>
</compile_context>

<pallas_src>
import functools

import jax
import jax.numpy as jnp
from jax.experimental import pallas as pl
from jax.experimental.pallas import tpu as pltpu


# ---------------------------------------------------------------------------
# Fused kernel: MXU distances + 3-NN + interpolation + concat + MLP stack
# ---------------------------------------------------------------------------
def _fused_fp_kernel(c2, sub, couts, xyz1_ref, xyz2t_ref, pts2_ref, pts1_ref,
                     *rest):
    num_layers = len(couts)
    w_refs = rest[:num_layers]
    bias_ref = rest[num_layers]
    out_ref = rest[num_layers + 1]
    cat_scr = rest[num_layers + 2]          # (tn1, C2+C1) VMEM, mxu dtype

    tn1 = cat_scr.shape[0]
    c1 = pts1_ref.shape[2]
    mxu_dtype = cat_scr.dtype

    # ---- per-grid-step constants -------------------------------------------
    x2t = xyz2t_ref[0]                                     # (8, N2) f32
    x2sq = jnp.sum(x2t * x2t, axis=0, keepdims=True)       # (1, N2)

    # concat([interp, points1]): points1 into the right columns of the scratch
    cat_scr[:, pl.ds(c2, c1)] = pts1_ref[0].astype(mxu_dtype)

    # ---- 3-NN + interpolation, processed in row sub-chunks ------------------
    # (static unroll; per chunk only 2 live (sub, N2) f32 tiles -> no spills)
    n_chunks = tn1 // sub
    for ci in range(n_chunks):
        off = ci * sub
        x1c = xyz1_ref[0, pl.ds(off, sub), :]              # (sub, 8) f32
        x1sq = jnp.sum(x1c * x1c, axis=-1, keepdims=True)  # (sub, 1)

        # squared distances on the MXU (guard tiny negatives from cancellation)
        g = jnp.dot(x1c, x2t, preferred_element_type=jnp.float32)   # (sub, N2)
        d2 = jnp.maximum(x1sq + x2sq - 2.0 * g, 0.0)

        remaining = d2
        num = jnp.zeros_like(d2)                            # un-normalized W
        inv_sum = jnp.zeros((sub, 1), jnp.float32)
        for _ in range(3):
            dmin2 = jnp.min(remaining, axis=-1, keepdims=True)   # 1 XLU reduce
            hit = remaining == dmin2                             # (sub, N2)
            inv = 1.0 / (jnp.sqrt(dmin2) + 1e-8)                 # (sub, 1)
            num = num + jnp.where(hit, inv, 0.0)
            inv_sum = inv_sum + inv
            remaining = jnp.where(hit, jnp.inf, remaining)
        # (N2 < 3 degenerates gracefully: min = inf -> inv = 0; N2 == 1 gives
        #  weight 1 on the single point, i.e. the module's repeat() path.)

        # interpolation: one MXU matmul, normalize on the small (sub, C2) tile
        interp = jnp.dot(num.astype(mxu_dtype), pts2_ref[0],
                         preferred_element_type=jnp.float32)     # (sub, C2)
        interp = interp * pl.reciprocal(inv_sum, approx=False)
        cat_scr[pl.ds(off, sub), pl.ds(0, c2)] = interp.astype(mxu_dtype)

    # ---- MLP: Conv1x1 (BN scale folded into W) + bias + ReLU ----------------
    h = cat_scr[...]                                        # (tn1, C1+C2)
    for l in range(num_layers):
        w = w_refs[l][...]                                  # (Cin, Cout)
        b = bias_ref[pl.ds(l, 1), pl.ds(0, couts[l])]       # (1, Cout) f32
        z = jnp.dot(h, w, preferred_element_type=jnp.float32) + b
        z = jnp.maximum(z, 0.0)
        if l + 1 < num_layers:
            h = z.astype(mxu_dtype)
        else:
            out_ref[0] = z.astype(out_ref.dtype)            # lane-dense store


def _pick_tile(batch, n1):
    # Prefer the largest tile, but keep >= 2 grid steps so both TensorCores
    # get work on v7x megacore.
    for t in (256, 128, 64, 32, 16, 8):
        if n1 % t == 0 and batch * (n1 // t) >= 2:
            return t
    for t in (256, 128, 64, 32, 16, 8):
        if n1 % t == 0:
            return t
    return n1


def pointnet_fp_forward(params, xyz1, xyz2, points1, points2, *, tn1=None,
                        mxu_dtype=jnp.float32):
    """params: list of (w_T (Cin, Cout), scale (1, Cout), bias (1, Cout))."""
    B, N1, C1 = points1.shape
    _, N2, C2 = points2.shape
    num_layers = len(params)
    couts = tuple(int(p[0].shape[1]) for p in params)
    c_last = couts[-1]
    assert params[0][0].shape[0] == C2 + C1

    if tn1 is None:
        tn1 = _pick_tile(B, N1)
    assert N1 % tn1 == 0
    sub = min(tn1, 128)              # NN sub-chunk (bounds live (sub,N2) tiles)
    assert tn1 % sub == 0

    f32 = jnp.float32
    # Zero-pad coords 3 -> 8 so the distance matmul has a clean K dim; build
    # coordinate-major xyz2 so the distance tile is lane-dense in-kernel.
    xyz1_p = jnp.concatenate(
        [xyz1.astype(f32), jnp.zeros((B, N1, 5), f32)], axis=-1)    # (B,N1,8)
    xyz2_p = jnp.concatenate(
        [xyz2.astype(f32), jnp.zeros((B, N2, 5), f32)], axis=-1)    # (B,N2,8)
    xyz2_t = jnp.transpose(xyz2_p, (0, 2, 1))                       # (B,8,N2)

    # Fold the BN scale into the pre-transposed weights; pack all biases into
    # a single (L, Cmax) slab (fewer tiny pipelined operands).
    cmax_pad = ((max(couts) + 127) // 128) * 128
    weights = []
    bias_slab = jnp.zeros((num_layers, cmax_pad), f32)
    for l, (w_t, scale, bias) in enumerate(params):
        weights.append((w_t * scale).astype(mxu_dtype))             # (Cin,Cout)
        bias_slab = bias_slab.at[l, :couts[l]].set(bias[0])

    pts1_in = points1.astype(mxu_dtype)
    pts2_in = points2.astype(mxu_dtype)

    in_specs = [
        pl.BlockSpec((1, tn1, 8), lambda b, i: (b, i, 0)),    # xyz1 tile
        pl.BlockSpec((1, 8, N2), lambda b, i: (b, 0, 0)),     # xyz2^T (per-b const)
        pl.BlockSpec((1, N2, C2), lambda b, i: (b, 0, 0)),    # points2 (per-b const)
        pl.BlockSpec((1, tn1, C1), lambda b, i: (b, i, 0)),   # points1 tile
    ]
    in_specs += [pl.BlockSpec(w.shape, lambda b, i: (0, 0)) for w in weights]
    in_specs += [pl.BlockSpec(bias_slab.shape, lambda b, i: (0, 0))]

    kernel = functools.partial(_fused_fp_kernel, C2, sub, couts)

    return pl.pallas_call(
        kernel,
        out_shape=jax.ShapeDtypeStruct((B, N1, c_last), jnp.float32),
        grid_spec=pltpu.PrefetchScalarGridSpec(
            num_scalar_prefetch=0,
            # N1-tile axis innermost -> grid-invariant blocks not re-DMA'd
            grid=(B, N1 // tn1),
            in_specs=in_specs,
            out_specs=pl.BlockSpec((1, tn1, c_last), lambda b, i: (b, i, 0)),
            scratch_shapes=[pltpu.VMEM((tn1, C2 + C1), mxu_dtype)],
        ),
        compiler_params=pltpu.CompilerParams(
            dimension_semantics=("parallel", "parallel"),
            vmem_limit_bytes=32 * 1024 * 1024),
    )(xyz1_p, xyz2_t, pts2_in, pts1_in, *weights, bias_slab)


# ---------------------------------------------------------------------------
# Parameter init (Conv2d 1x1 bias=False + BatchNorm2d eval mode)
# Weights returned pre-transposed to (Cin, Cout); BN folding happens in the
# wrapper so the pure-JAX reference below stays an independent check.
# ---------------------------------------------------------------------------
def init_params(key, in_channels, mlp, bn_eps=1e-5):
    params = []
    c_in = in_channels
    for c_out in mlp:
        key, k1, k2, k3 = jax.random.split(key, 4)
        bound = 1.0 / float(c_in) ** 0.5               # PyTorch Conv2d default
        w = jax.random.uniform(k1, (c_out, c_in), jnp.float32, -bound, bound)
        gamma = jax.random.uniform(k2, (c_out,), jnp.float32, 0.5, 1.5)
        beta = jax.random.uniform(k3, (c_out,), jnp.float32, -0.1, 0.1)
        running_mean = jnp.zeros((c_out,), jnp.float32)
        running_var = jnp.ones((c_out,), jnp.float32)
        scale = gamma / jnp.sqrt(running_var + bn_eps)  # BN folded (eval)
        bias = beta - running_mean * scale
        params.append((w.T, scale.reshape(1, c_out), bias.reshape(1, c_out)))
        c_in = c_out
    return params


# ---------------------------------------------------------------------------
# Pure-JAX reference (independent correctness check, exact diff-square dists)
# ---------------------------------------------------------------------------
def _ref_forward(params, xyz1, xyz2, points1, points2):
    B, N1, C1 = points1.shape
    _, N2, C2 = points2.shape
    if N2 == 1:
        interpolated = jnp.broadcast_to(points2, (B, N1, C2))
    else:
        diff = xyz1[:, :, None, :] - xyz2[:, None, :, :]
        dists = jnp.sqrt(jnp.maximum(jnp.sum(diff * diff, axis=-1), 0.0))
        idx = jnp.argsort(dists, axis=-1)[:, :, :3]
        d3 = jnp.take_along_axis(dists, idx, axis=-1)
        inv = 1.0 / (d3 + 1e-8)
        w = inv / jnp.sum(inv, -1, keepdims=True)
        gathered = jnp.take_along_axis(points2[:, None, :, :],
                                       idx[..., None], axis=2)
        interpolated = jnp.sum(w[..., None] * gathered, axis=2)
    x = jnp.concatenate([interpolated, points1], axis=-1)
    for (wt, scale, bias) in params:
        x = jnp.maximum(jnp.einsum('bnc,co->bno', x, wt) * scale[0] + bias[0],
                        0.0)
    return x


if __name__ == "__main__":
    B, N1, N2, C1, C2 = 2, 512, 64, 16, 32
    mlp = [64, 128]                     # final Cout = 128 -> lane-dense writes
    in_channels = C1 + C2

    key = jax.random.PRNGKey(0)
    k1, k2, k3, k4, kp = jax.random.split(key, 5)
    xyz1 = jax.random.normal(k1, (B, N1, 3), jnp.float32)
    xyz2 = jax.random.normal(k2, (B, N2, 3), jnp.float32)
    points1 = jax.random.normal(k3, (B, N1, C1), jnp.float32)
    points2 = jax.random.normal(k4, (B, N2, C2), jnp.float32)

    params = init_params(kp, in_channels, mlp)
    ref = _ref_forward(params, xyz1, xyz2, points1, points2)

    # Full-precision path: strict check against the f32 reference.
    out = jax.block_until_ready(
        pointnet_fp_forward(params, xyz1, xyz2, points1, points2,
                            mxu_dtype=jnp.float32))
    assert out.shape == (B, N1, mlp[-1])
    assert jnp.allclose(out, ref, rtol=1e-3, atol=1e-3), "f32 mismatch vs ref"

    # bf16 MXU-operand fast path (v5e/v6e/v7x): element-wise & selection math
    # stays f32, matmul operands bf16 with f32 accumulation -> relaxed check.
    out_bf16 = jax.block_until_ready(
        pointnet_fp_forward(params, xyz1, xyz2, points1, points2,
                            mxu_dtype=jnp.bfloat16))
    assert jnp.allclose(out_bf16, ref, rtol=2e-2, atol=2e-2), \
        "bf16 mismatch vs ref"

    print("KERNEL_OK")
</pallas_src>

<mosaic_0001>
module attributes {stable_mosaic.version = 11 : i64} {
  func.func @_fused_fp_kernel(%arg0: i32, %arg1: i32, %arg2: memref<1x256x8xf32, #tpu.memory_space<vmem>>, %arg3: memref<1x8x64xf32, #tpu.memory_space<vmem>>, %arg4: memref<1x64x32xf32, #tpu.memory_space<vmem>>, %arg5: memref<1x256x16xf32, #tpu.memory_space<vmem>>, %arg6: memref<48x64xf32, #tpu.memory_space<vmem>>, %arg7: memref<64x128xf32, #tpu.memory_space<vmem>>, %arg8: memref<2x128xf32, #tpu.memory_space<vmem>>, %arg9: memref<1x256x128xf32, #tpu.memory_space<vmem>>, %arg10: memref<256x48xf32, #tpu.memory_space<vmem>>) attributes {dimension_semantics = [#tpu.dimension_semantics<parallel>, #tpu.dimension_semantics<parallel>], iteration_bounds = array<i64: 2, 2>, scalar_prefetch = 0 : i64, scratch_operands = 1 : i64, tpu.core_type = #tpu.core_type<tc>, window_params = [{transform_indices = @transform_0, window_bounds = array<i64: 1, 256, 8>}, {transform_indices = @transform_1, window_bounds = array<i64: 1, 8, 64>}, {transform_indices = @transform_2, window_bounds = array<i64: 1, 64, 32>}, {transform_indices = @transform_3, window_bounds = array<i64: 1, 256, 16>}, {pipeline_mode = #tpu.pipeline_mode<synchronous>, transform_indices = @transform_4, window_bounds = array<i64: 48, 64>}, {pipeline_mode = #tpu.pipeline_mode<synchronous>, transform_indices = @transform_5, window_bounds = array<i64: 64, 128>}, {pipeline_mode = #tpu.pipeline_mode<synchronous>, transform_indices = @transform_6, window_bounds = array<i64: 2, 128>}, {transform_indices = @transform_7, window_bounds = array<i64: 1, 256, 128>}]} {
    %c0 = arith.constant 0 : index
    %c0_0 = arith.constant 0 : index
    %c0_1 = arith.constant 0 : index
    %0 = vector.load %arg3[%c0, %c0_0, %c0_1] : memref<1x8x64xf32, #tpu.memory_space<vmem>>, vector<1x8x64xf32>
    %1 = vector.shape_cast %0 : vector<1x8x64xf32> to vector<8x64xf32>
    %2 = arith.mulf %1, %1 : vector<8x64xf32>
    %cst = arith.constant dense<0.000000e+00> : vector<64xf32>
    %3 = vector.multi_reduction <add>, %2, %cst [0] : vector<8x64xf32> to vector<64xf32>
    %4 = vector.shape_cast %3 : vector<64xf32> to vector<1x64xf32>
    %c0_2 = arith.constant 0 : index
    %c0_3 = arith.constant 0 : index
    %c0_4 = arith.constant 0 : index
    %5 = vector.load %arg5[%c0_2, %c0_3, %c0_4] : memref<1x256x16xf32, #tpu.memory_space<vmem>>, vector<1x256x16xf32>
    %6 = vector.shape_cast %5 : vector<1x256x16xf32> to vector<256x16xf32>
    %c0_5 = arith.constant 0 : index
    %c32 = arith.constant 32 : index
    %7 = vector.load %arg10[%c0_5, %c32] : memref<256x48xf32, #tpu.memory_space<vmem>>, vector<256x16xf32>
    tpu.vector_store %arg10[%c0_5, %c32], %6 {strides = array<i32>} : memref<256x48xf32, #tpu.memory_space<vmem>>, vector<256x16xf32>,
    %c0_6 = arith.constant 0 : index
    %c0_7 = arith.constant 0 : index
    %c0_8 = arith.constant 0 : index
    %8 = vector.load %arg2[%c0_6, %c0_7, %c0_8] : memref<1x256x8xf32, #tpu.memory_space<vmem>>, vector<1x128x8xf32>
    %9 = vector.shape_cast %8 : vector<1x128x8xf32> to vector<128x8xf32>
    %10 = arith.mulf %9, %9 : vector<128x8xf32>
    %cst_9 = arith.constant dense<0.000000e+00> : vector<128xf32>
    %11 = vector.multi_reduction <add>, %10, %cst_9 [1] : vector<128x8xf32> to vector<128xf32>
    %12 = vector.shape_cast %11 : vector<128xf32> to vector<128x1xf32>
    %cst_10 = arith.constant dense<0.000000e+00> : vector<128x64xf32>
    %13 = tpu.matmul %9, %1, %cst_10 {dimension_numbers = #tpu.dot_dimension_numbers<[1], [0], [0], [1], [0, 0, 1, 1], [], []>} : vector<128x8xf32>, vector<8x64xf32>, vector<128x64xf32> -> vector<128x64xf32>
    %14 = vector.broadcast %12 : vector<128x1xf32> to vector<128x64xf32>
    %15 = vector.broadcast %4 : vector<1x64xf32> to vector<128x64xf32>
    %16 = arith.addf %14, %15 : vector<128x64xf32>
    %cst_11 = arith.constant 2.000000e+00 : f32
    %17 = vector.broadcast %cst_11 : f32 to vector<128x64xf32>
    %18 = arith.mulf %17, %13 : vector<128x64xf32>
    %19 = arith.subf %16, %18 : vector<128x64xf32>
    %cst_12 = arith.constant 0.000000e+00 : f32
    %20 = vector.broadcast %cst_12 : f32 to vector<128x64xf32>
    %21 = arith.maximumf %19, %20 : vector<128x64xf32>
    %cst_13 = arith.constant 0.000000e+00 : f32
    %22 = vector.broadcast %cst_13 : f32 to vector<128x64xf32>
    %cst_14 = arith.constant 0.000000e+00 : f32
    %23 = vector.broadcast %cst_14 : f32 to vector<128x1xf32>
    %cst_15 = arith.constant dense<0x7F800000> : vector<128xf32>
    %24 = vector.multi_reduction <minimumf>, %21, %cst_15 [1] : vector<128x64xf32> to vector<128xf32>
    %25 = vector.shape_cast %24 : vector<128xf32> to vector<128x1xf32>
    %26 = vector.broadcast %25 : vector<128x1xf32> to vector<128x64xf32>
    %27 = arith.cmpf oeq, %21, %26 : vector<128x64xf32>
    %28 = math.sqrt %25 : vector<128x1xf32>
    %cst_16 = arith.constant 9.99999993E-9 : f32
    %29 = vector.broadcast %cst_16 : f32 to vector<128x1xf32>
    %30 = arith.addf %28, %29 : vector<128x1xf32>
    %cst_17 = arith.constant 1.000000e+00 : f32
    %31 = vector.broadcast %cst_17 : f32 to vector<128x1xf32>
    %32 = arith.divf %31, %30 : vector<128x1xf32>
    %cst_18 = arith.constant 0.000000e+00 : f32
    %33 = vector.shape_cast %32 : vector<128x1xf32> to vector<128x1xf32>
    %34 = vector.broadcast %33 : vector<128x1xf32> to vector<128x64xf32>
    %35 = vector.broadcast %cst_18 : f32 to vector<128x64xf32>
    %36 = arith.select %27, %34, %35 : vector<128x64xi1>, vector<128x64xf32>
    %37 = arith.addf %22, %36 : vector<128x64xf32>
    %38 = arith.addf %23, %32 : vector<128x1xf32>
    %cst_19 = arith.constant 0x7F800000 : f32
    %39 = vector.broadcast %cst_19 : f32 to vector<128x64xf32>
    %40 = arith.select %27, %39, %21 : vector<128x64xi1>, vector<128x64xf32>
    %cst_20 = arith.constant dense<0x7F800000> : vector<128xf32>
    %41 = vector.multi_reduction <minimumf>, %40, %cst_20 [1] : vector<128x64xf32> to vector<128xf32>
    %42 = vector.shape_cast %41 : vector<128xf32> to vector<128x1xf32>
    %43 = vector.broadcast %42 : vector<128x1xf32> to vector<128x64xf32>
    %44 = arith.cmpf oeq, %40, %43 : vector<128x64xf32>
    %45 = math.sqrt %42 : vector<128x1xf32>
    %cst_21 = arith.constant 9.99999993E-9 : f32
    %46 = vector.broadcast %cst_21 : f32 to vector<128x1xf32>
    %47 = arith.addf %45, %46 : vector<128x1xf32>
    %cst_22 = arith.constant 1.000000e+00 : f32
    %48 = vector.broadcast %cst_22 : f32 to vector<128x1xf32>
    %49 = arith.divf %48, %47 : vector<128x1xf32>
    %cst_23 = arith.constant 0.000000e+00 : f32
    %50 = vector.shape_cast %49 : vector<128x1xf32> to vector<128x1xf32>
    %51 = vector.broadcast %50 : vector<128x1xf32> to vector<128x64xf32>
    %52 = vector.broadcast %cst_23 : f32 to vector<128x64xf32>
    %53 = arith.select %44, %51, %52 : vector<128x64xi1>, vector<128x64xf32>
    %54 = arith.addf %37, %53 : vector<128x64xf32>
    %55 = arith.addf %38, %49 : vector<128x1xf32>
    %cst_24 = arith.constant 0x7F800000 : f32
    %56 = vector.broadcast %cst_24 : f32 to vector<128x64xf32>
    %57 = arith.select %44, %56, %40 : vector<128x64xi1>, vector<128x64xf32>
    %cst_25 = arith.constant dense<0x7F800000> : vector<128xf32>
    %58 = vector.multi_reduction <minimumf>, %57, %cst_25 [1] : vector<128x64xf32> to vector<128xf32>
    %59 = vector.shape_cast %58 : vector<128xf32> to vector<128x1xf32>
    %60 = vector.broadcast %59 : vector<128x1xf32> to vector<128x64xf32>
    %61 = arith.cmpf oeq, %57, %60 : vector<128x64xf32>
    %62 = math.sqrt %59 : vector<128x1xf32>
    %cst_26 = arith.constant 9.99999993E-9 : f32
    %63 = vector.broadcast %cst_26 : f32 to vector<128x1xf32>
    %64 = arith.addf %62, %63 : vector<128x1xf32>
    %cst_27 = arith.constant 1.000000e+00 : f32
    %65 = vector.broadcast %cst_27 : f32 to vector<128x1xf32>
    %66 = arith.divf %65, %64 : vector<128x1xf32>
    %cst_28 = arith.constant 0.000000e+00 : f32
    %67 = vector.shape_cast %66 : vector<128x1xf32> to vector<128x1xf32>
    %68 = vector.broadcast %67 : vector<128x1xf32> to vector<128x64xf32>
    %69 = vector.broadcast %cst_28 : f32 to vector<128x64xf32>
    %70 = arith.select %61, %68, %69 : vector<128x64xi1>, vector<128x64xf32>
    %71 = arith.addf %54, %70 : vector<128x64xf32>
    %72 = arith.addf %55, %66 : vector<128x1xf32>
    %c0_29 = arith.constant 0 : index
    %c0_30 = arith.constant 0 : index
    %c0_31 = arith.constant 0 : index
    %73 = vector.load %arg4[%c0_29, %c0_30, %c0_31] : memref<1x64x32xf32, #tpu.memory_space<vmem>>, vector<1x64x32xf32>
    %74 = vector.shape_cast %73 : vector<1x64x32xf32> to vector<64x32xf32>
    %cst_32 = arith.constant dense<0.000000e+00> : vector<128x32xf32>
    %75 = tpu.matmul %71, %74, %cst_32 {dimension_numbers = #tpu.dot_dimension_numbers<[1], [0], [0], [1], [0, 0, 1, 1], [], []>} : vector<128x64xf32>, vector<64x32xf32>, vector<128x32xf32> -> vector<128x32xf32>
    %76 = tpu.reciprocal %72 : vector<128x1xf32> -> vector<128x1xf32>
    %77 = vector.broadcast %76 : vector<128x1xf32> to vector<128x32xf32>
    %78 = arith.mulf %75, %77 : vector<128x32xf32>
    %c0_33 = arith.constant 0 : index
    %c0_34 = arith.constant 0 : index
    %79 = vector.load %arg10[%c0_33, %c0_34] : memref<256x48xf32, #tpu.memory_space<vmem>>, vector<128x32xf32>
    tpu.vector_store %arg10[%c0_33, %c0_34], %78 {strides = array<i32>} : memref<256x48xf32, #tpu.memory_space<vmem>>, vector<128x32xf32>,
    %c0_35 = arith.constant 0 : index
    %c128 = arith.constant 128 : index
    %c0_36 = arith.constant 0 : index
    %80 = vector.load %arg2[%c0_35, %c128, %c0_36] : memref<1x256x8xf32, #tpu.memory_space<vmem>>, vector<1x128x8xf32>
    %81 = vector.shape_cast %80 : vector<1x128x8xf32> to vector<128x8xf32>
    %82 = arith.mulf %81, %81 : vector<128x8xf32>
    %cst_37 = arith.constant dense<0.000000e+00> : vector<128xf32>
    %83 = vector.multi_reduction <add>, %82, %cst_37 [1] : vector<128x8xf32> to vector<128xf32>
    %84 = vector.shape_cast %83 : vector<128xf32> to vector<128x1xf32>
    %cst_38 = arith.constant dense<0.000000e+00> : vector<128x64xf32>
    %85 = tpu.matmul %81, %1, %cst_38 {dimension_numbers = #tpu.dot_dimension_numbers<[1], [0], [0], [1], [0, 0, 1, 1], [], []>} : vector<128x8xf32>, vector<8x64xf32>, vector<128x64xf32> -> vector<128x64xf32>
    %86 = vector.broadcast %84 : vector<128x1xf32> to vector<128x64xf32>
    %87 = vector.broadcast %4 : vector<1x64xf32> to vector<128x64xf32>
    %88 = arith.addf %86, %87 : vector<128x64xf32>
    %cst_39 = arith.constant 2.000000e+00 : f32
    %89 = vector.broadcast %cst_39 : f32 to vector<128x64xf32>
    %90 = arith.mulf %89, %85 : vector<128x64xf32>
    %91 = arith.subf %88, %90 : vector<128x64xf32>
    %cst_40 = arith.constant 0.000000e+00 : f32
    %92 = vector.broadcast %cst_40 : f32 to vector<128x64xf32>
    %93 = arith.maximumf %91, %92 : vector<128x64xf32>
    %cst_41 = arith.constant 0.000000e+00 : f32
    %94 = vector.broadcast %cst_41 : f32 to vector<128x64xf32>
    %cst_42 = arith.constant 0.000000e+00 : f32
    %95 = vector.broadcast %cst_42 : f32 to vector<128x1xf32>
    %cst_43 = arith.constant dense<0x7F800000> : vector<128xf32>
    %96 = vector.multi_reduction <minimumf>, %93, %cst_43 [1] : vector<128x64xf32> to vector<128xf32>
    %97 = vector.shape_cast %96 : vector<128xf32> to vector<128x1xf32>
    %98 = vector.broadcast %97 : vector<128x1xf32> to vector<128x64xf32>
    %99 = arith.cmpf oeq, %93, %98 : vector<128x64xf32>
    %100 = math.sqrt %97 : vector<128x1xf32>
    %cst_44 = arith.constant 9.99999993E-9 : f32
    %101 = vector.broadcast %cst_44 : f32 to vector<128x1xf32>
    %102 = arith.addf %100, %101 : vector<128x1xf32>
    %cst_45 = arith.constant 1.000000e+00 : f32
    %103 = vector.broadcast %cst_45 : f32 to vector<128x1xf32>
    %104 = arith.divf %103, %102 : vector<128x1xf32>
    %cst_46 = arith.constant 0.000000e+00 : f32
    %105 = vector.shape_cast %104 : vector<128x1xf32> to vector<128x1xf32>
    %106 = vector.broadcast %105 : vector<128x1xf32> to vector<128x64xf32>
    %107 = vector.broadcast %cst_46 : f32 to vector<128x64xf32>
    %108 = arith.select %99, %106, %107 : vector<128x64xi1>, vector<128x64xf32>
    %109 = arith.addf %94, %108 : vector<128x64xf32>
    %110 = arith.addf %95, %104 : vector<128x1xf32>
    %cst_47 = arith.constant 0x7F800000 : f32
    %111 = vector.broadcast %cst_47 : f32 to vector<128x64xf32>
    %112 = arith.select %99, %111, %93 : vector<128x64xi1>, vector<128x64xf32>
    %cst_48 = arith.constant dense<0x7F800000> : vector<128xf32>
    %113 = vector.multi_reduction <minimumf>, %112, %cst_48 [1] : vector<128x64xf32> to vector<128xf32>
    %114 = vector.shape_cast %113 : vector<128xf32> to vector<128x1xf32>
    %115 = vector.broadcast %114 : vector<128x1xf32> to vector<128x64xf32>
    %116 = arith.cmpf oeq, %112, %115 : vector<128x64xf32>
    %117 = math.sqrt %114 : vector<128x1xf32>
    %cst_49 = arith.constant 9.99999993E-9 : f32
    %118 = vector.broadcast %cst_49 : f32 to vector<128x1xf32>
    %119 = arith.addf %117, %118 : vector<128x1xf32>
    %cst_50 = arith.constant 1.000000e+00 : f32
    %120 = vector.broadcast %cst_50 : f32 to vector<128x1xf32>
    %121 = arith.divf %120, %119 : vector<128x1xf32>
    %cst_51 = arith.constant 0.000000e+00 : f32
    %122 = vector.shape_cast %121 : vector<128x1xf32> to vector<128x1xf32>
    %123 = vector.broadcast %122 : vector<128x1xf32> to vector<128x64xf32>
    %124 = vector.broadcast %cst_51 : f32 to vector<128x64xf32>
    %125 = arith.select %116, %123, %124 : vector<128x64xi1>, vector<128x64xf32>
    %126 = arith.addf %109, %125 : vector<128x64xf32>
    %127 = arith.addf %110, %121 : vector<128x1xf32>
    %cst_52 = arith.constant 0x7F800000 : f32
    %128 = vector.broadcast %cst_52 : f32 to vector<128x64xf32>
    %129 = arith.select %116, %128, %112 : vector<128x64xi1>, vector<128x64xf32>
    %cst_53 = arith.constant dense<0x7F800000> : vector<128xf32>
    %130 = vector.multi_reduction <minimumf>, %129, %cst_53 [1] : vector<128x64xf32> to vector<128xf32>
    %131 = vector.shape_cast %130 : vector<128xf32> to vector<128x1xf32>
    %132 = vector.broadcast %131 : vector<128x1xf32> to vector<128x64xf32>
    %133 = arith.cmpf oeq, %129, %132 : vector<128x64xf32>
    %134 = math.sqrt %131 : vector<128x1xf32>
    %cst_54 = arith.constant 9.99999993E-9 : f32
    %135 = vector.broadcast %cst_54 : f32 to vector<128x1xf32>
    %136 = arith.addf %134, %135 : vector<128x1xf32>
    %cst_55 = arith.constant 1.000000e+00 : f32
    %137 = vector.broadcast %cst_55 : f32 to vector<128x1xf32>
    %138 = arith.divf %137, %136 : vector<128x1xf32>
    %cst_56 = arith.constant 0.000000e+00 : f32
    %139 = vector.shape_cast %138 : vector<128x1xf32> to vector<128x1xf32>
    %140 = vector.broadcast %139 : vector<128x1xf32> to vector<128x64xf32>
    %141 = vector.broadcast %cst_56 : f32 to vector<128x64xf32>
    %142 = arith.select %133, %140, %141 : vector<128x64xi1>, vector<128x64xf32>
    %143 = arith.addf %126, %142 : vector<128x64xf32>
    %144 = arith.addf %127, %138 : vector<128x1xf32>
    %c0_57 = arith.constant 0 : index
    %c0_58 = arith.constant 0 : index
    %c0_59 = arith.constant 0 : index
    %145 = vector.load %arg4[%c0_57, %c0_58, %c0_59] : memref<1x64x32xf32, #tpu.memory_space<vmem>>, vector<1x64x32xf32>
    %146 = vector.shape_cast %145 : vector<1x64x32xf32> to vector<64x32xf32>
    %cst_60 = arith.constant dense<0.000000e+00> : vector<128x32xf32>
    %147 = tpu.matmul %143, %146, %cst_60 {dimension_numbers = #tpu.dot_dimension_numbers<[1], [0], [0], [1], [0, 0, 1, 1], [], []>} : vector<128x64xf32>, vector<64x32xf32>, vector<128x32xf32> -> vector<128x32xf32>
    %148 = tpu.reciprocal %144 : vector<128x1xf32> -> vector<128x1xf32>
    %149 = vector.broadcast %148 : vector<128x1xf32> to vector<128x32xf32>
    %150 = arith.mulf %147, %149 : vector<128x32xf32>
    %c128_61 = arith.constant 128 : index
    %c0_62 = arith.constant 0 : index
    %151 = vector.load %arg10[%c128_61, %c0_62] : memref<256x48xf32, #tpu.memory_space<vmem>>, vector<128x32xf32>
    tpu.vector_store %arg10[%c128_61, %c0_62], %150 {strides = array<i32>} : memref<256x48xf32, #tpu.memory_space<vmem>>, vector<128x32xf32>,
    %c0_63 = arith.constant 0 : index
    %c0_64 = arith.constant 0 : index
    %152 = vector.load %arg10[%c0_63, %c0_64] : memref<256x48xf32, #tpu.memory_space<vmem>>, vector<256x48xf32>
    %c0_65 = arith.constant 0 : index
    %c0_66 = arith.constant 0 : index
    %153 = vector.load %arg6[%c0_65, %c0_66] : memref<48x64xf32, #tpu.memory_space<vmem>>, vector<48x64xf32>
    %c0_67 = arith.constant 0 : index
    %c0_68 = arith.constant 0 : index
    %154 = vector.load %arg8[%c0_67, %c0_68] : memref<2x128xf32, #tpu.memory_space<vmem>>, vector<1x64xf32>
    %cst_69 = arith.constant dense<0.000000e+00> : vector<256x64xf32>
    %155 = tpu.matmul %152, %153, %cst_69 {dimension_numbers = #tpu.dot_dimension_numbers<[1], [0], [0], [1], [0, 0, 1, 1], [], []>} : vector<256x48xf32>, vector<48x64xf32>, vector<256x64xf32> -> vector<256x64xf32>
    %156 = vector.broadcast %154 : vector<1x64xf32> to vector<256x64xf32>
    %157 = arith.addf %155, %156 : vector<256x64xf32>
    %cst_70 = arith.constant 0.000000e+00 : f32
    %158 = vector.broadcast %cst_70 : f32 to vector<256x64xf32>
    %159 = arith.maximumf %157, %158 : vector<256x64xf32>
    %c0_71 = arith.constant 0 : index
    %c0_72 = arith.constant 0 : index
    %160 = vector.load %arg7[%c0_71, %c0_72] : memref<64x128xf32, #tpu.memory_space<vmem>>, vector<64x128xf32>
    %c1 = arith.constant 1 : index
    %c0_73 = arith.constant 0 : index
    %161 = vector.load %arg8[%c1, %c0_73] : memref<2x128xf32, #tpu.memory_space<vmem>>, vector<1x128xf32>
    %cst_74 = arith.constant dense<0.000000e+00> : vector<256x128xf32>
    %162 = tpu.matmul %159, %160, %cst_74 {dimension_numbers = #tpu.dot_dimension_numbers<[1], [0], [0], [1], [0, 0, 1, 1], [], []>} : vector<256x64xf32>, vector<64x128xf32>, vector<256x128xf32> -> vector<256x128xf32>
    %163 = vector.broadcast %161 : vector<1x128xf32> to vector<256x128xf32>
    %164 = arith.addf %162, %163 : vector<256x128xf32>
    %cst_75 = arith.constant 0.000000e+00 : f32
    %165 = vector.broadcast %cst_75 : f32 to vector<256x128xf32>
    %166 = arith.maximumf %164, %165 : vector<256x128xf32>
    %c0_76 = arith.constant 0 : index
    %c0_77 = arith.constant 0 : index
    %c0_78 = arith.constant 0 : index
    %167 = vector.load %arg9[%c0_76, %c0_77, %c0_78] : memref<1x256x128xf32, #tpu.memory_space<vmem>>, vector<1x256x128xf32>
    %168 = vector.shape_cast %167 : vector<1x256x128xf32> to vector<256x128xf32>
    %169 = vector.shape_cast %166 : vector<256x128xf32> to vector<1x256x128xf32>
    tpu.vector_store %arg9[%c0_76, %c0_77, %c0_78], %169 {strides = array<i32>} : memref<1x256x128xf32, #tpu.memory_space<vmem>>, vector<1x256x128xf32>,
    return
  }
  func.func @transform_0(%arg0: i32, %arg1: i32) -> (i32, i32, i32) {
    %c0_i32 = arith.constant 0 : i32
    %c0_i32_0 = arith.constant 0 : i32
    return %arg0, %arg1, %c0_i32 : i32, i32, i32
  }
  func.func @transform_1(%arg0: i32, %arg1: i32) -> (i32, i32, i32) {
    %c0_i32 = arith.constant 0 : i32
    %c0_i32_0 = arith.constant 0 : i32
    %c0_i32_1 = arith.constant 0 : i32
    return %arg0, %c0_i32, %c0_i32_0 : i32, i32, i32
  }
  func.func @transform_2(%arg0: i32, %arg1: i32) -> (i32, i32, i32) {
    %c0_i32 = arith.constant 0 : i32
    %c0_i32_0 = arith.constant 0 : i32
    %c0_i32_1 = arith.constant 0 : i32
    return %arg0, %c0_i32, %c0_i32_0 : i32, i32, i32
  }
  func.func @transform_3(%arg0: i32, %arg1: i32) -> (i32, i32, i32) {
    %c0_i32 = arith.constant 0 : i32
    %c0_i32_0 = arith.constant 0 : i32
    return %arg0, %arg1, %c0_i32 : i32, i32, i32
  }
  func.func @transform_4(%arg0: i32, %arg1: i32) -> (i32, i32) {
    %c0_i32 = arith.constant 0 : i32
    %c0_i32_0 = arith.constant 0 : i32
    %c0_i32_1 = arith.constant 0 : i32
    return %c0_i32, %c0_i32_0 : i32, i32
  }
  func.func @transform_5(%arg0: i32, %arg1: i32) -> (i32, i32) {
    %c0_i32 = arith.constant 0 : i32
    %c0_i32_0 = arith.constant 0 : i32
    %c0_i32_1 = arith.constant 0 : i32
    return %c0_i32, %c0_i32_0 : i32, i32
  }
  func.func @transform_6(%arg0: i32, %arg1: i32) -> (i32, i32) {
    %c0_i32 = arith.constant 0 : i32
    %c0_i32_0 = arith.constant 0 : i32
    %c0_i32_1 = arith.constant 0 : i32
    return %c0_i32, %c0_i32_0 : i32, i32
  }
  func.func @transform_7(%arg0: i32, %arg1: i32) -> (i32, i32, i32) {
    %c0_i32 = arith.constant 0 : i32
    %c0_i32_0 = arith.constant 0 : i32
    return %arg0, %arg1, %c0_i32 : i32, i32, i32
  }
}

</mosaic_0001>

<llo_original>
// kernel: tpu_custom_call.1
$region0: #{tpu_custom_call.1}
  #allocation0 [shape = 'u32[]', space=smem, size = 0x4, offset = 0x4, fixed_abs, tag = 'smem constant byte address 0x4 - core index']
  #allocation1 [shape = 'u32[72,128]{1,0:T(1,128)}', space=vmem, size = 0x9000, scoped, tag = 'internal scratch']
  #allocation2 [shape = 'f32[256,48]{1,0:T(8,128)}', space=vmem, size = 0x20000, scoped, tag = 'scratch operand']
  %s0 = inlined_call_operand.vmem [shape: f32[2,512,8], index: 0, kind: input, shape index: {}]
  %s1 = inlined_call_operand.vmem [shape: f32[2,8,64], index: 1, kind: input, shape index: {}]
  %s2 = inlined_call_operand.vmem [shape: f32[2,64,32], index: 2, kind: input, shape index: {}]
  %s3 = inlined_call_operand.vmem [shape: f32[2,512,16], index: 3, kind: input, shape index: {}]
  %s4 = inlined_call_operand.vmem [shape: f32[48,64], index: 4, kind: input, shape index: {}]
  %s5 = inlined_call_operand.vmem [shape: f32[64,128], index: 5, kind: input, shape index: {}]
  %s6 = inlined_call_operand.vmem [shape: f32[2,128], index: 6, kind: input, shape index: {}]
  %s7 = inlined_call_operand.hbm [shape: f32[2,512,128], index: 7, kind: output, shape index: {}]
  %s8 = sld [smem:[#allocation0]]
  $region61: #{tpu_custom_call.1} parent=0
    _
  %s10 = ssub.s32 1, %s8
  %s11 = scalar_select 0, %s10, %s8
  $region1: #{tpu_custom_call.1} parent=0
    #allocation3 [shape = 'u8[262144]{0}', space=vmem, size = 0x40000, scoped, tag = 'output window, operand 0']
    #allocation4 [shape = 's32[2]{0}', space=sflag, size = 0x8, scoped, tag = 'scoped memory for tpu_custom_call.1']
    %12 = vsyncpa [#allocation4], 0
    %s13 = scalar_lea.sflag [#allocation4], 1
    %14 = vsyncpa %s13, 0
    loop: start=0, step=1, limit=6
    $region2: #{tpu_custom_call.1} parent=1 // loop_pre_header
      _
    $region3: #{tpu_custom_call.1} parent=1 // loop_header
      %s16 = sphi 0, %s20
      %p17 = scmp.ge.s32.totalorder %s16, 6
      %s23 = sphi 0, %s35
      %s24 = sphi 0, %s31
      %s25 = sphi 0, %s23
      %s26 = sphi 0, %s24
      %s27 = sphi 0, %s25
      %s28 = sphi 0, %s26
      %s40 = sphi 0, %s42
      %s43 = sphi 0, %s40
      %s44 = sphi 0, %s43
      %s60 = sphi 0, %s44
      %s66 = sphi 0, %s68
      %s69 = sphi 0, %s66
      %s70 = sphi 0, %s69
      %s86 = sphi 0, %s70
      %s92 = sphi 0, %s94
      %s95 = sphi 0, %s92
      %s96 = sphi 0, %s95
      %s112 = sphi 0, %s96
      %s120 = sphi 0, %s122
      %s123 = sphi 0, %s120
      %s124 = sphi 0, %s123
      %s140 = sphi 0, %s124
      %s144 = sphi 0, %s144
      %s146 = sphi 0, %s144
      %s147 = sphi 0, %s146
      %s161 = sphi 0, %s147
      %s165 = sphi 0, %s165
      %s167 = sphi 0, %s165
      %s168 = sphi 0, %s167
      %s182 = sphi 0, %s168
      %s186 = sphi 0, %s186
      %s188 = sphi 0, %s186
      %s189 = sphi 0, %s188
      %s203 = sphi 0, %s189
      %s211 = sphi 0, %s213
      %s214 = sphi 0, %s211
      %s215 = sphi 0, %s214
      %s231 = sphi 0, %s215
    $region4: #{tpu_custom_call.1} parent=1 // loop_header_branch
      %19 = sbr.rel (%p17) target = $region8
    $region5: #{tpu_custom_call.1} parent=1 // loop_body
      %s21 = ssub.s32 %s16, 1
      %s22 = ssub.s32 %s16, 2
      %s29 = sadd.s32 1, %s24
      %p30 = scmp.ge.s32.totalorder %s29, 2
      %s31 = scalar_select %p30, 0, %s29
      %s32 = sadd.s32 1, %s23
      %s33 = scalar_select %p30, %s32, %s23
      %p34 = scmp.ge.s32.totalorder %s33, 2
      %s35 = scalar_select %p34, 0, %s33
      %s36 = ssub.s32 %s23, %s35
      %s37 = ssub.s32 %s24, %s31
      %s38 = sor.u32 %s36, %s37
      %p39 = scmp.eq.s32.totalorder %s38, 0
      %s41 = sadd.s32 %s40, 1
      %s42 = scalar_select %p39, %s40, %s41
      %p45 = pneg %p39
      %p46 = scmp.eq.s32.totalorder %s16, 3
      %p47 = por %p45, %p46
      %p48 = scmp.ne.s32.totalorder %s40, %s43
      %p49 = scmp.eq.s32.totalorder %s16, 0
      %p50 = por %p48, %p49
      %p51 = scmp.ne.s32.totalorder %s40, %s43
      %p52 = scmp.eq.s32.totalorder %s21, 3
      %p53 = por %p51, %p52
      %p54 = scmp.ne.s32.totalorder %s43, %s44
      %p55 = scmp.eq.s32.totalorder %s21, 0
      %p56 = por %p54, %p55
      %p57 = scmp.ne.s32.totalorder %s43, %s44
      %p58 = scmp.eq.s32.totalorder %s22, 3
      %p59 = por %p57, %p58
      %p61 = scmp.ne.s32.totalorder %s44, %s60
      %p62 = scmp.eq.s32.totalorder %s22, 0
      %p63 = por %p61, %p62
      %s64 = ssub.s32 %s23, %s35
      %p65 = scmp.eq.s32.totalorder %s64, 0
      %s67 = sadd.s32 %s66, 1
      %s68 = scalar_select %p65, %s66, %s67
      %p71 = pneg %p65
      %p72 = scmp.eq.s32.totalorder %s16, 3
      %p73 = por %p71, %p72
      %p74 = scmp.ne.s32.totalorder %s66, %s69
      %p75 = scmp.eq.s32.totalorder %s16, 0
      %p76 = por %p74, %p75
      %p77 = scmp.ne.s32.totalorder %s66, %s69
      %p78 = scmp.eq.s32.totalorder %s21, 3
      %p79 = por %p77, %p78
      %p80 = scmp.ne.s32.totalorder %s69, %s70
      %p81 = scmp.eq.s32.totalorder %s21, 0
      %p82 = por %p80, %p81
      %p83 = scmp.ne.s32.totalorder %s69, %s70
      %p84 = scmp.eq.s32.totalorder %s22, 3
      %p85 = por %p83, %p84
      %p87 = scmp.ne.s32.totalorder %s70, %s86
      %p88 = scmp.eq.s32.totalorder %s22, 0
      %p89 = por %p87, %p88
      %s90 = ssub.s32 %s23, %s35
      %p91 = scmp.eq.s32.totalorder %s90, 0
      %s93 = sadd.s32 %s92, 1
      %s94 = scalar_select %p91, %s92, %s93
      %p97 = pneg %p91
      %p98 = scmp.eq.s32.totalorder %s16, 3
      %p99 = por %p97, %p98
      %p100 = scmp.ne.s32.totalorder %s92, %s95
      %p101 = scmp.eq.s32.totalorder %s16, 0
      %p102 = por %p100, %p101
      %p103 = scmp.ne.s32.totalorder %s92, %s95
      %p104 = scmp.eq.s32.totalorder %s21, 3
      %p105 = por %p103, %p104
      %p106 = scmp.ne.s32.totalorder %s95, %s96
      %p107 = scmp.eq.s32.totalorder %s21, 0
      %p108 = por %p106, %p107
      %p109 = scmp.ne.s32.totalorder %s95, %s96
      %p110 = scmp.eq.s32.totalorder %s22, 3
      %p111 = por %p109, %p110
      %p113 = scmp.ne.s32.totalorder %s96, %s112
      %p114 = scmp.eq.s32.totalorder %s22, 0
      %p115 = por %p113, %p114
      %s116 = ssub.s32 %s23, %s35
      %s117 = ssub.s32 %s24, %s31
      %s118 = sor.u32 %s116, %s117
      %p119 = scmp.eq.s32.totalorder %s118, 0
      %s121 = sadd.s32 %s120, 1
      %s122 = scalar_select %p119, %s120, %s121
      %p125 = pneg %p119
      %p126 = scmp.eq.s32.totalorder %s16, 3
      %p127 = por %p125, %p126
      %p128 = scmp.ne.s32.totalorder %s120, %s123
      %p129 = scmp.eq.s32.totalorder %s16, 0
      %p130 = por %p128, %p129
      %p131 = scmp.ne.s32.totalorder %s120, %s123
      %p132 = scmp.eq.s32.totalorder %s21, 3
      %p133 = por %p131, %p132
      %p134 = scmp.ne.s32.totalorder %s123, %s124
      %p135 = scmp.eq.s32.totalorder %s21, 0
      %p136 = por %p134, %p135
      %p137 = scmp.ne.s32.totalorder %s123, %s124
      %p138 = scmp.eq.s32.totalorder %s22, 3
      %p139 = por %p137, %p138
      %p141 = scmp.ne.s32.totalorder %s124, %s140
      %p142 = scmp.eq.s32.totalorder %s22, 0
      %p143 = por %p141, %p142
      %s145 = sadd.s32 %s144, 1
      %p148 = scmp.eq.s32.totalorder %s16, 3
      %p149 = scmp.ne.s32.totalorder %s144, %s146
      %p150 = scmp.eq.s32.totalorder %s16, 0
      %p151 = por %p149, %p150
      %p152 = scmp.ne.s32.totalorder %s144, %s146
      %p153 = scmp.eq.s32.totalorder %s21, 3
      %p154 = por %p152, %p153
      %p155 = scmp.ne.s32.totalorder %s146, %s147
      %p156 = scmp.eq.s32.totalorder %s21, 0
      %p157 = por %p155, %p156
      %p158 = scmp.ne.s32.totalorder %s146, %s147
      %p159 = scmp.eq.s32.totalorder %s22, 3
      %p160 = por %p158, %p159
      %p162 = scmp.ne.s32.totalorder %s147, %s161
      %p163 = scmp.eq.s32.totalorder %s22, 0
      %p164 = por %p162, %p163
      %s166 = sadd.s32 %s165, 1
      %p169 = scmp.eq.s32.totalorder %s16, 3
      %p170 = scmp.ne.s32.totalorder %s165, %s167
      %p171 = scmp.eq.s32.totalorder %s16, 0
      %p172 = por %p170, %p171
      %p173 = scmp.ne.s32.totalorder %s165, %s167
      %p174 = scmp.eq.s32.totalorder %s21, 3
      %p175 = por %p173, %p174
      %p176 = scmp.ne.s32.totalorder %s167, %s168
      %p177 = scmp.eq.s32.totalorder %s21, 0
      %p178 = por %p176, %p177
      %p179 = scmp.ne.s32.totalorder %s167, %s168
      %p180 = scmp.eq.s32.totalorder %s22, 3
      %p181 = por %p179, %p180
      %p183 = scmp.ne.s32.totalorder %s168, %s182
      %p184 = scmp.eq.s32.totalorder %s22, 0
      %p185 = por %p183, %p184
      %s187 = sadd.s32 %s186, 1
      %p190 = scmp.eq.s32.totalorder %s16, 3
      %p191 = scmp.ne.s32.totalorder %s186, %s188
      %p192 = scmp.eq.s32.totalorder %s16, 0
      %p193 = por %p191, %p192
      %p194 = scmp.ne.s32.totalorder %s186, %s188
      %p195 = scmp.eq.s32.totalorder %s21, 3
      %p196 = por %p194, %p195
      %p197 = scmp.ne.s32.totalorder %s188, %s189
      %p198 = scmp.eq.s32.totalorder %s21, 0
      %p199 = por %p197, %p198
      %p200 = scmp.ne.s32.totalorder %s188, %s189
      %p201 = scmp.eq.s32.totalorder %s22, 3
      %p202 = por %p200, %p201
      %p204 = scmp.ne.s32.totalorder %s189, %s203
      %p205 = scmp.eq.s32.totalorder %s22, 0
      %p206 = por %p204, %p205
      %s207 = ssub.s32 %s23, %s35
      %s208 = ssub.s32 %s24, %s31
      %s209 = sor.u32 %s207, %s208
      %p210 = scmp.eq.s32.totalorder %s209, 0
      %s212 = sadd.s32 %s211, 1
      %s213 = scalar_select %p210, %s211, %s212
      %p216 = pneg %p210
      %p217 = scmp.eq.s32.totalorder %s16, 3
      %p218 = por %p216, %p217
      %p219 = scmp.ne.s32.totalorder %s211, %s214
      %p220 = scmp.eq.s32.totalorder %s16, 0
      %p221 = por %p219, %p220
      %p222 = scmp.ne.s32.totalorder %s211, %s214
      %p223 = scmp.eq.s32.totalorder %s21, 3
      %p224 = por %p222, %p223
      %p225 = scmp.ne.s32.totalorder %s214, %s215
      %p226 = scmp.eq.s32.totalorder %s21, 0
      %p227 = por %p225, %p226
      %p228 = scmp.ne.s32.totalorder %s214, %s215
      %p229 = scmp.eq.s32.totalorder %s22, 3
      %p230 = por %p228, %p229
      %p232 = scmp.ne.s32.totalorder %s215, %s231
      %p233 = scmp.eq.s32.totalorder %s22, 0
      %p234 = por %p232, %p233
      %p235 = scmp.le.s32.totalorder 1, %s16
      %p236 = scmp.lt.s32.totalorder %s16, 5
      %p237 = pnand %p235, %p236
      %p238 = pneg %p237
      // Predicated region
      $region9: #{tpu_custom_call.1} parent=5 // pred_check
        _
      $region10: #{tpu_custom_call.1} parent=5 // pred_check_branch
        %240 = sbr.rel (%p237) target = $region12
      $region11: #{tpu_custom_call.1} parent=5 // pred_region
        %s241 = ssub.s32 %s16, 1
        // Predicated region
        $region13: #{tpu_custom_call.1} parent=11 // pred_check
          %p242 = pneg %p157
        $region14: #{tpu_custom_call.1} parent=11 // pred_check_branch
          %244 = sbr.rel (%p242) target = $region16
        $region15: #{tpu_custom_call.1} parent=11 // pred_region
          _
        $region16: #{tpu_custom_call.1} parent=11 // pred_fallthru
          _
        // Predicated region
        $region17: #{tpu_custom_call.1} parent=11 // pred_check
          %p245 = pneg %p178
        $region18: #{tpu_custom_call.1} parent=11 // pred_check_branch
          %247 = sbr.rel (%p245) target = $region20
        $region19: #{tpu_custom_call.1} parent=11 // pred_region
          _
        $region20: #{tpu_custom_call.1} parent=11 // pred_fallthru
          _
        // Predicated region
        $region21: #{tpu_custom_call.1} parent=11 // pred_check
          %p248 = pneg %p199
        $region22: #{tpu_custom_call.1} parent=11 // pred_check_branch
          %250 = sbr.rel (%p248) target = $region24
        $region23: #{tpu_custom_call.1} parent=11 // pred_region
          _
        $region24: #{tpu_custom_call.1} parent=11 // pred_fallthru
          _
      $region12: #{tpu_custom_call.1} parent=5 // pred_fallthru
        _
      %p251 = scmp.lt.s32.totalorder %s16, 4
      // Predicated region
      $region25: #{tpu_custom_call.1} parent=5 // pred_check
        %p252 = pneg %p251
      $region26: #{tpu_custom_call.1} parent=5 // pred_check_branch
        %254 = sbr.rel (%p252) target = $region28
      $region27: #{tpu_custom_call.1} parent=5 // pred_region
        // Predicated region
        $region29: #{tpu_custom_call.1} parent=27 // pred_check
          %p255 = pneg %p50
        $region30: #{tpu_custom_call.1} parent=27 // pred_check_branch
          %257 = sbr.rel (%p255) target = $region32
        $region31: #{tpu_custom_call.1} parent=27 // pred_region
          %s258 = smul.u32 32, %s24
          %p259 = scmp.lt.s32.totalorder %s23, 1
          %s260 = scalar_select %p259, %s23, 1
          %p261 = scmp.lt.s32.totalorder %s258, 63
          %s262 = scalar_select %p261, %s258, 63
          %s263 = smul.addr %s260, 64
          %s264 = sadd.s32 %s262, %s263
          %s265 = smul.addr %s264, 8
          %s266 = scalar_lea.vmem %s0, %s265
          %s267 = smul.u32 32, %s24
        $region32: #{tpu_custom_call.1} parent=27 // pred_fallthru
          _
        // Predicated region
        $region33: #{tpu_custom_call.1} parent=27 // pred_check
          %p268 = pneg %p76
        $region34: #{tpu_custom_call.1} parent=27 // pred_check_branch
          %270 = sbr.rel (%p268) target = $region36
        $region35: #{tpu_custom_call.1} parent=27 // pred_region
          %p271 = scmp.lt.s32.totalorder %s23, 1
          %s272 = scalar_select %p271, %s23, 1
          %s273 = smul.addr %s272, 8
          %s274 = scalar_lea.vmem %s1, %s273
        $region36: #{tpu_custom_call.1} parent=27 // pred_fallthru
          _
        // Predicated region
        $region37: #{tpu_custom_call.1} parent=27 // pred_check
          %p275 = pneg %p102
        $region38: #{tpu_custom_call.1} parent=27 // pred_check_branch
          %277 = sbr.rel (%p275) target = $region40
        $region39: #{tpu_custom_call.1} parent=27 // pred_region
          %p278 = scmp.lt.s32.totalorder %s23, 1
          %s279 = scalar_select %p278, %s23, 1
          %s280 = smul.addr %s279, 8
          %s281 = smul.addr %s280, 8
          %s282 = scalar_lea.vmem %s2, %s281
        $region40: #{tpu_custom_call.1} parent=27 // pred_fallthru
          _
        // Predicated region
        $region41: #{tpu_custom_call.1} parent=27 // pred_check
          %p283 = pneg %p130
        $region42: #{tpu_custom_call.1} parent=27 // pred_check_branch
          %285 = sbr.rel (%p283) target = $region44
        $region43: #{tpu_custom_call.1} parent=27 // pred_region
          %s286 = smul.u32 32, %s24
          %p287 = scmp.lt.s32.totalorder %s23, 1
          %s288 = scalar_select %p287, %s23, 1
          %p289 = scmp.lt.s32.totalorder %s286, 63
          %s290 = scalar_select %p289, %s286, 63
          %s291 = smul.addr %s288, 64
          %s292 = sadd.s32 %s290, %s291
          %s293 = smul.addr %s292, 8
          %s294 = scalar_lea.vmem %s3, %s293
          %s295 = smul.u32 32, %s24
        $region44: #{tpu_custom_call.1} parent=27 // pred_fallthru
          _
      $region28: #{tpu_custom_call.1} parent=5 // pred_fallthru
        _
      %p296 = scmp.le.s32.totalorder 1, %s16
      %p297 = scmp.lt.s32.totalorder %s16, 5
      %p298 = pnand %p296, %p297
      %p299 = pneg %p298
      // Predicated region
      $region45: #{tpu_custom_call.1} parent=5 // pred_check
        _
      $region46: #{tpu_custom_call.1} parent=5 // pred_check_branch
        %301 = sbr.rel (%p298) target = $region48
      $region47: #{tpu_custom_call.1} parent=5 // pred_region
        %s302 = ssub.s32 %s16, 1
        %s303 = smul.u32 32, %s26
        %p304 = scmp.lt.s32.totalorder %s25, 1
        %s305 = scalar_select %p304, %s25, 1
        %p306 = scmp.lt.s32.totalorder %s303, 63
        %s307 = scalar_select %p306, %s303, 63
        %s308 = smul.addr %s305, 64
        %s309 = sadd.s32 %s307, %s308
        %s310 = smul.addr %s309, 8
        %s311 = scalar_lea.vmem %s0, %s310
        %p312 = pneg %p56
        %p313 = pneg %p53
        %p314 = scmp.lt.s32.totalorder %s25, 1
        %s315 = scalar_select %p314, %s25, 1
        %s316 = smul.addr %s315, 8
        %s317 = scalar_lea.vmem %s1, %s316
        %p318 = pneg %p82
        %p319 = pneg %p79
        %p320 = scmp.lt.s32.totalorder %s25, 1
        %s321 = scalar_select %p320, %s25, 1
        %s322 = smul.addr %s321, 8
        %s323 = smul.addr %s322, 8
        %s324 = scalar_lea.vmem %s2, %s323
        %p325 = pneg %p108
        %p326 = pneg %p105
        %s327 = smul.u32 32, %s26
        %p328 = scmp.lt.s32.totalorder %s25, 1
        %s329 = scalar_select %p328, %s25, 1
        %p330 = scmp.lt.s32.totalorder %s327, 63
        %s331 = scalar_select %p330, %s327, 63
        %s332 = smul.addr %s329, 64
        %s333 = sadd.s32 %s331, %s332
        %s334 = smul.addr %s333, 8
        %s335 = scalar_lea.vmem %s3, %s334
        %p336 = pneg %p136
        %p337 = pneg %p133
        %p338 = pneg %p157
        %p339 = pneg %p154
        %p340 = pneg %p178
        %p341 = pneg %p175
        %p342 = pneg %p199
        %p343 = pneg %p196
        %p344 = pneg %p227
        %p345 = pneg %p224
        %s346 = sand.u32 %s214, 1
        %s347 = scalar_lea.sflag [#allocation4], %s346
        %s348 = sand.u32 %s214, 1
        %s349 = smul.addr %s348, 256
        %s350 = scalar_lea.vmem [#allocation3], %s349
        %s351 = smul.u32 32, %s26
        %p352 = scmp.lt.s32.totalorder %s25, 1
        %s353 = scalar_select %p352, %s25, 1
        %p354 = scmp.lt.s32.totalorder %s351, 63
        %s355 = scalar_select %p354, %s351, 63
        %s356 = smul.addr %s353, 64
        %s357 = sadd.s32 %s355, %s356
        %s358 = smul.addr %s357, 8
        %s359 = scalar_lea.vmem %s0, %s358
        %s360 = smul.u32 32, %s26
        %p361 = scmp.lt.s32.totalorder %s25, 1
        %s362 = scalar_select %p361, %s25, 1
        %s363 = smul.addr %s362, 8
        %s364 = scalar_lea.vmem %s1, %s363
        %p365 = scmp.lt.s32.totalorder %s25, 1
        %s366 = scalar_select %p365, %s25, 1
        %s367 = smul.addr %s366, 8
        %s368 = smul.addr %s367, 8
        %s369 = scalar_lea.vmem %s2, %s368
        %s370 = smul.u32 32, %s26
        %p371 = scmp.lt.s32.totalorder %s25, 1
        %s372 = scalar_select %p371, %s25, 1
        %p373 = scmp.lt.s32.totalorder %s370, 63
        %s374 = scalar_select %p373, %s370, 63
        %s375 = smul.addr %s372, 64
        %s376 = sadd.s32 %s374, %s375
        %s377 = smul.addr %s376, 8
        %s378 = scalar_lea.vmem %s3, %s377
        %s379 = smul.u32 32, %s26
        %s380 = smul.u32 32, %s26
        %v381 = vld [vmem:[%s364] sm:$0xff]
        %v382 = vmul.f32 %v381, %v381
        %vm383 = vcmask 523264
        %v384 = vsel %vm383, %v382, 0.0
        %v385 = vrot.slane %v384, 4
        %v386 = vadd.f32 %v384, %v385
        %v387 = vrot.slane %v386, 2
        %v388 = vadd.f32 %v386, %v387
        %v389 = vrot.slane %v388, 1
        %v390 = vadd.f32 %v388, %v389
        %v391 = vld [vmem:[%s378] sm:$0xff]
        %v392 = vld [vmem:[%s378 + $0x8] sm:$0xff]
        %v393 = vld [vmem:[%s378 + $0x10] sm:$0xff]
        %v394 = vld [vmem:[%s378 + $0x18] sm:$0xff]
        %v395 = vld [vmem:[%s378 + $0x20] sm:$0xff]
        %v396 = vld [vmem:[%s378 + $0x28] sm:$0xff]
        %v397 = vld [vmem:[%s378 + $0x30] sm:$0xff]
        %v398 = vld [vmem:[%s378 + $0x38] sm:$0xff]
        %v399 = vld [vmem:[%s378 + $0x40] sm:$0xff]
        %v400 = vld [vmem:[%s378 + $0x48] sm:$0xff]
        %v401 = vld [vmem:[%s378 + $0x50] sm:$0xff]
        %v402 = vld [vmem:[%s378 + $0x58] sm:$0xff]
        %v403 = vld [vmem:[%s378 + $0x60] sm:$0xff]
        %v404 = vld [vmem:[%s378 + $0x68] sm:$0xff]
        %v405 = vld [vmem:[%s378 + $0x70] sm:$0xff]
        %v406 = vld [vmem:[%s378 + $0x78] sm:$0xff]
        %v407 = vld [vmem:[%s378 + $0x80] sm:$0xff]
        %v408 = vld [vmem:[%s378 + $0x88] sm:$0xff]
        %v409 = vld [vmem:[%s378 + $0x90] sm:$0xff]
        %v410 = vld [vmem:[%s378 + $0x98] sm:$0xff]
        %v411 = vld [vmem:[%s378 + $0xa0] sm:$0xff]
        %v412 = vld [vmem:[%s378 + $0xa8] sm:$0xff]
        %v413 = vld [vmem:[%s378 + $0xb0] sm:$0xff]
        %v414 = vld [vmem:[%s378 + $0xb8] sm:$0xff]
        %v415 = vld [vmem:[%s378 + $0xc0] sm:$0xff]
        %v416 = vld [vmem:[%s378 + $0xc8] sm:$0xff]
        %v417 = vld [vmem:[%s378 + $0xd0] sm:$0xff]
        %v418 = vld [vmem:[%s378 + $0xd8] sm:$0xff]
        %v419 = vld [vmem:[%s378 + $0xe0] sm:$0xff]
        %v420 = vld [vmem:[%s378 + $0xe8] sm:$0xff]
        %v421 = vld [vmem:[%s378 + $0xf0] sm:$0xff]
        %v422 = vld [vmem:[%s378 + $0xf8] sm:$0xff]
        %455 = vrot.lane.b32.xlu0 %v391, 32
        %v456 = vpop.permute.xlu0 %455
        %457 = vrot.lane.b32.xlu0 %v392, 32
        %v458 = vpop.permute.xlu0 %457
        %459 = vrot.lane.b32.xlu0 %v393, 32
        %v460 = vpop.permute.xlu0 %459
        %461 = vrot.lane.b32.xlu0 %v394, 32
        %v462 = vpop.permute.xlu0 %461
        %463 = vrot.lane.b32.xlu0 %v395, 32
        %v464 = vpop.permute.xlu0 %463
        %465 = vrot.lane.b32.xlu0 %v396, 32
        %v466 = vpop.permute.xlu0 %465
        %467 = vrot.lane.b32.xlu0 %v397, 32
        %v468 = vpop.permute.xlu0 %467
        %469 = vrot.lane.b32.xlu0 %v398, 32
        %v470 = vpop.permute.xlu0 %469
        %471 = vrot.lane.b32.xlu0 %v399, 32
        %v472 = vpop.permute.xlu0 %471
        %473 = vrot.lane.b32.xlu0 %v400, 32
        %v474 = vpop.permute.xlu0 %473
        %475 = vrot.lane.b32.xlu0 %v401, 32
        %v476 = vpop.permute.xlu0 %475
        %477 = vrot.lane.b32.xlu0 %v402, 32
        %v478 = vpop.permute.xlu0 %477
        %479 = vrot.lane.b32.xlu0 %v403, 32
        %v480 = vpop.permute.xlu0 %479
        %481 = vrot.lane.b32.xlu0 %v404, 32
        %v482 = vpop.permute.xlu0 %481
        %483 = vrot.lane.b32.xlu0 %v405, 32
        %v484 = vpop.permute.xlu0 %483
        %485 = vrot.lane.b32.xlu0 %v406, 32
        %v486 = vpop.permute.xlu0 %485
        %487 = vrot.lane.b32.xlu0 %v407, 32
        %v488 = vpop.permute.xlu0 %487
        %489 = vrot.lane.b32.xlu0 %v408, 32
        %v490 = vpop.permute.xlu0 %489
        %491 = vrot.lane.b32.xlu0 %v409, 32
        %v492 = vpop.permute.xlu0 %491
        %493 = vrot.lane.b32.xlu0 %v410, 32
        %v494 = vpop.permute.xlu0 %493
        %495 = vrot.lane.b32.xlu0 %v411, 32
        %v496 = vpop.permute.xlu0 %495
        %497 = vrot.lane.b32.xlu0 %v412, 32
        %v498 = vpop.permute.xlu0 %497
        %499 = vrot.lane.b32.xlu0 %v413, 32
        %v500 = vpop.permute.xlu0 %499
        %501 = vrot.lane.b32.xlu0 %v414, 32
        %v502 = vpop.permute.xlu0 %501
        %503 = vrot.lane.b32.xlu0 %v415, 32
        %v504 = vpop.permute.xlu0 %503
        %505 = vrot.lane.b32.xlu0 %v416, 32
        %v506 = vpop.permute.xlu0 %505
        %507 = vrot.lane.b32.xlu0 %v417, 32
        %v508 = vpop.permute.xlu0 %507
        %509 = vrot.lane.b32.xlu0 %v418, 32
        %v510 = vpop.permute.xlu0 %509
        %511 = vrot.lane.b32.xlu0 %v419, 32
        %v512 = vpop.permute.xlu0 %511
        %513 = vrot.lane.b32.xlu0 %v420, 32
        %v514 = vpop.permute.xlu0 %513
        %515 = vrot.lane.b32.xlu0 %v421, 32
        %v516 = vpop.permute.xlu0 %515
        %517 = vrot.lane.b32.xlu0 %v422, 32
        %v518 = vpop.permute.xlu0 %517
        %vm551 = vcmask 392448
        %552 = vst.msk [vmem:[#allocation2] sm:$0xff] %vm551, %v456
        %553 = vst.msk [vmem:[#allocation2 + $0x8] sm:$0xff] %vm551, %v458
        %554 = vst.msk [vmem:[#allocation2 + $0x10] sm:$0xff] %vm551, %v460
        %555 = vst.msk [vmem:[#allocation2 + $0x18] sm:$0xff] %vm551, %v462
        %556 = vst.msk [vmem:[#allocation2 + $0x20] sm:$0xff] %vm551, %v464
        %557 = vst.msk [vmem:[#allocation2 + $0x28] sm:$0xff] %vm551, %v466
        %558 = vst.msk [vmem:[#allocation2 + $0x30] sm:$0xff] %vm551, %v468
        %559 = vst.msk [vmem:[#allocation2 + $0x38] sm:$0xff] %vm551, %v470
        %560 = vst.msk [vmem:[#allocation2 + $0x40] sm:$0xff] %vm551, %v472
        %561 = vst.msk [vmem:[#allocation2 + $0x48] sm:$0xff] %vm551, %v474
        %562 = vst.msk [vmem:[#allocation2 + $0x50] sm:$0xff] %vm551, %v476
        %563 = vst.msk [vmem:[#allocation2 + $0x58] sm:$0xff] %vm551, %v478
        %564 = vst.msk [vmem:[#allocation2 + $0x60] sm:$0xff] %vm551, %v480
        %565 = vst.msk [vmem:[#allocation2 + $0x68] sm:$0xff] %vm551, %v482
        %566 = vst.msk [vmem:[#allocation2 + $0x70] sm:$0xff] %vm551, %v484
        %567 = vst.msk [vmem:[#allocation2 + $0x78] sm:$0xff] %vm551, %v486
        %568 = vst.msk [vmem:[#allocation2 + $0x80] sm:$0xff] %vm551, %v488
        %569 = vst.msk [vmem:[#allocation2 + $0x88] sm:$0xff] %vm551, %v490
        %570 = vst.msk [vmem:[#allocation2 + $0x90] sm:$0xff] %vm551, %v492
        %571 = vst.msk [vmem:[#allocation2 + $0x98] sm:$0xff] %vm551, %v494
        %572 = vst.msk [vmem:[#allocation2 + $0xa0] sm:$0xff] %vm551, %v496
        %573 = vst.msk [vmem:[#allocation2 + $0xa8] sm:$0xff] %vm551, %v498
        %574 = vst.msk [vmem:[#allocation2 + $0xb0] sm:$0xff] %vm551, %v500
        %575 = vst.msk [vmem:[#allocation2 + $0xb8] sm:$0xff] %vm551, %v502
        %576 = vst.msk [vmem:[#allocation2 + $0xc0] sm:$0xff] %vm551, %v504
        %577 = vst.msk [vmem:[#allocation2 + $0xc8] sm:$0xff] %vm551, %v506
        %578 = vst.msk [vmem:[#allocation2 + $0xd0] sm:$0xff] %vm551, %v508
        %579 = vst.msk [vmem:[#allocation2 + $0xd8] sm:$0xff] %vm551, %v510
        %580 = vst.msk [vmem:[#allocation2 + $0xe0] sm:$0xff] %vm551, %v512
        %581 = vst.msk [vmem:[#allocation2 + $0xe8] sm:$0xff] %vm551, %v514
        %582 = vst.msk [vmem:[#allocation2 + $0xf0] sm:$0xff] %vm551, %v516
        %583 = vst.msk [vmem:[#allocation2 + $0xf8] sm:$0xff] %vm551, %v518
        %v584 = vld [vmem:[%s359] sm:$0xff]
        %v585 = vld [vmem:[%s359 + $0x8] sm:$0xff]
        %v586 = vld [vmem:[%s359 + $0x10] sm:$0xff]
        %v587 = vld [vmem:[%s359 + $0x18] sm:$0xff]
        %v588 = vld [vmem:[%s359 + $0x20] sm:$0xff]
        %v589 = vld [vmem:[%s359 + $0x28] sm:$0xff]
        %v590 = vld [vmem:[%s359 + $0x30] sm:$0xff]
        %v591 = vld [vmem:[%s359 + $0x38] sm:$0xff]
        %v592 = vld [vmem:[%s359 + $0x40] sm:$0xff]
        %v593 = vld [vmem:[%s359 + $0x48] sm:$0xff]
        %v594 = vld [vmem:[%s359 + $0x50] sm:$0xff]
        %v595 = vld [vmem:[%s359 + $0x58] sm:$0xff]
        %v596 = vld [vmem:[%s359 + $0x60] sm:$0xff]
        %v597 = vld [vmem:[%s359 + $0x68] sm:$0xff]
        %v598 = vld [vmem:[%s359 + $0x70] sm:$0xff]
        %v599 = vld [vmem:[%s359 + $0x78] sm:$0xff]
        %v600 = vmul.f32 %v584, %v584
        %v601 = vmul.f32 %v585, %v585
        %v602 = vmul.f32 %v586, %v586
        %v603 = vmul.f32 %v587, %v587
        %v604 = vmul.f32 %v588, %v588
        %v605 = vmul.f32 %v589, %v589
        %v606 = vmul.f32 %v590, %v590
        %v607 = vmul.f32 %v591, %v591
        %v608 = vmul.f32 %v592, %v592
        %v609 = vmul.f32 %v593, %v593
        %v610 = vmul.f32 %v594, %v594
        %v611 = vmul.f32 %v595, %v595
        %v612 = vmul.f32 %v596, %v596
        %v613 = vmul.f32 %v597, %v597
        %v614 = vmul.f32 %v598, %v598
        %v615 = vmul.f32 %v599, %v599
        %vm616 = vcmask 64512
        %v617 = vsel %vm616, %v600, 0.0
        %618 = vadd.xlane.f32.xlu0 %v617
        %v619 = vpop.xlane.xlu0 %618
        %v620 = vsel %vm616, %v601, 0.0
        %621 = vadd.xlane.f32.xlu0 %v620
        %v622 = vpop.xlane.xlu0 %621
        %v623 = vsel %vm616, %v602, 0.0
        %624 = vadd.xlane.f32.xlu0 %v623
        %v625 = vpop.xlane.xlu0 %624
        %v626 = vsel %vm616, %v603, 0.0
        %627 = vadd.xlane.f32.xlu0 %v626
        %v628 = vpop.xlane.xlu0 %627
        %v629 = vsel %vm616, %v604, 0.0
        %630 = vadd.xlane.f32.xlu0 %v629
        %v631 = vpop.xlane.xlu0 %630
        %v632 = vsel %vm616, %v605, 0.0
        %633 = vadd.xlane.f32.xlu0 %v632
        %v634 = vpop.xlane.xlu0 %633
        %v635 = vsel %vm616, %v606, 0.0
        %636 = vadd.xlane.f32.xlu0 %v635
        %v637 = vpop.xlane.xlu0 %636
        %v638 = vsel %vm616, %v607, 0.0
        %639 = vadd.xlane.f32.xlu0 %v638
        %v640 = vpop.xlane.xlu0 %639
        %v641 = vsel %vm616, %v608, 0.0
        %642 = vadd.xlane.f32.xlu0 %v641
        %v643 = vpop.xlane.xlu0 %642
        %v644 = vsel %vm616, %v609, 0.0
        %645 = vadd.xlane.f32.xlu0 %v644
        %v646 = vpop.xlane.xlu0 %645
        %v647 = vsel %vm616, %v610, 0.0
        %648 = vadd.xlane.f32.xlu0 %v647
        %v649 = vpop.xlane.xlu0 %648
        %v650 = vsel %vm616, %v611, 0.0
        %651 = vadd.xlane.f32.xlu0 %v650
        %v652 = vpop.xlane.xlu0 %651
        %v653 = vsel %vm616, %v612, 0.0
        %654 = vadd.xlane.f32.xlu0 %v653
        %v655 = vpop.xlane.xlu0 %654
        %v656 = vsel %vm616, %v613, 0.0
        %657 = vadd.xlane.f32.xlu0 %v656
        %v658 = vpop.xlane.xlu0 %657
        %v659 = vsel %vm616, %v614, 0.0
        %660 = vadd.xlane.f32.xlu0 %v659
        %v661 = vpop.xlane.xlu0 %660
        %v662 = vsel %vm616, %v615, 0.0
        %663 = vadd.xlane.f32.xlu0 %v662
        %v664 = vpop.xlane.xlu0 %663
        %v666 = vsel %vm616, %v584, 0
        %v669 = vsel %vm616, %v585, 0
        %v672 = vsel %vm616, %v586, 0
        %v675 = vsel %vm616, %v587, 0
        %v678 = vsel %vm616, %v588, 0
        %v681 = vsel %vm616, %v589, 0
        %v684 = vsel %vm616, %v590, 0
        %v687 = vsel %vm616, %v591, 0
        %v690 = vsel %vm616, %v592, 0
        %v693 = vsel %vm616, %v593, 0
        %v696 = vsel %vm616, %v594, 0
        %v699 = vsel %vm616, %v595, 0
        %v702 = vsel %vm616, %v596, 0
        %v705 = vsel %vm616, %v597, 0
        %v708 = vsel %vm616, %v598, 0
        %v711 = vsel %vm616, %v599, 0
        %713 = vmatpush.msra.mxu0 0.0
        %714 = vmatpush.msra.mxu0 0.0
        %715 = vmatpush.msra.mxu0 0.0
        %716 = vmatpush.msra.mxu0 0.0
        %717 = vmatpush.msra.mxu0 0.0
        %718 = vmatpush.msra.mxu0 0.0
        %719 = vmatpush.msra.mxu0 0.0
        %720 = vmatpush.msra.mxu0 0.0
        %721 = vmatpush.msra.mxu0 0.0
        %722 = vmatpush.msra.mxu0 0.0
        %723 = vmatpush.msra.mxu0 0.0
        %724 = vmatpush.msra.mxu0 0.0
        %725 = vmatpush.msra.mxu0 0.0
        %726 = vmatpush.msra.mxu0 0.0
        %727 = vmatpush.msra.mxu0 0.0
        %728 = vmatpush.msra.mxu0 %v381
        %729 = vmatmul.f32.gmra.mxu0 %v666
        %v730 = vpop.f32.mrf.mxu0
        %v731 = vadd.f32 0.0, %v730
        %732 = vmatmul.f32.gmra.mxu0 %v669
        %v733 = vpop.f32.mrf.mxu0
        %v734 = vadd.f32 0.0, %v733
        %735 = vmatmul.f32.gmra.mxu0 %v672
        %v736 = vpop.f32.mrf.mxu0
        %v737 = vadd.f32 0.0, %v736
        %738 = vmatmul.f32.gmra.mxu0 %v675
        %v739 = vpop.f32.mrf.mxu0
        %v740 = vadd.f32 0.0, %v739
        %741 = vmatmul.f32.gmra.mxu0 %v678
        %v742 = vpop.f32.mrf.mxu0
        %v743 = vadd.f32 0.0, %v742
        %744 = vmatmul.f32.gmra.mxu0 %v681
        %v745 = vpop.f32.mrf.mxu0
        %v746 = vadd.f32 0.0, %v745
        %747 = vmatmul.f32.gmra.mxu0 %v684
        %v748 = vpop.f32.mrf.mxu0
        %v749 = vadd.f32 0.0, %v748
        %750 = vmatmul.f32.gmra.mxu0 %v687
        %v751 = vpop.f32.mrf.mxu0
        %v752 = vadd.f32 0.0, %v751
        %753 = vmatmul.f32.gmra.mxu0 %v690
        %v754 = vpop.f32.mrf.mxu0
        %v755 = vadd.f32 0.0, %v754
        %756 = vmatmul.f32.gmra.mxu0 %v693
        %v757 = vpop.f32.mrf.mxu0
        %v758 = vadd.f32 0.0, %v757
        %759 = vmatmul.f32.gmra.mxu0 %v696
        %v760 = vpop.f32.mrf.mxu0
        %v761 = vadd.f32 0.0, %v760
        %762 = vmatmul.f32.gmra.mxu0 %v699
        %v763 = vpop.f32.mrf.mxu0
        %v764 = vadd.f32 0.0, %v763
        %765 = vmatmul.f32.gmra.mxu0 %v702
        %v766 = vpop.f32.mrf.mxu0
        %v767 = vadd.f32 0.0, %v766
        %768 = vmatmul.f32.gmra.mxu0 %v705
        %v769 = vpop.f32.mrf.mxu0
        %v770 = vadd.f32 0.0, %v769
        %771 = vmatmul.f32.gmra.mxu0 %v708
        %v772 = vpop.f32.mrf.mxu0
        %v773 = vadd.f32 0.0, %v772
        %774 = vmatmul.f32.gmra.mxu0 %v711
        %v775 = vpop.f32.mrf.mxu0
        %v776 = vadd.f32 0.0, %v775
        %777 = vdwg.mxu0
        %v778 = vadd.f32 %v619, %v390
        %v779 = vadd.f32 %v622, %v390
        %v780 = vadd.f32 %v625, %v390
        %v781 = vadd.f32 %v628, %v390
        %v782 = vadd.f32 %v631, %v390
        %v783 = vadd.f32 %v634, %v390
        %v784 = vadd.f32 %v637, %v390
        %v785 = vadd.f32 %v640, %v390
        %v786 = vadd.f32 %v643, %v390
        %v787 = vadd.f32 %v646, %v390
        %v788 = vadd.f32 %v649, %v390
        %v789 = vadd.f32 %v652, %v390
        %v790 = vadd.f32 %v655, %v390
        %v791 = vadd.f32 %v658, %v390
        %v792 = vadd.f32 %v661, %v390
        %v793 = vadd.f32 %v664, %v390
        %v794 = vmul.f32 %v731, 2.0
        %v795 = vmul.f32 %v734, 2.0
        %v796 = vmul.f32 %v737, 2.0
        %v797 = vmul.f32 %v740, 2.0
        %v798 = vmul.f32 %v743, 2.0
        %v799 = vmul.f32 %v746, 2.0
        %v800 = vmul.f32 %v749, 2.0
        %v801 = vmul.f32 %v752, 2.0
        %v802 = vmul.f32 %v755, 2.0
        %v803 = vmul.f32 %v758, 2.0
        %v804 = vmul.f32 %v761, 2.0
        %v805 = vmul.f32 %v764, 2.0
        %v806 = vmul.f32 %v767, 2.0
        %v807 = vmul.f32 %v770, 2.0
        %v808 = vmul.f32 %v773, 2.0
        %v809 = vmul.f32 %v776, 2.0
        %v810 = vsub.f32 %v778, %v794
        %v811 = vsub.f32 %v779, %v795
        %v812 = vsub.f32 %v780, %v796
        %v813 = vsub.f32 %v781, %v797
        %v814 = vsub.f32 %v782, %v798
        %v815 = vsub.f32 %v783, %v799
        %v816 = vsub.f32 %v784, %v800
        %v817 = vsub.f32 %v785, %v801
        %v818 = vsub.f32 %v786, %v802
        %v819 = vsub.f32 %v787, %v803
        %v820 = vsub.f32 %v788, %v804
        %v821 = vsub.f32 %v789, %v805
        %v822 = vsub.f32 %v790, %v806
        %v823 = vsub.f32 %v791, %v807
        %v824 = vsub.f32 %v792, %v808
        %v825 = vsub.f32 %v793, %v809
        %v826 = vmax.f32 %v810, 0.0
        %v827 = vmax.f32 %v811, 0.0
        %v828 = vmax.f32 %v812, 0.0
        %v829 = vmax.f32 %v813, 0.0
        %v830 = vmax.f32 %v814, 0.0
        %v831 = vmax.f32 %v815, 0.0
        %v832 = vmax.f32 %v816, 0.0
        %v833 = vmax.f32 %v817, 0.0
        %v834 = vmax.f32 %v818, 0.0
        %v835 = vmax.f32 %v819, 0.0
        %v836 = vmax.f32 %v820, 0.0
        %v837 = vmax.f32 %v821, 0.0
        %v838 = vmax.f32 %v822, 0.0
        %v839 = vmax.f32 %v823, 0.0
        %v840 = vmax.f32 %v824, 0.0
        %v841 = vmax.f32 %v825, 0.0
        %v842 = vsel %vm383, %v826, inf
        %843 = vmin.xlane.f32.xlu0 %v842
        %v844 = vpop.xlane.xlu0 %843
        %v845 = vsel %vm383, %v827, inf
        %846 = vmin.xlane.f32.xlu0 %v845
        %v847 = vpop.xlane.xlu0 %846
        %v848 = vsel %vm383, %v828, inf
        %849 = vmin.xlane.f32.xlu0 %v848
        %v850 = vpop.xlane.xlu0 %849
        %v851 = vsel %vm383, %v829, inf
        %852 = vmin.xlane.f32.xlu0 %v851
        %v853 = vpop.xlane.xlu0 %852
        %v854 = vsel %vm383, %v830, inf
        %855 = vmin.xlane.f32.xlu0 %v854
        %v856 = vpop.xlane.xlu0 %855
        %v857 = vsel %vm383, %v831, inf
        %858 = vmin.xlane.f32.xlu0 %v857
        %v859 = vpop.xlane.xlu0 %858
        %v860 = vsel %vm383, %v832, inf
        %861 = vmin.xlane.f32.xlu0 %v860
        %v862 = vpop.xlane.xlu0 %861
        %v863 = vsel %vm383, %v833, inf
        %864 = vmin.xlane.f32.xlu0 %v863
        %v865 = vpop.xlane.xlu0 %864
        %v866 = vsel %vm383, %v834, inf
        %867 = vmin.xlane.f32.xlu0 %v866
        %v868 = vpop.xlane.xlu0 %867
        %v869 = vsel %vm383, %v835, inf
        %870 = vmin.xlane.f32.xlu0 %v869
        %v871 = vpop.xlane.xlu0 %870
        %v872 = vsel %vm383, %v836, inf
        %873 = vmin.xlane.f32.xlu0 %v872
        %v874 = vpop.xlane.xlu0 %873
        %v875 = vsel %vm383, %v837, inf
        %876 = vmin.xlane.f32.xlu0 %v875
        %v877 = vpop.xlane.xlu0 %876
        %v878 = vsel %vm383, %v838, inf
        %879 = vmin.xlane.f32.xlu0 %v878
        %v880 = vpop.xlane.xlu0 %879
        %v881 = vsel %vm383, %v839, inf
        %882 = vmin.xlane.f32.xlu0 %v881
        %v883 = vpop.xlane.xlu0 %882
        %v884 = vsel %vm383, %v840, inf
        %885 = vmin.xlane.f32.xlu0 %v884
        %v886 = vpop.xlane.xlu0 %885
        %v887 = vsel %vm383, %v841, inf
        %888 = vmin.xlane.f32.xlu0 %v887
        %v889 = vpop.xlane.xlu0 %888
        %vm890 = vcmp.eq.f32.partialorder %v826, %v844
        %vm891 = vcmp.eq.f32.partialorder %v827, %v847
        %vm892 = vcmp.eq.f32.partialorder %v828, %v850
        %vm893 = vcmp.eq.f32.partialorder %v829, %v853
        %vm894 = vcmp.eq.f32.partialorder %v830, %v856
        %vm895 = vcmp.eq.f32.partialorder %v831, %v859
        %vm896 = vcmp.eq.f32.partialorder %v832, %v862
        %vm897 = vcmp.eq.f32.partialorder %v833, %v865
        %vm898 = vcmp.eq.f32.partialorder %v834, %v868
        %vm899 = vcmp.eq.f32.partialorder %v835, %v871
        %vm900 = vcmp.eq.f32.partialorder %v836, %v874
        %vm901 = vcmp.eq.f32.partialorder %v837, %v877
        %vm902 = vcmp.eq.f32.partialorder %v838, %v880
        %vm903 = vcmp.eq.f32.partialorder %v839, %v883
        %vm904 = vcmp.eq.f32.partialorder %v840, %v886
        %vm905 = vcmp.eq.f32.partialorder %v841, %v889
        %v906 = vrsqrt.pop %v844
        %v907 = vmul.f32 %v906, %v844
        %v908 = vmul.f32 %v907, %v906
        %v909 = vmul.f32 0.5, %v908
        %v910 = vsub.f32 1.5, %v909
        %v911 = vmul.f32 %v906, %v910
        %v912 = vmul.f32 %v844, %v911
        %vm913 = vcmp.eq.f32.partialorder %v844, inf
        %v914 = vsel %vm913, %v844, %v912
        %vm915 = vcmp.eq.f32.partialorder %v844, 0.0
        %v916 = vand.u32 %v844, 2147483648
        %v917 = vsel %vm915, %v916, %v914
        %v918 = vrsqrt.pop %v847
        %v919 = vmul.f32 %v918, %v847
        %v920 = vmul.f32 %v919, %v918
        %v921 = vmul.f32 0.5, %v920
        %v922 = vsub.f32 1.5, %v921
        %v923 = vmul.f32 %v918, %v922
        %v924 = vmul.f32 %v847, %v923
        %vm925 = vcmp.eq.f32.partialorder %v847, inf
        %v926 = vsel %vm925, %v847, %v924
        %vm927 = vcmp.eq.f32.partialorder %v847, 0.0
        %v928 = vand.u32 %v847, 2147483648
        %v929 = vsel %vm927, %v928, %v926
        %v930 = vrsqrt.pop %v850
        %v931 = vmul.f32 %v930, %v850
        %v932 = vmul.f32 %v931, %v930
        %v933 = vmul.f32 0.5, %v932
        %v934 = vsub.f32 1.5, %v933
        %v935 = vmul.f32 %v930, %v934
        %v936 = vmul.f32 %v850, %v935
        %vm937 = vcmp.eq.f32.partialorder %v850, inf
        %v938 = vsel %vm937, %v850, %v936
        %vm939 = vcmp.eq.f32.partialorder %v850, 0.0
        %v940 = vand.u32 %v850, 2147483648
        %v941 = vsel %vm939, %v940, %v938
        %v942 = vrsqrt.pop %v853
        %v943 = vmul.f32 %v942, %v853
        %v944 = vmul.f32 %v943, %v942
        %v945 = vmul.f32 0.5, %v944
        %v946 = vsub.f32 1.5, %v945
        %v947 = vmul.f32 %v942, %v946
        %v948 = vmul.f32 %v853, %v947
        %vm949 = vcmp.eq.f32.partialorder %v853, inf
        %v950 = vsel %vm949, %v853, %v948
        %vm951 = vcmp.eq.f32.partialorder %v853, 0.0
        %v952 = vand.u32 %v853, 2147483648
        %v953 = vsel %vm951, %v952, %v950
        %v954 = vrsqrt.pop %v856
        %v955 = vmul.f32 %v954, %v856
        %v956 = vmul.f32 %v955, %v954
        %v957 = vmul.f32 0.5, %v956
        %v958 = vsub.f32 1.5, %v957
        %v959 = vmul.f32 %v954, %v958
        %v960 = vmul.f32 %v856, %v959
        %vm961 = vcmp.eq.f32.partialorder %v856, inf
        %v962 = vsel %vm961, %v856, %v960
        %vm963 = vcmp.eq.f32.partialorder %v856, 0.0
        %v964 = vand.u32 %v856, 2147483648
        %v965 = vsel %vm963, %v964, %v962
        %v966 = vrsqrt.pop %v859
        %v967 = vmul.f32 %v966, %v859
        %v968 = vmul.f32 %v967, %v966
        %v969 = vmul.f32 0.5, %v968
        %v970 = vsub.f32 1.5, %v969
        %v971 = vmul.f32 %v966, %v970
        %v972 = vmul.f32 %v859, %v971
        %vm973 = vcmp.eq.f32.partialorder %v859, inf
        %v974 = vsel %vm973, %v859, %v972
        %vm975 = vcmp.eq.f32.partialorder %v859, 0.0
        %v976 = vand.u32 %v859, 2147483648
        %v977 = vsel %vm975, %v976, %v974
        %v978 = vrsqrt.pop %v862
        %v979 = vmul.f32 %v978, %v862
        %v980 = vmul.f32 %v979, %v978
        %v981 = vmul.f32 0.5, %v980
        %v982 = vsub.f32 1.5, %v981
        %v983 = vmul.f32 %v978, %v982
        %v984 = vmul.f32 %v862, %v983
        %vm985 = vcmp.eq.f32.partialorder %v862, inf
        %v986 = vsel %vm985, %v862, %v984
        %vm987 = vcmp.eq.f32.partialorder %v862, 0.0
        %v988 = vand.u32 %v862, 2147483648
        %v989 = vsel %vm987, %v988, %v986
        %v990 = vrsqrt.pop %v865
        %v991 = vmul.f32 %v990, %v865
        %v992 = vmul.f32 %v991, %v990
        %v993 = vmul.f32 0.5, %v992
        %v994 = vsub.f32 1.5, %v993
        %v995 = vmul.f32 %v990, %v994
        %v996 = vmul.f32 %v865, %v995
        %vm997 = vcmp.eq.f32.partialorder %v865, inf
        %v998 = vsel %vm997, %v865, %v996
        %vm999 = vcmp.eq.f32.partialorder %v865, 0.0
        %v1000 = vand.u32 %v865, 2147483648
        %v1001 = vsel %vm999, %v1000, %v998
        %v1002 = vrsqrt.pop %v868
        %v1003 = vmul.f32 %v1002, %v868
        %v1004 = vmul.f32 %v1003, %v1002
        %v1005 = vmul.f32 0.5, %v1004
        %v1006 = vsub.f32 1.5, %v1005
        %v1007 = vmul.f32 %v1002, %v1006
        %v1008 = vmul.f32 %v868, %v1007
        %vm1009 = vcmp.eq.f32.partialorder %v868, inf
        %v1010 = vsel %vm1009, %v868, %v1008
        %vm1011 = vcmp.eq.f32.partialorder %v868, 0.0
        %v1012 = vand.u32 %v868, 2147483648
        %v1013 = vsel %vm1011, %v1012, %v1010
        %v1014 = vrsqrt.pop %v871
        %v1015 = vmul.f32 %v1014, %v871
        %v1016 = vmul.f32 %v1015, %v1014
        %v1017 = vmul.f32 0.5, %v1016
        %v1018 = vsub.f32 1.5, %v1017
        %v1019 = vmul.f32 %v1014, %v1018
        %v1020 = vmul.f32 %v871, %v1019
        %vm1021 = vcmp.eq.f32.partialorder %v871, inf
        %v1022 = vsel %vm1021, %v871, %v1020
        %vm1023 = vcmp.eq.f32.partialorder %v871, 0.0
        %v1024 = vand.u32 %v871, 2147483648
        %v1025 = vsel %vm1023, %v1024, %v1022
        %v1026 = vrsqrt.pop %v874
        %v1027 = vmul.f32 %v1026, %v874
        %v1028 = vmul.f32 %v1027, %v1026
        %v1029 = vmul.f32 0.5, %v1028
        %v1030 = vsub.f32 1.5, %v1029
        %v1031 = vmul.f32 %v1026, %v1030
        %v1032 = vmul.f32 %v874, %v1031
        %vm1033 = vcmp.eq.f32.partialorder %v874, inf
        %v1034 = vsel %vm1033, %v874, %v1032
        %vm1035 = vcmp.eq.f32.partialorder %v874, 0.0
        %v1036 = vand.u32 %v874, 2147483648
        %v1037 = vsel %vm1035, %v1036, %v1034
        %v1038 = vrsqrt.pop %v877
        %v1039 = vmul.f32 %v1038, %v877
        %v1040 = vmul.f32 %v1039, %v1038
        %v1041 = vmul.f32 0.5, %v1040
        %v1042 = vsub.f32 1.5, %v1041
        %v1043 = vmul.f32 %v1038, %v1042
        %v1044 = vmul.f32 %v877, %v1043
        %vm1045 = vcmp.eq.f32.partialorder %v877, inf
        %v1046 = vsel %vm1045, %v877, %v1044
        %vm1047 = vcmp.eq.f32.partialorder %v877, 0.0
        %v1048 = vand.u32 %v877, 2147483648
        %v1049 = vsel %vm1047, %v1048, %v1046
        %v1050 = vrsqrt.pop %v880
        %v1051 = vmul.f32 %v1050, %v880
        %v1052 = vmul.f32 %v1051, %v1050
        %v1053 = vmul.f32 0.5, %v1052
        %v1054 = vsub.f32 1.5, %v1053
        %v1055 = vmul.f32 %v1050, %v1054
        %v1056 = vmul.f32 %v880, %v1055
        %vm1057 = vcmp.eq.f32.partialorder %v880, inf
        %v1058 = vsel %vm1057, %v880, %v1056
        %vm1059 = vcmp.eq.f32.partialorder %v880, 0.0
        %v1060 = vand.u32 %v880, 2147483648
        %v1061 = vsel %vm1059, %v1060, %v1058
        %v1062 = vrsqrt.pop %v883
        %v1063 = vmul.f32 %v1062, %v883
        %v1064 = vmul.f32 %v1063, %v1062
        %v1065 = vmul.f32 0.5, %v1064
        %v1066 = vsub.f32 1.5, %v1065
        %v1067 = vmul.f32 %v1062, %v1066
        %v1068 = vmul.f32 %v883, %v1067
        %vm1069 = vcmp.eq.f32.partialorder %v883, inf
        %v1070 = vsel %vm1069, %v883, %v1068
        %vm1071 = vcmp.eq.f32.partialorder %v883, 0.0
        %v1072 = vand.u32 %v883, 2147483648
        %v1073 = vsel %vm1071, %v1072, %v1070
        %v1074 = vrsqrt.pop %v886
        %v1075 = vmul.f32 %v1074, %v886
        %v1076 = vmul.f32 %v1075, %v1074
        %v1077 = vmul.f32 0.5, %v1076
        %v1078 = vsub.f32 1.5, %v1077
        %v1079 = vmul.f32 %v1074, %v1078
        %v1080 = vmul.f32 %v886, %v1079
        %vm1081 = vcmp.eq.f32.partialorder %v886, inf
        %v1082 = vsel %vm1081, %v886, %v1080
        %vm1083 = vcmp.eq.f32.partialorder %v886, 0.0
        %v1084 = vand.u32 %v886, 2147483648
        %v1085 = vsel %vm1083, %v1084, %v1082
        %v1086 = vrsqrt.pop %v889
        %v1087 = vmul.f32 %v1086, %v889
        %v1088 = vmul.f32 %v1087, %v1086
        %v1089 = vmul.f32 0.5, %v1088
        %v1090 = vsub.f32 1.5, %v1089
        %v1091 = vmul.f32 %v1086, %v1090
        %v1092 = vmul.f32 %v889, %v1091
        %vm1093 = vcmp.eq.f32.partialorder %v889, inf
        %v1094 = vsel %vm1093, %v889, %v1092
        %vm1095 = vcmp.eq.f32.partialorder %v889, 0.0
        %v1096 = vand.u32 %v889, 2147483648
        %v1097 = vsel %vm1095, %v1096, %v1094
        %v1098 = vadd.f32 %v917, 1e-08
        %v1099 = vadd.f32 %v929, 1e-08
        %v1100 = vadd.f32 %v941, 1e-08
        %v1101 = vadd.f32 %v953, 1e-08
        %v1102 = vadd.f32 %v965, 1e-08
        %v1103 = vadd.f32 %v977, 1e-08
        %v1104 = vadd.f32 %v989, 1e-08
        %v1105 = vadd.f32 %v1001, 1e-08
        %v1106 = vadd.f32 %v1013, 1e-08
        %v1107 = vadd.f32 %v1025, 1e-08
        %v1108 = vadd.f32 %v1037, 1e-08
        %v1109 = vadd.f32 %v1049, 1e-08
        %v1110 = vadd.f32 %v1061, 1e-08
        %v1111 = vadd.f32 %v1073, 1e-08
        %v1112 = vadd.f32 %v1085, 1e-08
        %v1113 = vadd.f32 %v1097, 1e-08
        %v1114 = vrcp.pop %v1098
        %v1115 = vmul.f32 %v1098, %v1114
        %v1116 = vsub.f32 1.0, %v1115
        %v1117 = vmul.f32 %v1114, %v1116
        %v1118 = vadd.f32 %v1114, %v1117
        %vm1119 = vweird.f32 %v1098
        %vm1120 = vweird.f32 %v1114
        %vm1121 = vmor %vm1119, %vm1120
        %v1122 = vsel %vm1121, %v1114, %v1118
        %v1123 = vand.u32 2147483647, %v1098
        %vm1124 = vcmp.eq.f32.partialorder %v1123, 8.507059e+37
        %v1125 = vand.u32 %v1098, 2147483648
        %v1126 = vor.u32 1.1754944e-38, %v1125
        %v1127 = vsel %vm1124, %v1126, %v1122
        %v1128 = vmul.f32 1.0, %v1127
        %v1129 = vrcp.pop %v1099
        %v1130 = vmul.f32 %v1099, %v1129
        %v1131 = vsub.f32 1.0, %v1130
        %v1132 = vmul.f32 %v1129, %v1131
        %v1133 = vadd.f32 %v1129, %v1132
        %vm1134 = vweird.f32 %v1099
        %vm1135 = vweird.f32 %v1129
        %vm1136 = vmor %vm1134, %vm1135
        %v1137 = vsel %vm1136, %v1129, %v1133
        %v1138 = vand.u32 2147483647, %v1099
        %vm1139 = vcmp.eq.f32.partialorder %v1138, 8.507059e+37
        %v1140 = vand.u32 %v1099, 2147483648
        %v1141 = vor.u32 1.1754944e-38, %v1140
        %v1142 = vsel %vm1139, %v1141, %v1137
        %v1143 = vmul.f32 1.0, %v1142
        %v1144 = vrcp.pop %v1100
        %v1145 = vmul.f32 %v1100, %v1144
        %v1146 = vsub.f32 1.0, %v1145
        %v1147 = vmul.f32 %v1144, %v1146
        %v1148 = vadd.f32 %v1144, %v1147
        %vm1149 = vweird.f32 %v1100
        %vm1150 = vweird.f32 %v1144
        %vm1151 = vmor %vm1149, %vm1150
        %v1152 = vsel %vm1151, %v1144, %v1148
        %v1153 = vand.u32 2147483647, %v1100
        %vm1154 = vcmp.eq.f32.partialorder %v1153, 8.507059e+37
        %v1155 = vand.u32 %v1100, 2147483648
        %v1156 = vor.u32 1.1754944e-38, %v1155
        %v1157 = vsel %vm1154, %v1156, %v1152
        %v1158 = vmul.f32 1.0, %v1157
        %v1159 = vrcp.pop %v1101
        %v1160 = vmul.f32 %v1101, %v1159
        %v1161 = vsub.f32 1.0, %v1160
        %v1162 = vmul.f32 %v1159, %v1161
        %v1163 = vadd.f32 %v1159, %v1162
        %vm1164 = vweird.f32 %v1101
        %vm1165 = vweird.f32 %v1159
        %vm1166 = vmor %vm1164, %vm1165
        %v1167 = vsel %vm1166, %v1159, %v1163
        %v1168 = vand.u32 2147483647, %v1101
        %vm1169 = vcmp.eq.f32.partialorder %v1168, 8.507059e+37
        %v1170 = vand.u32 %v1101, 2147483648
        %v1171 = vor.u32 1.1754944e-38, %v1170
        %v1172 = vsel %vm1169, %v1171, %v1167
        %v1173 = vmul.f32 1.0, %v1172
        %v1174 = vrcp.pop %v1102
        %v1175 = vmul.f32 %v1102, %v1174
        %v1176 = vsub.f32 1.0, %v1175
        %v1177 = vmul.f32 %v1174, %v1176
        %v1178 = vadd.f32 %v1174, %v1177
        %vm1179 = vweird.f32 %v1102
        %vm1180 = vweird.f32 %v1174
        %vm1181 = vmor %vm1179, %vm1180
        %v1182 = vsel %vm1181, %v1174, %v1178
        %v1183 = vand.u32 2147483647, %v1102
        %vm1184 = vcmp.eq.f32.partialorder %v1183, 8.507059e+37
        %v1185 = vand.u32 %v1102, 2147483648
        %v1186 = vor.u32 1.1754944e-38, %v1185
        %v1187 = vsel %vm1184, %v1186, %v1182
        %v1188 = vmul.f32 1.0, %v1187
        %v1189 = vrcp.pop %v1103
        %v1190 = vmul.f32 %v1103, %v1189
        %v1191 = vsub.f32 1.0, %v1190
        %v1192 = vmul.f32 %v1189, %v1191
        %v1193 = vadd.f32 %v1189, %v1192
        %vm1194 = vweird.f32 %v1103
        %vm1195 = vweird.f32 %v1189
        %vm1196 = vmor %vm1194, %vm1195
        %v1197 = vsel %vm1196, %v1189, %v1193
        %v1198 = vand.u32 2147483647, %v1103
        %vm1199 = vcmp.eq.f32.partialorder %v1198, 8.507059e+37
        %v1200 = vand.u32 %v1103, 2147483648
        %v1201 = vor.u32 1.1754944e-38, %v1200
        %v1202 = vsel %vm1199, %v1201, %v1197
        %v1203 = vmul.f32 1.0, %v1202
        %v1204 = vrcp.pop %v1104
        %v1205 = vmul.f32 %v1104, %v1204
        %v1206 = vsub.f32 1.0, %v1205
        %v1207 = vmul.f32 %v1204, %v1206
        %v1208 = vadd.f32 %v1204, %v1207
        %vm1209 = vweird.f32 %v1104
        %vm1210 = vweird.f32 %v1204
        %vm1211 = vmor %vm1209, %vm1210
        %v1212 = vsel %vm1211, %v1204, %v1208
        %v1213 = vand.u32 2147483647, %v1104
        %vm1214 = vcmp.eq.f32.partialorder %v1213, 8.507059e+37
        %v1215 = vand.u32 %v1104, 2147483648
        %v1216 = vor.u32 1.1754944e-38, %v1215
        %v1217 = vsel %vm1214, %v1216, %v1212
        %v1218 = vmul.f32 1.0, %v1217
        %v1219 = vrcp.pop %v1105
        %v1220 = vmul.f32 %v1105, %v1219
        %v1221 = vsub.f32 1.0, %v1220
        %v1222 = vmul.f32 %v1219, %v1221
        %v1223 = vadd.f32 %v1219, %v1222
        %vm1224 = vweird.f32 %v1105
        %vm1225 = vweird.f32 %v1219
        %vm1226 = vmor %vm1224, %vm1225
        %v1227 = vsel %vm1226, %v1219, %v1223
        %v1228 = vand.u32 2147483647, %v1105
        %vm1229 = vcmp.eq.f32.partialorder %v1228, 8.507059e+37
        %v1230 = vand.u32 %v1105, 2147483648
        %v1231 = vor.u32 1.1754944e-38, %v1230
        %v1232 = vsel %vm1229, %v1231, %v1227
        %v1233 = vmul.f32 1.0, %v1232
        %v1234 = vrcp.pop %v1106
        %v1235 = vmul.f32 %v1106, %v1234
        %v1236 = vsub.f32 1.0, %v1235
        %v1237 = vmul.f32 %v1234, %v1236
        %v1238 = vadd.f32 %v1234, %v1237
        %vm1239 = vweird.f32 %v1106
        %vm1240 = vweird.f32 %v1234
        %vm1241 = vmor %vm1239, %vm1240
        %v1242 = vsel %vm1241, %v1234, %v1238
        %v1243 = vand.u32 2147483647, %v1106
        %vm1244 = vcmp.eq.f32.partialorder %v1243, 8.507059e+37
        %v1245 = vand.u32 %v1106, 2147483648
        %v1246 = vor.u32 1.1754944e-38, %v1245
        %v1247 = vsel %vm1244, %v1246, %v1242
        %v1248 = vmul.f32 1.0, %v1247
        %v1249 = vrcp.pop %v1107
        %v1250 = vmul.f32 %v1107, %v1249
        %v1251 = vsub.f32 1.0, %v1250
        %v1252 = vmul.f32 %v1249, %v1251
        %v1253 = vadd.f32 %v1249, %v1252
        %vm1254 = vweird.f32 %v1107
        %vm1255 = vweird.f32 %v1249
        %vm1256 = vmor %vm1254, %vm1255
        %v1257 = vsel %vm1256, %v1249, %v1253
        %v1258 = vand.u32 2147483647, %v1107
        %vm1259 = vcmp.eq.f32.partialorder %v1258, 8.507059e+37
        %v1260 = vand.u32 %v1107, 2147483648
        %v1261 = vor.u32 1.1754944e-38, %v1260
        %v1262 = vsel %vm1259, %v1261, %v1257
        %v1263 = vmul.f32 1.0, %v1262
        %v1264 = vrcp.pop %v1108
        %v1265 = vmul.f32 %v1108, %v1264
        %v1266 = vsub.f32 1.0, %v1265
        %v1267 = vmul.f32 %v1264, %v1266
        %v1268 = vadd.f32 %v1264, %v1267
        %vm1269 = vweird.f32 %v1108
        %vm1270 = vweird.f32 %v1264
        %vm1271 = vmor %vm1269, %vm1270
        %v1272 = vsel %vm1271, %v1264, %v1268
        %v1273 = vand.u32 2147483647, %v1108
        %vm1274 = vcmp.eq.f32.partialorder %v1273, 8.507059e+37
        %v1275 = vand.u32 %v1108, 2147483648
        %v1276 = vor.u32 1.1754944e-38, %v1275
        %v1277 = vsel %vm1274, %v1276, %v1272
        %v1278 = vmul.f32 1.0, %v1277
        %v1279 = vrcp.pop %v1109
        %v1280 = vmul.f32 %v1109, %v1279
        %v1281 = vsub.f32 1.0, %v1280
        %v1282 = vmul.f32 %v1279, %v1281
        %v1283 = vadd.f32 %v1279, %v1282
        %vm1284 = vweird.f32 %v1109
        %vm1285 = vweird.f32 %v1279
        %vm1286 = vmor %vm1284, %vm1285
        %v1287 = vsel %vm1286, %v1279, %v1283
        %v1288 = vand.u32 2147483647, %v1109
        %vm1289 = vcmp.eq.f32.partialorder %v1288, 8.507059e+37
        %v1290 = vand.u32 %v1109, 2147483648
        %v1291 = vor.u32 1.1754944e-38, %v1290
        %v1292 = vsel %vm1289, %v1291, %v1287
        %v1293 = vmul.f32 1.0, %v1292
        %v1294 = vrcp.pop %v1110
        %v1295 = vmul.f32 %v1110, %v1294
        %v1296 = vsub.f32 1.0, %v1295
        %v1297 = vmul.f32 %v1294, %v1296
        %v1298 = vadd.f32 %v1294, %v1297
        %vm1299 = vweird.f32 %v1110
        %vm1300 = vweird.f32 %v1294
        %vm1301 = vmor %vm1299, %vm1300
        %v1302 = vsel %vm1301, %v1294, %v1298
        %v1303 = vand.u32 2147483647, %v1110
        %vm1304 = vcmp.eq.f32.partialorder %v1303, 8.507059e+37
        %v1305 = vand.u32 %v1110, 2147483648
        %v1306 = vor.u32 1.1754944e-38, %v1305
        %v1307 = vsel %vm1304, %v1306, %v1302
        %v1308 = vmul.f32 1.0, %v1307
        %v1309 = vrcp.pop %v1111
        %v1310 = vmul.f32 %v1111, %v1309
        %v1311 = vsub.f32 1.0, %v1310
        %v1312 = vmul.f32 %v1309, %v1311
        %v1313 = vadd.f32 %v1309, %v1312
        %vm1314 = vweird.f32 %v1111
        %vm1315 = vweird.f32 %v1309
        %vm1316 = vmor %vm1314, %vm1315
        %v1317 = vsel %vm1316, %v1309, %v1313
        %v1318 = vand.u32 2147483647, %v1111
        %vm1319 = vcmp.eq.f32.partialorder %v1318, 8.507059e+37
        %v1320 = vand.u32 %v1111, 2147483648
        %v1321 = vor.u32 1.1754944e-38, %v1320
        %v1322 = vsel %vm1319, %v1321, %v1317
        %v1323 = vmul.f32 1.0, %v1322
        %v1324 = vrcp.pop %v1112
        %v1325 = vmul.f32 %v1112, %v1324
        %v1326 = vsub.f32 1.0, %v1325
        %v1327 = vmul.f32 %v1324, %v1326
        %v1328 = vadd.f32 %v1324, %v1327
        %vm1329 = vweird.f32 %v1112
        %vm1330 = vweird.f32 %v1324
        %vm1331 = vmor %vm1329, %vm1330
        %v1332 = vsel %vm1331, %v1324, %v1328
        %v1333 = vand.u32 2147483647, %v1112
        %vm1334 = vcmp.eq.f32.partialorder %v1333, 8.507059e+37
        %v1335 = vand.u32 %v1112, 2147483648
        %v1336 = vor.u32 1.1754944e-38, %v1335
        %v1337 = vsel %vm1334, %v1336, %v1332
        %v1338 = vmul.f32 1.0, %v1337
        %v1339 = vrcp.pop %v1113
        %v1340 = vmul.f32 %v1113, %v1339
        %v1341 = vsub.f32 1.0, %v1340
        %v1342 = vmul.f32 %v1339, %v1341
        %v1343 = vadd.f32 %v1339, %v1342
        %vm1344 = vweird.f32 %v1113
        %vm1345 = vweird.f32 %v1339
        %vm1346 = vmor %vm1344, %vm1345
        %v1347 = vsel %vm1346, %v1339, %v1343
        %v1348 = vand.u32 2147483647, %v1113
        %vm1349 = vcmp.eq.f32.partialorder %v1348, 8.507059e+37
        %v1350 = vand.u32 %v1113, 2147483648
        %v1351 = vor.u32 1.1754944e-38, %v1350
        %v1352 = vsel %vm1349, %v1351, %v1347
        %v1353 = vmul.f32 1.0, %v1352
        %v1354 = vsel %vm890, %v1128, 0.0
        %v1355 = vsel %vm891, %v1143, 0.0
        %v1356 = vsel %vm892, %v1158, 0.0
        %v1357 = vsel %vm893, %v1173, 0.0
        %v1358 = vsel %vm894, %v1188, 0.0
        %v1359 = vsel %vm895, %v1203, 0.0
        %v1360 = vsel %vm896, %v1218, 0.0
        %v1361 = vsel %vm897, %v1233, 0.0
        %v1362 = vsel %vm898, %v1248, 0.0
        %v1363 = vsel %vm899, %v1263, 0.0
        %v1364 = vsel %vm900, %v1278, 0.0
        %v1365 = vsel %vm901, %v1293, 0.0
        %v1366 = vsel %vm902, %v1308, 0.0
        %v1367 = vsel %vm903, %v1323, 0.0
        %v1368 = vsel %vm904, %v1338, 0.0
        %v1369 = vsel %vm905, %v1353, 0.0
        %v1370 = vadd.f32 %v1354, 0.0
        %v1371 = vadd.f32 %v1355, 0.0
        %v1372 = vadd.f32 %v1356, 0.0
        %v1373 = vadd.f32 %v1357, 0.0
        %v1374 = vadd.f32 %v1358, 0.0
        %v1375 = vadd.f32 %v1359, 0.0
        %v1376 = vadd.f32 %v1360, 0.0
        %v1377 = vadd.f32 %v1361, 0.0
        %v1378 = vadd.f32 %v1362, 0.0
        %v1379 = vadd.f32 %v1363, 0.0
        %v1380 = vadd.f32 %v1364, 0.0
        %v1381 = vadd.f32 %v1365, 0.0
        %v1382 = vadd.f32 %v1366, 0.0
        %v1383 = vadd.f32 %v1367, 0.0
        %v1384 = vadd.f32 %v1368, 0.0
        %v1385 = vadd.f32 %v1369, 0.0
        %v1386 = vadd.f32 %v1128, 0.0
        %v1387 = vadd.f32 %v1143, 0.0
        %v1388 = vadd.f32 %v1158, 0.0
        %v1389 = vadd.f32 %v1173, 0.0
        %v1390 = vadd.f32 %v1188, 0.0
        %v1391 = vadd.f32 %v1203, 0.0
        %v1392 = vadd.f32 %v1218, 0.0
        %v1393 = vadd.f32 %v1233, 0.0
        %v1394 = vadd.f32 %v1248, 0.0
        %v1395 = vadd.f32 %v1263, 0.0
        %v1396 = vadd.f32 %v1278, 0.0
        %v1397 = vadd.f32 %v1293, 0.0
        %v1398 = vadd.f32 %v1308, 0.0
        %v1399 = vadd.f32 %v1323, 0.0
        %v1400 = vadd.f32 %v1338, 0.0
        %v1401 = vadd.f32 %v1353, 0.0
        %v1402 = vsel %vm890, inf, %v826
        %v1403 = vsel %vm891, inf, %v827
        %v1404 = vsel %vm892, inf, %v828
        %v1405 = vsel %vm893, inf, %v829
        %v1406 = vsel %vm894, inf, %v830
        %v1407 = vsel %vm895, inf, %v831
        %v1408 = vsel %vm896, inf, %v832
        %v1409 = vsel %vm897, inf, %v833
        %v1410 = vsel %vm898, inf, %v834
        %v1411 = vsel %vm899, inf, %v835
        %v1412 = vsel %vm900, inf, %v836
        %v1413 = vsel %vm901, inf, %v837
        %v1414 = vsel %vm902, inf, %v838
        %v1415 = vsel %vm903, inf, %v839
        %v1416 = vsel %vm904, inf, %v840
        %v1417 = vsel %vm905, inf, %v841
        %v1418 = vsel %vm383, %v1402, inf
        %1419 = vmin.xlane.f32.xlu0 %v1418
        %v1420 = vpop.xlane.xlu0 %1419
        %v1421 = vsel %vm383, %v1403, inf
        %1422 = vmin.xlane.f32.xlu0 %v1421
        %v1423 = vpop.xlane.xlu0 %1422
        %v1424 = vsel %vm383, %v1404, inf
        %1425 = vmin.xlane.f32.xlu0 %v1424
        %v1426 = vpop.xlane.xlu0 %1425
        %v1427 = vsel %vm383, %v1405, inf
        %1428 = vmin.xlane.f32.xlu0 %v1427
        %v1429 = vpop.xlane.xlu0 %1428
        %v1430 = vsel %vm383, %v1406, inf
        %1431 = vmin.xlane.f32.xlu0 %v1430
        %v1432 = vpop.xlane.xlu0 %1431
        %v1433 = vsel %vm383, %v1407, inf
        %1434 = vmin.xlane.f32.xlu0 %v1433
        %v1435 = vpop.xlane.xlu0 %1434
        %v1436 = vsel %vm383, %v1408, inf
        %1437 = vmin.xlane.f32.xlu0 %v1436
        %v1438 = vpop.xlane.xlu0 %1437
        %v1439 = vsel %vm383, %v1409, inf
        %1440 = vmin.xlane.f32.xlu0 %v1439
        %v1441 = vpop.xlane.xlu0 %1440
        %v1442 = vsel %vm383, %v1410, inf
        %1443 = vmin.xlane.f32.xlu0 %v1442
        %v1444 = vpop.xlane.xlu0 %1443
        %v1445 = vsel %vm383, %v1411, inf
        %1446 = vmin.xlane.f32.xlu0 %v1445
        %v1447 = vpop.xlane.xlu0 %1446
        %v1448 = vsel %vm383, %v1412, inf
        %1449 = vmin.xlane.f32.xlu0 %v1448
        %v1450 = vpop.xlane.xlu0 %1449
        %v1451 = vsel %vm383, %v1413, inf
        %1452 = vmin.xlane.f32.xlu0 %v1451
        %v1453 = vpop.xlane.xlu0 %1452
        %v1454 = vsel %vm383, %v1414, inf
        %1455 = vmin.xlane.f32.xlu0 %v1454
        %v1456 = vpop.xlane.xlu0 %1455
        %v1457 = vsel %vm383, %v1415, inf
        %1458 = vmin.xlane.f32.xlu0 %v1457
        %v1459 = vpop.xlane.xlu0 %1458
        %v1460 = vsel %vm383, %v1416, inf
        %1461 = vmin.xlane.f32.xlu0 %v1460
        %v1462 = vpop.xlane.xlu0 %1461
        %v1463 = vsel %vm383, %v1417, inf
        %1464 = vmin.xlane.f32.xlu0 %v1463
        %v1465 = vpop.xlane.xlu0 %1464
        %vm1466 = vcmp.eq.f32.partialorder %v1402, %v1420
        %vm1467 = vcmp.eq.f32.partialorder %v1403, %v1423
        %vm1468 = vcmp.eq.f32.partialorder %v1404, %v1426
        %vm1469 = vcmp.eq.f32.partialorder %v1405, %v1429
        %vm1470 = vcmp.eq.f32.partialorder %v1406, %v1432
        %vm1471 = vcmp.eq.f32.partialorder %v1407, %v1435
        %vm1472 = vcmp.eq.f32.partialorder %v1408, %v1438
        %vm1473 = vcmp.eq.f32.partialorder %v1409, %v1441
        %vm1474 = vcmp.eq.f32.partialorder %v1410, %v1444
        %vm1475 = vcmp.eq.f32.partialorder %v1411, %v1447
        %vm1476 = vcmp.eq.f32.partialorder %v1412, %v1450
        %vm1477 = vcmp.eq.f32.partialorder %v1413, %v1453
        %vm1478 = vcmp.eq.f32.partialorder %v1414, %v1456
        %vm1479 = vcmp.eq.f32.partialorder %v1415, %v1459
        %vm1480 = vcmp.eq.f32.partialorder %v1416, %v1462
        %vm1481 = vcmp.eq.f32.partialorder %v1417, %v1465
        %v1482 = vrsqrt.pop %v1420
        %v1483 = vmul.f32 %v1482, %v1420
        %v1484 = vmul.f32 %v1483, %v1482
        %v1485 = vmul.f32 0.5, %v1484
        %v1486 = vsub.f32 1.5, %v1485
        %v1487 = vmul.f32 %v1482, %v1486
        %v1488 = vmul.f32 %v1420, %v1487
        %vm1489 = vcmp.eq.f32.partialorder %v1420, inf
        %v1490 = vsel %vm1489, %v1420, %v1488
        %vm1491 = vcmp.eq.f32.partialorder %v1420, 0.0
        %v1492 = vand.u32 %v1420, 2147483648
        %v1493 = vsel %vm1491, %v1492, %v1490
        %v1494 = vrsqrt.pop %v1423
        %v1495 = vmul.f32 %v1494, %v1423
        %v1496 = vmul.f32 %v1495, %v1494
        %v1497 = vmul.f32 0.5, %v1496
        %v1498 = vsub.f32 1.5, %v1497
        %v1499 = vmul.f32 %v1494, %v1498
        %v1500 = vmul.f32 %v1423, %v1499
        %vm1501 = vcmp.eq.f32.partialorder %v1423, inf
        %v1502 = vsel %vm1501, %v1423, %v1500
        %vm1503 = vcmp.eq.f32.partialorder %v1423, 0.0
        %v1504 = vand.u32 %v1423, 2147483648
        %v1505 = vsel %vm1503, %v1504, %v1502
        %v1506 = vrsqrt.pop %v1426
        %v1507 = vmul.f32 %v1506, %v1426
        %v1508 = vmul.f32 %v1507, %v1506
        %v1509 = vmul.f32 0.5, %v1508
        %v1510 = vsub.f32 1.5, %v1509
        %v1511 = vmul.f32 %v1506, %v1510
        %v1512 = vmul.f32 %v1426, %v1511
        %vm1513 = vcmp.eq.f32.partialorder %v1426, inf
        %v1514 = vsel %vm1513, %v1426, %v1512
        %vm1515 = vcmp.eq.f32.partialorder %v1426, 0.0
        %v1516 = vand.u32 %v1426, 2147483648
        %v1517 = vsel %vm1515, %v1516, %v1514
        %v1518 = vrsqrt.pop %v1429
        %v1519 = vmul.f32 %v1518, %v1429
        %v1520 = vmul.f32 %v1519, %v1518
        %v1521 = vmul.f32 0.5, %v1520
        %v1522 = vsub.f32 1.5, %v1521
        %v1523 = vmul.f32 %v1518, %v1522
        %v1524 = vmul.f32 %v1429, %v1523
        %vm1525 = vcmp.eq.f32.partialorder %v1429, inf
        %v1526 = vsel %vm1525, %v1429, %v1524
        %vm1527 = vcmp.eq.f32.partialorder %v1429, 0.0
        %v1528 = vand.u32 %v1429, 2147483648
        %v1529 = vsel %vm1527, %v1528, %v1526
        %v1530 = vrsqrt.pop %v1432
        %v1531 = vmul.f32 %v1530, %v1432
        %v1532 = vmul.f32 %v1531, %v1530
        %v1533 = vmul.f32 0.5, %v1532
        %v1534 = vsub.f32 1.5, %v1533
        %v1535 = vmul.f32 %v1530, %v1534
        %v1536 = vmul.f32 %v1432, %v1535
        %vm1537 = vcmp.eq.f32.partialorder %v1432, inf
        %v1538 = vsel %vm1537, %v1432, %v1536
        %vm1539 = vcmp.eq.f32.partialorder %v1432, 0.0
        %v1540 = vand.u32 %v1432, 2147483648
        %v1541 = vsel %vm1539, %v1540, %v1538
        %v1542 = vrsqrt.pop %v1435
        %v1543 = vmul.f32 %v1542, %v1435
        %v1544 = vmul.f32 %v1543, %v1542
        %v1545 = vmul.f32 0.5, %v1544
        %v1546 = vsub.f32 1.5, %v1545
        %v1547 = vmul.f32 %v1542, %v1546
        %v1548 = vmul.f32 %v1435, %v1547
        %vm1549 = vcmp.eq.f32.partialorder %v1435, inf
        %v1550 = vsel %vm1549, %v1435, %v1548
        %vm1551 = vcmp.eq.f32.partialorder %v1435, 0.0
        %v1552 = vand.u32 %v1435, 2147483648
        %v1553 = vsel %vm1551, %v1552, %v1550
        %v1554 = vrsqrt.pop %v1438
        %v1555 = vmul.f32 %v1554, %v1438
        %v1556 = vmul.f32 %v1555, %v1554
        %v1557 = vmul.f32 0.5, %v1556
        %v1558 = vsub.f32 1.5, %v1557
        %v1559 = vmul.f32 %v1554, %v1558
        %v1560 = vmul.f32 %v1438, %v1559
        %vm1561 = vcmp.eq.f32.partialorder %v1438, inf
        %v1562 = vsel %vm1561, %v1438, %v1560
        %vm1563 = vcmp.eq.f32.partialorder %v1438, 0.0
        %v1564 = vand.u32 %v1438, 2147483648
        %v1565 = vsel %vm1563, %v1564, %v1562
        %v1566 = vrsqrt.pop %v1441
        %v1567 = vmul.f32 %v1566, %v1441
        %v1568 = vmul.f32 %v1567, %v1566
        %v1569 = vmul.f32 0.5, %v1568
        %v1570 = vsub.f32 1.5, %v1569
        %v1571 = vmul.f32 %v1566, %v1570
        %v1572 = vmul.f32 %v1441, %v1571
        %vm1573 = vcmp.eq.f32.partialorder %v1441, inf
        %v1574 = vsel %vm1573, %v1441, %v1572
        %vm1575 = vcmp.eq.f32.partialorder %v1441, 0.0
        %v1576 = vand.u32 %v1441, 2147483648
        %v1577 = vsel %vm1575, %v1576, %v1574
        %v1578 = vrsqrt.pop %v1444
        %v1579 = vmul.f32 %v1578, %v1444
        %v1580 = vmul.f32 %v1579, %v1578
        %v1581 = vmul.f32 0.5, %v1580
        %v1582 = vsub.f32 1.5, %v1581
        %v1583 = vmul.f32 %v1578, %v1582
        %v1584 = vmul.f32 %v1444, %v1583
        %vm1585 = vcmp.eq.f32.partialorder %v1444, inf
        %v1586 = vsel %vm1585, %v1444, %v1584
        %vm1587 = vcmp.eq.f32.partialorder %v1444, 0.0
        %v1588 = vand.u32 %v1444, 2147483648
        %v1589 = vsel %vm1587, %v1588, %v1586
        %v1590 = vrsqrt.pop %v1447
        %v1591 = vmul.f32 %v1590, %v1447
        %v1592 = vmul.f32 %v1591, %v1590
        %v1593 = vmul.f32 0.5, %v1592
        %v1594 = vsub.f32 1.5, %v1593
        %v1595 = vmul.f32 %v1590, %v1594
        %v1596 = vmul.f32 %v1447, %v1595
        %vm1597 = vcmp.eq.f32.partialorder %v1447, inf
        %v1598 = vsel %vm1597, %v1447, %v1596
        %vm1599 = vcmp.eq.f32.partialorder %v1447, 0.0
        %v1600 = vand.u32 %v1447, 2147483648
        %v1601 = vsel %vm1599, %v1600, %v1598
        %v1602 = vrsqrt.pop %v1450
        %v1603 = vmul.f32 %v1602, %v1450
        %v1604 = vmul.f32 %v1603, %v1602
        %v1605 = vmul.f32 0.5, %v1604
        %v1606 = vsub.f32 1.5, %v1605
        %v1607 = vmul.f32 %v1602, %v1606
        %v1608 = vmul.f32 %v1450, %v1607
        %vm1609 = vcmp.eq.f32.partialorder %v1450, inf
        %v1610 = vsel %vm1609, %v1450, %v1608
        %vm1611 = vcmp.eq.f32.partialorder %v1450, 0.0
        %v1612 = vand.u32 %v1450, 2147483648
        %v1613 = vsel %vm1611, %v1612, %v1610
        %v1614 = vrsqrt.pop %v1453
        %v1615 = vmul.f32 %v1614, %v1453
        %v1616 = vmul.f32 %v1615, %v1614
        %v1617 = vmul.f32 0.5, %v1616
        %v1618 = vsub.f32 1.5, %v1617
        %v1619 = vmul.f32 %v1614, %v1618
        %v1620 = vmul.f32 %v1453, %v1619
        %vm1621 = vcmp.eq.f32.partialorder %v1453, inf
        %v1622 = vsel %vm1621, %v1453, %v1620
        %vm1623 = vcmp.eq.f32.partialorder %v1453, 0.0
        %v1624 = vand.u32 %v1453, 2147483648
        %v1625 = vsel %vm1623, %v1624, %v1622
        %v1626 = vrsqrt.pop %v1456
        %v1627 = vmul.f32 %v1626, %v1456
        %v1628 = vmul.f32 %v1627, %v1626
        %v1629 = vmul.f32 0.5, %v1628
        %v1630 = vsub.f32 1.5, %v1629
        %v1631 = vmul.f32 %v1626, %v1630
        %v1632 = vmul.f32 %v1456, %v1631
        %vm1633 = vcmp.eq.f32.partialorder %v1456, inf
        %v1634 = vsel %vm1633, %v1456, %v1632
        %vm1635 = vcmp.eq.f32.partialorder %v1456, 0.0
        %v1636 = vand.u32 %v1456, 2147483648
        %v1637 = vsel %vm1635, %v1636, %v1634
        %v1638 = vrsqrt.pop %v1459
        %v1639 = vmul.f32 %v1638, %v1459
        %v1640 = vmul.f32 %v1639, %v1638
        %v1641 = vmul.f32 0.5, %v1640
        %v1642 = vsub.f32 1.5, %v1641
        %v1643 = vmul.f32 %v1638, %v1642
        %v1644 = vmul.f32 %v1459, %v1643
        %vm1645 = vcmp.eq.f32.partialorder %v1459, inf
        %v1646 = vsel %vm1645, %v1459, %v1644
        %vm1647 = vcmp.eq.f32.partialorder %v1459, 0.0
        %v1648 = vand.u32 %v1459, 2147483648
        %v1649 = vsel %vm1647, %v1648, %v1646
        %v1650 = vrsqrt.pop %v1462
        %v1651 = vmul.f32 %v1650, %v1462
        %v1652 = vmul.f32 %v1651, %v1650
        %v1653 = vmul.f32 0.5, %v1652
        %v1654 = vsub.f32 1.5, %v1653
        %v1655 = vmul.f32 %v1650, %v1654
        %v1656 = vmul.f32 %v1462, %v1655
        %vm1657 = vcmp.eq.f32.partialorder %v1462, inf
        %v1658 = vsel %vm1657, %v1462, %v1656
        %vm1659 = vcmp.eq.f32.partialorder %v1462, 0.0
        %v1660 = vand.u32 %v1462, 2147483648
        %v1661 = vsel %vm1659, %v1660, %v1658
        %v1662 = vrsqrt.pop %v1465
        %v1663 = vmul.f32 %v1662, %v1465
        %v1664 = vmul.f32 %v1663, %v1662
        %v1665 = vmul.f32 0.5, %v1664
        %v1666 = vsub.f32 1.5, %v1665
        %v1667 = vmul.f32 %v1662, %v1666
        %v1668 = vmul.f32 %v1465, %v1667
        %vm1669 = vcmp.eq.f32.partialorder %v1465, inf
        %v1670 = vsel %vm1669, %v1465, %v1668
        %vm1671 = vcmp.eq.f32.partialorder %v1465, 0.0
        %v1672 = vand.u32 %v1465, 2147483648
        %v1673 = vsel %vm1671, %v1672, %v1670
        %v1674 = vadd.f32 %v1493, 1e-08
        %v1675 = vadd.f32 %v1505, 1e-08
        %v1676 = vadd.f32 %v1517, 1e-08
        %v1677 = vadd.f32 %v1529, 1e-08
        %v1678 = vadd.f32 %v1541, 1e-08
        %v1679 = vadd.f32 %v1553, 1e-08
        %v1680 = vadd.f32 %v1565, 1e-08
        %v1681 = vadd.f32 %v1577, 1e-08
        %v1682 = vadd.f32 %v1589, 1e-08
        %v1683 = vadd.f32 %v1601, 1e-08
        %v1684 = vadd.f32 %v1613, 1e-08
        %v1685 = vadd.f32 %v1625, 1e-08
        %v1686 = vadd.f32 %v1637, 1e-08
        %v1687 = vadd.f32 %v1649, 1e-08
        %v1688 = vadd.f32 %v1661, 1e-08
        %v1689 = vadd.f32 %v1673, 1e-08
        %v1690 = vrcp.pop %v1674
        %v1691 = vmul.f32 %v1674, %v1690
        %v1692 = vsub.f32 1.0, %v1691
        %v1693 = vmul.f32 %v1690, %v1692
        %v1694 = vadd.f32 %v1690, %v1693
        %vm1695 = vweird.f32 %v1674
        %vm1696 = vweird.f32 %v1690
        %vm1697 = vmor %vm1695, %vm1696
        %v1698 = vsel %vm1697, %v1690, %v1694
        %v1699 = vand.u32 2147483647, %v1674
        %vm1700 = vcmp.eq.f32.partialorder %v1699, 8.507059e+37
        %v1701 = vand.u32 %v1674, 2147483648
        %v1702 = vor.u32 1.1754944e-38, %v1701
        %v1703 = vsel %vm1700, %v1702, %v1698
        %v1704 = vmul.f32 1.0, %v1703
        %v1705 = vrcp.pop %v1675
        %v1706 = vmul.f32 %v1675, %v1705
        %v1707 = vsub.f32 1.0, %v1706
        %v1708 = vmul.f32 %v1705, %v1707
        %v1709 = vadd.f32 %v1705, %v1708
        %vm1710 = vweird.f32 %v1675
        %vm1711 = vweird.f32 %v1705
        %vm1712 = vmor %vm1710, %vm1711
        %v1713 = vsel %vm1712, %v1705, %v1709
        %v1714 = vand.u32 2147483647, %v1675
        %vm1715 = vcmp.eq.f32.partialorder %v1714, 8.507059e+37
        %v1716 = vand.u32 %v1675, 2147483648
        %v1717 = vor.u32 1.1754944e-38, %v1716
        %v1718 = vsel %vm1715, %v1717, %v1713
        %v1719 = vmul.f32 1.0, %v1718
        %v1720 = vrcp.pop %v1676
        %v1721 = vmul.f32 %v1676, %v1720
        %v1722 = vsub.f32 1.0, %v1721
        %v1723 = vmul.f32 %v1720, %v1722
        %v1724 = vadd.f32 %v1720, %v1723
        %vm1725 = vweird.f32 %v1676
        %vm1726 = vweird.f32 %v1720
        %vm1727 = vmor %vm1725, %vm1726
        %v1728 = vsel %vm1727, %v1720, %v1724
        %v1729 = vand.u32 2147483647, %v1676
        %vm1730 = vcmp.eq.f32.partialorder %v1729, 8.507059e+37
        %v1731 = vand.u32 %v1676, 2147483648
        %v1732 = vor.u32 1.1754944e-38, %v1731
        %v1733 = vsel %vm1730, %v1732, %v1728
        %v1734 = vmul.f32 1.0, %v1733
        %v1735 = vrcp.pop %v1677
        %v1736 = vmul.f32 %v1677, %v1735
        %v1737 = vsub.f32 1.0, %v1736
        %v1738 = vmul.f32 %v1735, %v1737
        %v1739 = vadd.f32 %v1735, %v1738
        %vm1740 = vweird.f32 %v1677
        %vm1741 = vweird.f32 %v1735
        %vm1742 = vmor %vm1740, %vm1741
        %v1743 = vsel %vm1742, %v1735, %v1739
        %v1744 = vand.u32 2147483647, %v1677
        %vm1745 = vcmp.eq.f32.partialorder %v1744, 8.507059e+37
        %v1746 = vand.u32 %v1677, 2147483648
        %v1747 = vor.u32 1.1754944e-38, %v1746
        %v1748 = vsel %vm1745, %v1747, %v1743
        %v1749 = vmul.f32 1.0, %v1748
        %v1750 = vrcp.pop %v1678
        %v1751 = vmul.f32 %v1678, %v1750
        %v1752 = vsub.f32 1.0, %v1751
        %v1753 = vmul.f32 %v1750, %v1752
        %v1754 = vadd.f32 %v1750, %v1753
        %vm1755 = vweird.f32 %v1678
        %vm1756 = vweird.f32 %v1750
        %vm1757 = vmor %vm1755, %vm1756
        %v1758 = vsel %vm1757, %v1750, %v1754
        %v1759 = vand.u32 2147483647, %v1678
        %vm1760 = vcmp.eq.f32.partialorder %v1759, 8.507059e+37
        %v1761 = vand.u32 %v1678, 2147483648
        %v1762 = vor.u32 1.1754944e-38, %v1761
        %v1763 = vsel %vm1760, %v1762, %v1758
        %v1764 = vmul.f32 1.0, %v1763
        %v1765 = vrcp.pop %v1679
        %v1766 = vmul.f32 %v1679, %v1765
        %v1767 = vsub.f32 1.0, %v1766
        %v1768 = vmul.f32 %v1765, %v1767
        %v1769 = vadd.f32 %v1765, %v1768
        %vm1770 = vweird.f32 %v1679
        %vm1771 = vweird.f32 %v1765
        %vm1772 = vmor %vm1770, %vm1771
        %v1773 = vsel %vm1772, %v1765, %v1769
        %v1774 = vand.u32 2147483647, %v1679
        %vm1775 = vcmp.eq.f32.partialorder %v1774, 8.507059e+37
        %v1776 = vand.u32 %v1679, 2147483648
        %v1777 = vor.u32 1.1754944e-38, %v1776
        %v1778 = vsel %vm1775, %v1777, %v1773
        %v1779 = vmul.f32 1.0, %v1778
        %v1780 = vrcp.pop %v1680
        %v1781 = vmul.f32 %v1680, %v1780
        %v1782 = vsub.f32 1.0, %v1781
        %v1783 = vmul.f32 %v1780, %v1782
        %v1784 = vadd.f32 %v1780, %v1783
        %vm1785 = vweird.f32 %v1680
        %vm1786 = vweird.f32 %v1780
        %vm1787 = vmor %vm1785, %vm1786
        %v1788 = vsel %vm1787, %v1780, %v1784
        %v1789 = vand.u32 2147483647, %v1680
        %vm1790 = vcmp.eq.f32.partialorder %v1789, 8.507059e+37
        %v1791 = vand.u32 %v1680, 2147483648
        %v1792 = vor.u32 1.1754944e-38, %v1791
        %v1793 = vsel %vm1790, %v1792, %v1788
        %v1794 = vmul.f32 1.0, %v1793
        %v1795 = vrcp.pop %v1681
        %v1796 = vmul.f32 %v1681, %v1795
        %v1797 = vsub.f32 1.0, %v1796
        %v1798 = vmul.f32 %v1795, %v1797
        %v1799 = vadd.f32 %v1795, %v1798
        %vm1800 = vweird.f32 %v1681
        %vm1801 = vweird.f32 %v1795
        %vm1802 = vmor %vm1800, %vm1801
        %v1803 = vsel %vm1802, %v1795, %v1799
        %v1804 = vand.u32 2147483647, %v1681
        %vm1805 = vcmp.eq.f32.partialorder %v1804, 8.507059e+37
        %v1806 = vand.u32 %v1681, 2147483648
        %v1807 = vor.u32 1.1754944e-38, %v1806
        %v1808 = vsel %vm1805, %v1807, %v1803
        %v1809 = vmul.f32 1.0, %v1808
        %v1810 = vrcp.pop %v1682
        %v1811 = vmul.f32 %v1682, %v1810
        %v1812 = vsub.f32 1.0, %v1811
        %v1813 = vmul.f32 %v1810, %v1812
        %v1814 = vadd.f32 %v1810, %v1813
        %vm1815 = vweird.f32 %v1682
        %vm1816 = vweird.f32 %v1810
        %vm1817 = vmor %vm1815, %vm1816
        %v1818 = vsel %vm1817, %v1810, %v1814
        %v1819 = vand.u32 2147483647, %v1682
        %vm1820 = vcmp.eq.f32.partialorder %v1819, 8.507059e+37
        %v1821 = vand.u32 %v1682, 2147483648
        %v1822 = vor.u32 1.1754944e-38, %v1821
        %v1823 = vsel %vm1820, %v1822, %v1818
        %v1824 = vmul.f32 1.0, %v1823
        %v1825 = vrcp.pop %v1683
        %v1826 = vmul.f32 %v1683, %v1825
        %v1827 = vsub.f32 1.0, %v1826
        %v1828 = vmul.f32 %v1825, %v1827
        %v1829 = vadd.f32 %v1825, %v1828
        %vm1830 = vweird.f32 %v1683
        %vm1831 = vweird.f32 %v1825
        %vm1832 = vmor %vm1830, %vm1831
        %v1833 = vsel %vm1832, %v1825, %v1829
        %v1834 = vand.u32 2147483647, %v1683
        %vm1835 = vcmp.eq.f32.partialorder %v1834, 8.507059e+37
        %v1836 = vand.u32 %v1683, 2147483648
        %v1837 = vor.u32 1.1754944e-38, %v1836
        %v1838 = vsel %vm1835, %v1837, %v1833
        %v1839 = vmul.f32 1.0, %v1838
        %v1840 = vrcp.pop %v1684
        %v1841 = vmul.f32 %v1684, %v1840
        %v1842 = vsub.f32 1.0, %v1841
        %v1843 = vmul.f32 %v1840, %v1842
        %v1844 = vadd.f32 %v1840, %v1843
        %vm1845 = vweird.f32 %v1684
        %vm1846 = vweird.f32 %v1840
        %vm1847 = vmor %vm1845, %vm1846
        %v1848 = vsel %vm1847, %v1840, %v1844
        %v1849 = vand.u32 2147483647, %v1684
        %vm1850 = vcmp.eq.f32.partialorder %v1849, 8.507059e+37
        %v1851 = vand.u32 %v1684, 2147483648
        %v1852 = vor.u32 1.1754944e-38, %v1851
        %v1853 = vsel %vm1850, %v1852, %v1848
        %v1854 = vmul.f32 1.0, %v1853
        %v1855 = vrcp.pop %v1685
        %v1856 = vmul.f32 %v1685, %v1855
        %v1857 = vsub.f32 1.0, %v1856
        %v1858 = vmul.f32 %v1855, %v1857
        %v1859 = vadd.f32 %v1855, %v1858
        %vm1860 = vweird.f32 %v1685
        %vm1861 = vweird.f32 %v1855
        %vm1862 = vmor %vm1860, %vm1861
        %v1863 = vsel %vm1862, %v1855, %v1859
        %v1864 = vand.u32 2147483647, %v1685
        %vm1865 = vcmp.eq.f32.partialorder %v1864, 8.507059e+37
        %v1866 = vand.u32 %v1685, 2147483648
        %v1867 = vor.u32 1.1754944e-38, %v1866
        %v1868 = vsel %vm1865, %v1867, %v1863
        %v1869 = vmul.f32 1.0, %v1868
        %v1870 = vrcp.pop %v1686
        %v1871 = vmul.f32 %v1686, %v1870
        %v1872 = vsub.f32 1.0, %v1871
        %v1873 = vmul.f32 %v1870, %v1872
        %v1874 = vadd.f32 %v1870, %v1873
        %vm1875 = vweird.f32 %v1686
        %vm1876 = vweird.f32 %v1870
        %vm1877 = vmor %vm1875, %vm1876
        %v1878 = vsel %vm1877, %v1870, %v1874
        %v1879 = vand.u32 2147483647, %v1686
        %vm1880 = vcmp.eq.f32.partialorder %v1879, 8.507059e+37
        %v1881 = vand.u32 %v1686, 2147483648
        %v1882 = vor.u32 1.1754944e-38, %v1881
        %v1883 = vsel %vm1880, %v1882, %v1878
        %v1884 = vmul.f32 1.0, %v1883
        %v1885 = vrcp.pop %v1687
        %v1886 = vmul.f32 %v1687, %v1885
        %v1887 = vsub.f32 1.0, %v1886
        %v1888 = vmul.f32 %v1885, %v1887
        %v1889 = vadd.f32 %v1885, %v1888
        %vm1890 = vweird.f32 %v1687
        %vm1891 = vweird.f32 %v1885
        %vm1892 = vmor %vm1890, %vm1891
        %v1893 = vsel %vm1892, %v1885, %v1889
        %v1894 = vand.u32 2147483647, %v1687
        %vm1895 = vcmp.eq.f32.partialorder %v1894, 8.507059e+37
        %v1896 = vand.u32 %v1687, 2147483648
        %v1897 = vor.u32 1.1754944e-38, %v1896
        %v1898 = vsel %vm1895, %v1897, %v1893
        %v1899 = vmul.f32 1.0, %v1898
        %v1900 = vrcp.pop %v1688
        %v1901 = vmul.f32 %v1688, %v1900
        %v1902 = vsub.f32 1.0, %v1901
        %v1903 = vmul.f32 %v1900, %v1902
        %v1904 = vadd.f32 %v1900, %v1903
        %vm1905 = vweird.f32 %v1688
        %vm1906 = vweird.f32 %v1900
        %vm1907 = vmor %vm1905, %vm1906
        %v1908 = vsel %vm1907, %v1900, %v1904
        %v1909 = vand.u32 2147483647, %v1688
        %vm1910 = vcmp.eq.f32.partialorder %v1909, 8.507059e+37
        %v1911 = vand.u32 %v1688, 2147483648
        %v1912 = vor.u32 1.1754944e-38, %v1911
        %v1913 = vsel %vm1910, %v1912, %v1908
        %v1914 = vmul.f32 1.0, %v1913
        %v1915 = vrcp.pop %v1689
        %v1916 = vmul.f32 %v1689, %v1915
        %v1917 = vsub.f32 1.0, %v1916
        %v1918 = vmul.f32 %v1915, %v1917
        %v1919 = vadd.f32 %v1915, %v1918
        %vm1920 = vweird.f32 %v1689
        %vm1921 = vweird.f32 %v1915
        %vm1922 = vmor %vm1920, %vm1921
        %v1923 = vsel %vm1922, %v1915, %v1919
        %v1924 = vand.u32 2147483647, %v1689
        %vm1925 = vcmp.eq.f32.partialorder %v1924, 8.507059e+37
        %v1926 = vand.u32 %v1689, 2147483648
        %v1927 = vor.u32 1.1754944e-38, %v1926
        %v1928 = vsel %vm1925, %v1927, %v1923
        %v1929 = vmul.f32 1.0, %v1928
        %v1930 = vsel %vm1466, %v1704, 0.0
        %v1931 = vsel %vm1467, %v1719, 0.0
        %v1932 = vsel %vm1468, %v1734, 0.0
        %v1933 = vsel %vm1469, %v1749, 0.0
        %v1934 = vsel %vm1470, %v1764, 0.0
        %v1935 = vsel %vm1471, %v1779, 0.0
        %v1936 = vsel %vm1472, %v1794, 0.0
        %v1937 = vsel %vm1473, %v1809, 0.0
        %v1938 = vsel %vm1474, %v1824, 0.0
        %v1939 = vsel %vm1475, %v1839, 0.0
        %v1940 = vsel %vm1476, %v1854, 0.0
        %v1941 = vsel %vm1477, %v1869, 0.0
        %v1942 = vsel %vm1478, %v1884, 0.0
        %v1943 = vsel %vm1479, %v1899, 0.0
        %v1944 = vsel %vm1480, %v1914, 0.0
        %v1945 = vsel %vm1481, %v1929, 0.0
        %v1946 = vadd.f32 %v1370, %v1930
        %v1947 = vadd.f32 %v1371, %v1931
        %v1948 = vadd.f32 %v1372, %v1932
        %v1949 = vadd.f32 %v1373, %v1933
        %v1950 = vadd.f32 %v1374, %v1934
        %v1951 = vadd.f32 %v1375, %v1935
        %v1952 = vadd.f32 %v1376, %v1936
        %v1953 = vadd.f32 %v1377, %v1937
        %v1954 = vadd.f32 %v1378, %v1938
        %v1955 = vadd.f32 %v1379, %v1939
        %v1956 = vadd.f32 %v1380, %v1940
        %v1957 = vadd.f32 %v1381, %v1941
        %v1958 = vadd.f32 %v1382, %v1942
        %v1959 = vadd.f32 %v1383, %v1943
        %v1960 = vadd.f32 %v1384, %v1944
        %v1961 = vadd.f32 %v1385, %v1945
        %v1962 = vadd.f32 %v1386, %v1704
        %v1963 = vadd.f32 %v1387, %v1719
        %v1964 = vadd.f32 %v1388, %v1734
        %v1965 = vadd.f32 %v1389, %v1749
        %v1966 = vadd.f32 %v1390, %v1764
        %v1967 = vadd.f32 %v1391, %v1779
        %v1968 = vadd.f32 %v1392, %v1794
        %v1969 = vadd.f32 %v1393, %v1809
        %v1970 = vadd.f32 %v1394, %v1824
        %v1971 = vadd.f32 %v1395, %v1839
        %v1972 = vadd.f32 %v1396, %v1854
        %v1973 = vadd.f32 %v1397, %v1869
        %v1974 = vadd.f32 %v1398, %v1884
        %v1975 = vadd.f32 %v1399, %v1899
        %v1976 = vadd.f32 %v1400, %v1914
        %v1977 = vadd.f32 %v1401, %v1929
        %v1978 = vsel %vm1466, inf, %v1402
        %v1979 = vsel %vm1467, inf, %v1403
        %v1980 = vsel %vm1468, inf, %v1404
        %v1981 = vsel %vm1469, inf, %v1405
        %v1982 = vsel %vm1470, inf, %v1406
        %v1983 = vsel %vm1471, inf, %v1407
        %v1984 = vsel %vm1472, inf, %v1408
        %v1985 = vsel %vm1473, inf, %v1409
        %v1986 = vsel %vm1474, inf, %v1410
        %v1987 = vsel %vm1475, inf, %v1411
        %v1988 = vsel %vm1476, inf, %v1412
        %v1989 = vsel %vm1477, inf, %v1413
        %v1990 = vsel %vm1478, inf, %v1414
        %v1991 = vsel %vm1479, inf, %v1415
        %v1992 = vsel %vm1480, inf, %v1416
        %v1993 = vsel %vm1481, inf, %v1417
        %v1994 = vsel %vm383, %v1978, inf
        %1995 = vmin.xlane.f32.xlu0 %v1994
        %v1996 = vpop.xlane.xlu0 %1995
        %v1997 = vsel %vm383, %v1979, inf
        %1998 = vmin.xlane.f32.xlu0 %v1997
        %v1999 = vpop.xlane.xlu0 %1998
        %v2000 = vsel %vm383, %v1980, inf
        %2001 = vmin.xlane.f32.xlu0 %v2000
        %v2002 = vpop.xlane.xlu0 %2001
        %v2003 = vsel %vm383, %v1981, inf
        %2004 = vmin.xlane.f32.xlu0 %v2003
        %v2005 = vpop.xlane.xlu0 %2004
        %v2006 = vsel %vm383, %v1982, inf
        %2007 = vmin.xlane.f32.xlu0 %v2006
        %v2008 = vpop.xlane.xlu0 %2007
        %v2009 = vsel %vm383, %v1983, inf
        %2010 = vmin.xlane.f32.xlu0 %v2009
        %v2011 = vpop.xlane.xlu0 %2010
        %v2012 = vsel %vm383, %v1984, inf
        %2013 = vmin.xlane.f32.xlu0 %v2012
        %v2014 = vpop.xlane.xlu0 %2013
        %v2015 = vsel %vm383, %v1985, inf
        %2016 = vmin.xlane.f32.xlu0 %v2015
        %v2017 = vpop.xlane.xlu0 %2016
        %v2018 = vsel %vm383, %v1986, inf
        %2019 = vmin.xlane.f32.xlu0 %v2018
        %v2020 = vpop.xlane.xlu0 %2019
        %v2021 = vsel %vm383, %v1987, inf
        %2022 = vmin.xlane.f32.xlu0 %v2021
        %v2023 = vpop.xlane.xlu0 %2022
        %v2024 = vsel %vm383, %v1988, inf
        %2025 = vmin.xlane.f32.xlu0 %v2024
        %v2026 = vpop.xlane.xlu0 %2025
        %v2027 = vsel %vm383, %v1989, inf
        %2028 = vmin.xlane.f32.xlu0 %v2027
        %v2029 = vpop.xlane.xlu0 %2028
        %v2030 = vsel %vm383, %v1990, inf
        %2031 = vmin.xlane.f32.xlu0 %v2030
        %v2032 = vpop.xlane.xlu0 %2031
        %v2033 = vsel %vm383, %v1991, inf
        %2034 = vmin.xlane.f32.xlu0 %v2033
        %v2035 = vpop.xlane.xlu0 %2034
        %v2036 = vsel %vm383, %v1992, inf
        %2037 = vmin.xlane.f32.xlu0 %v2036
        %v2038 = vpop.xlane.xlu0 %2037
        %v2039 = vsel %vm383, %v1993, inf
        %2040 = vmin.xlane.f32.xlu0 %v2039
        %v2041 = vpop.xlane.xlu0 %2040
        %vm2042 = vcmp.eq.f32.partialorder %v1978, %v1996
        %vm2043 = vcmp.eq.f32.partialorder %v1979, %v1999
        %vm2044 = vcmp.eq.f32.partialorder %v1980, %v2002
        %vm2045 = vcmp.eq.f32.partialorder %v1981, %v2005
        %vm2046 = vcmp.eq.f32.partialorder %v1982, %v2008
        %vm2047 = vcmp.eq.f32.partialorder %v1983, %v2011
        %vm2048 = vcmp.eq.f32.partialorder %v1984, %v2014
        %vm2049 = vcmp.eq.f32.partialorder %v1985, %v2017
        %vm2050 = vcmp.eq.f32.partialorder %v1986, %v2020
        %vm2051 = vcmp.eq.f32.partialorder %v1987, %v2023
        %vm2052 = vcmp.eq.f32.partialorder %v1988, %v2026
        %vm2053 = vcmp.eq.f32.partialorder %v1989, %v2029
        %vm2054 = vcmp.eq.f32.partialorder %v1990, %v2032
        %vm2055 = vcmp.eq.f32.partialorder %v1991, %v2035
        %vm2056 = vcmp.eq.f32.partialorder %v1992, %v2038
        %vm2057 = vcmp.eq.f32.partialorder %v1993, %v2041
        %v2058 = vrsqrt.pop %v1996
        %v2059 = vmul.f32 %v2058, %v1996
        %v2060 = vmul.f32 %v2059, %v2058
        %v2061 = vmul.f32 0.5, %v2060
        %v2062 = vsub.f32 1.5, %v2061
        %v2063 = vmul.f32 %v2058, %v2062
        %v2064 = vmul.f32 %v1996, %v2063
        %vm2065 = vcmp.eq.f32.partialorder %v1996, inf
        %v2066 = vsel %vm2065, %v1996, %v2064
        %vm2067 = vcmp.eq.f32.partialorder %v1996, 0.0
        %v2068 = vand.u32 %v1996, 2147483648
        %v2069 = vsel %vm2067, %v2068, %v2066
        %v2070 = vrsqrt.pop %v1999
        %v2071 = vmul.f32 %v2070, %v1999
        %v2072 = vmul.f32 %v2071, %v2070
        %v2073 = vmul.f32 0.5, %v2072
        %v2074 = vsub.f32 1.5, %v2073
        %v2075 = vmul.f32 %v2070, %v2074
        %v2076 = vmul.f32 %v1999, %v2075
        %vm2077 = vcmp.eq.f32.partialorder %v1999, inf
        %v2078 = vsel %vm2077, %v1999, %v2076
        %vm2079 = vcmp.eq.f32.partialorder %v1999, 0.0
        %v2080 = vand.u32 %v1999, 2147483648
        %v2081 = vsel %vm2079, %v2080, %v2078
        %v2082 = vrsqrt.pop %v2002
        %v2083 = vmul.f32 %v2082, %v2002
        %v2084 = vmul.f32 %v2083, %v2082
        %v2085 = vmul.f32 0.5, %v2084
        %v2086 = vsub.f32 1.5, %v2085
        %v2087 = vmul.f32 %v2082, %v2086
        %v2088 = vmul.f32 %v2002, %v2087
        %vm2089 = vcmp.eq.f32.partialorder %v2002, inf
        %v2090 = vsel %vm2089, %v2002, %v2088
        %vm2091 = vcmp.eq.f32.partialorder %v2002, 0.0
        %v2092 = vand.u32 %v2002, 2147483648
        %v2093 = vsel %vm2091, %v2092, %v2090
        %v2094 = vrsqrt.pop %v2005
        %v2095 = vmul.f32 %v2094, %v2005
        %v2096 = vmul.f32 %v2095, %v2094
        %v2097 = vmul.f32 0.5, %v2096
        %v2098 = vsub.f32 1.5, %v2097
        %v2099 = vmul.f32 %v2094, %v2098
        %v2100 = vmul.f32 %v2005, %v2099
        %vm2101 = vcmp.eq.f32.partialorder %v2005, inf
        %v2102 = vsel %vm2101, %v2005, %v2100
        %vm2103 = vcmp.eq.f32.partialorder %v2005, 0.0
        %v2104 = vand.u32 %v2005, 2147483648
        %v2105 = vsel %vm2103, %v2104, %v2102
        %v2106 = vrsqrt.pop %v2008
        %v2107 = vmul.f32 %v2106, %v2008
        %v2108 = vmul.f32 %v2107, %v2106
        %v2109 = vmul.f32 0.5, %v2108
        %v2110 = vsub.f32 1.5, %v2109
        %v2111 = vmul.f32 %v2106, %v2110
        %v2112 = vmul.f32 %v2008, %v2111
        %vm2113 = vcmp.eq.f32.partialorder %v2008, inf
        %v2114 = vsel %vm2113, %v2008, %v2112
        %vm2115 = vcmp.eq.f32.partialorder %v2008, 0.0
        %v2116 = vand.u32 %v2008, 2147483648
        %v2117 = vsel %vm2115, %v2116, %v2114
        %v2118 = vrsqrt.pop %v2011
        %v2119 = vmul.f32 %v2118, %v2011
        %v2120 = vmul.f32 %v2119, %v2118
        %v2121 = vmul.f32 0.5, %v2120
        %v2122 = vsub.f32 1.5, %v2121
        %v2123 = vmul.f32 %v2118, %v2122
        %v2124 = vmul.f32 %v2011, %v2123
        %vm2125 = vcmp.eq.f32.partialorder %v2011, inf
        %v2126 = vsel %vm2125, %v2011, %v2124
        %vm2127 = vcmp.eq.f32.partialorder %v2011, 0.0
        %v2128 = vand.u32 %v2011, 2147483648
        %v2129 = vsel %vm2127, %v2128, %v2126
        %v2130 = vrsqrt.pop %v2014
        %v2131 = vmul.f32 %v2130, %v2014
        %v2132 = vmul.f32 %v2131, %v2130
        %v2133 = vmul.f32 0.5, %v2132
        %v2134 = vsub.f32 1.5, %v2133
        %v2135 = vmul.f32 %v2130, %v2134
        %v2136 = vmul.f32 %v2014, %v2135
        %vm2137 = vcmp.eq.f32.partialorder %v2014, inf
        %v2138 = vsel %vm2137, %v2014, %v2136
        %vm2139 = vcmp.eq.f32.partialorder %v2014, 0.0
        %v2140 = vand.u32 %v2014, 2147483648
        %v2141 = vsel %vm2139, %v2140, %v2138
        %v2142 = vrsqrt.pop %v2017
        %v2143 = vmul.f32 %v2142, %v2017
        %v2144 = vmul.f32 %v2143, %v2142
        %v2145 = vmul.f32 0.5, %v2144
        %v2146 = vsub.f32 1.5, %v2145
        %v2147 = vmul.f32 %v2142, %v2146
        %v2148 = vmul.f32 %v2017, %v2147
        %vm2149 = vcmp.eq.f32.partialorder %v2017, inf
        %v2150 = vsel %vm2149, %v2017, %v2148
        %vm2151 = vcmp.eq.f32.partialorder %v2017, 0.0
        %v2152 = vand.u32 %v2017, 2147483648
        %v2153 = vsel %vm2151, %v2152, %v2150
        %v2154 = vrsqrt.pop %v2020
        %v2155 = vmul.f32 %v2154, %v2020
        %v2156 = vmul.f32 %v2155, %v2154
        %v2157 = vmul.f32 0.5, %v2156
        %v2158 = vsub.f32 1.5, %v2157
        %v2159 = vmul.f32 %v2154, %v2158
        %v2160 = vmul.f32 %v2020, %v2159
        %vm2161 = vcmp.eq.f32.partialorder %v2020, inf
        %v2162 = vsel %vm2161, %v2020, %v2160
        %vm2163 = vcmp.eq.f32.partialorder %v2020, 0.0
        %v2164 = vand.u32 %v2020, 2147483648
        %v2165 = vsel %vm2163, %v2164, %v2162
        %v2166 = vrsqrt.pop %v2023
        %v2167 = vmul.f32 %v2166, %v2023
        %v2168 = vmul.f32 %v2167, %v2166
        %v2169 = vmul.f32 0.5, %v2168
        %v2170 = vsub.f32 1.5, %v2169
        %v2171 = vmul.f32 %v2166, %v2170
        %v2172 = vmul.f32 %v2023, %v2171
        %vm2173 = vcmp.eq.f32.partialorder %v2023, inf
        %v2174 = vsel %vm2173, %v2023, %v2172
        %vm2175 = vcmp.eq.f32.partialorder %v2023, 0.0
        %v2176 = vand.u32 %v2023, 2147483648
        %v2177 = vsel %vm2175, %v2176, %v2174
        %v2178 = vrsqrt.pop %v2026
        %v2179 = vmul.f32 %v2178, %v2026
        %v2180 = vmul.f32 %v2179, %v2178
        %v2181 = vmul.f32 0.5, %v2180
        %v2182 = vsub.f32 1.5, %v2181
        %v2183 = vmul.f32 %v2178, %v2182
        %v2184 = vmul.f32 %v2026, %v2183
        %vm2185 = vcmp.eq.f32.partialorder %v2026, inf
        %v2186 = vsel %vm2185, %v2026, %v2184
        %vm2187 = vcmp.eq.f32.partialorder %v2026, 0.0
        %v2188 = vand.u32 %v2026, 2147483648
        %v2189 = vsel %vm2187, %v2188, %v2186
        %v2190 = vrsqrt.pop %v2029
        %v2191 = vmul.f32 %v2190, %v2029
        %v2192 = vmul.f32 %v2191, %v2190
        %v2193 = vmul.f32 0.5, %v2192
        %v2194 = vsub.f32 1.5, %v2193
        %v2195 = vmul.f32 %v2190, %v2194
        %v2196 = vmul.f32 %v2029, %v2195
        %vm2197 = vcmp.eq.f32.partialorder %v2029, inf
        %v2198 = vsel %vm2197, %v2029, %v2196
        %vm2199 = vcmp.eq.f32.partialorder %v2029, 0.0
        %v2200 = vand.u32 %v2029, 2147483648
        %v2201 = vsel %vm2199, %v2200, %v2198
        %v2202 = vrsqrt.pop %v2032
        %v2203 = vmul.f32 %v2202, %v2032
        %v2204 = vmul.f32 %v2203, %v2202
        %v2205 = vmul.f32 0.5, %v2204
        %v2206 = vsub.f32 1.5, %v2205
        %v2207 = vmul.f32 %v2202, %v2206
        %v2208 = vmul.f32 %v2032, %v2207
        %vm2209 = vcmp.eq.f32.partialorder %v2032, inf
        %v2210 = vsel %vm2209, %v2032, %v2208
        %vm2211 = vcmp.eq.f32.partialorder %v2032, 0.0
        %v2212 = vand.u32 %v2032, 2147483648
        %v2213 = vsel %vm2211, %v2212, %v2210
        %v2214 = vrsqrt.pop %v2035
        %v2215 = vmul.f32 %v2214, %v2035
        %v2216 = vmul.f32 %v2215, %v2214
        %v2217 = vmul.f32 0.5, %v2216
        %v2218 = vsub.f32 1.5, %v2217
        %v2219 = vmul.f32 %v2214, %v2218
        %v2220 = vmul.f32 %v2035, %v2219
        %vm2221 = vcmp.eq.f32.partialorder %v2035, inf
        %v2222 = vsel %vm2221, %v2035, %v2220
        %vm2223 = vcmp.eq.f32.partialorder %v2035, 0.0
        %v2224 = vand.u32 %v2035, 2147483648
        %v2225 = vsel %vm2223, %v2224, %v2222
        %v2226 = vrsqrt.pop %v2038
        %v2227 = vmul.f32 %v2226, %v2038
        %v2228 = vmul.f32 %v2227, %v2226
        %v2229 = vmul.f32 0.5, %v2228
        %v2230 = vsub.f32 1.5, %v2229
        %v2231 = vmul.f32 %v2226, %v2230
        %v2232 = vmul.f32 %v2038, %v2231
        %vm2233 = vcmp.eq.f32.partialorder %v2038, inf
        %v2234 = vsel %vm2233, %v2038, %v2232
        %vm2235 = vcmp.eq.f32.partialorder %v2038, 0.0
        %v2236 = vand.u32 %v2038, 2147483648
        %v2237 = vsel %vm2235, %v2236, %v2234
        %v2238 = vrsqrt.pop %v2041
        %v2239 = vmul.f32 %v2238, %v2041
        %v2240 = vmul.f32 %v2239, %v2238
        %v2241 = vmul.f32 0.5, %v2240
        %v2242 = vsub.f32 1.5, %v2241
        %v2243 = vmul.f32 %v2238, %v2242
        %v2244 = vmul.f32 %v2041, %v2243
        %vm2245 = vcmp.eq.f32.partialorder %v2041, inf
        %v2246 = vsel %vm2245, %v2041, %v2244
        %vm2247 = vcmp.eq.f32.partialorder %v2041, 0.0
        %v2248 = vand.u32 %v2041, 2147483648
        %v2249 = vsel %vm2247, %v2248, %v2246
        %v2250 = vadd.f32 %v2069, 1e-08
        %v2251 = vadd.f32 %v2081, 1e-08
        %v2252 = vadd.f32 %v2093, 1e-08
        %v2253 = vadd.f32 %v2105, 1e-08
        %v2254 = vadd.f32 %v2117, 1e-08
        %v2255 = vadd.f32 %v2129, 1e-08
        %v2256 = vadd.f32 %v2141, 1e-08
        %v2257 = vadd.f32 %v2153, 1e-08
        %v2258 = vadd.f32 %v2165, 1e-08
        %v2259 = vadd.f32 %v2177, 1e-08
        %v2260 = vadd.f32 %v2189, 1e-08
        %v2261 = vadd.f32 %v2201, 1e-08
        %v2262 = vadd.f32 %v2213, 1e-08
        %v2263 = vadd.f32 %v2225, 1e-08
        %v2264 = vadd.f32 %v2237, 1e-08
        %v2265 = vadd.f32 %v2249, 1e-08
        %v2266 = vrcp.pop %v2250
        %v2267 = vmul.f32 %v2250, %v2266
        %v2268 = vsub.f32 1.0, %v2267
        %v2269 = vmul.f32 %v2266, %v2268
        %v2270 = vadd.f32 %v2266, %v2269
        %vm2271 = vweird.f32 %v2250
        %vm2272 = vweird.f32 %v2266
        %vm2273 = vmor %vm2271, %vm2272
        %v2274 = vsel %vm2273, %v2266, %v2270
        %v2275 = vand.u32 2147483647, %v2250
        %vm2276 = vcmp.eq.f32.partialorder %v2275, 8.507059e+37
        %v2277 = vand.u32 %v2250, 2147483648
        %v2278 = vor.u32 1.1754944e-38, %v2277
        %v2279 = vsel %vm2276, %v2278, %v2274
        %v2280 = vmul.f32 1.0, %v2279
        %v2281 = vrcp.pop %v2251
        %v2282 = vmul.f32 %v2251, %v2281
        %v2283 = vsub.f32 1.0, %v2282
        %v2284 = vmul.f32 %v2281, %v2283
        %v2285 = vadd.f32 %v2281, %v2284
        %vm2286 = vweird.f32 %v2251
        %vm2287 = vweird.f32 %v2281
        %vm2288 = vmor %vm2286, %vm2287
        %v2289 = vsel %vm2288, %v2281, %v2285
        %v2290 = vand.u32 2147483647, %v2251
        %vm2291 = vcmp.eq.f32.partialorder %v2290, 8.507059e+37
        %v2292 = vand.u32 %v2251, 2147483648
        %v2293 = vor.u32 1.1754944e-38, %v2292
        %v2294 = vsel %vm2291, %v2293, %v2289
        %v2295 = vmul.f32 1.0, %v2294
        %v2296 = vrcp.pop %v2252
        %v2297 = vmul.f32 %v2252, %v2296
        %v2298 = vsub.f32 1.0, %v2297
        %v2299 = vmul.f32 %v2296, %v2298
        %v2300 = vadd.f32 %v2296, %v2299
        %vm2301 = vweird.f32 %v2252
        %vm2302 = vweird.f32 %v2296
        %vm2303 = vmor %vm2301, %vm2302
        %v2304 = vsel %vm2303, %v2296, %v2300
        %v2305 = vand.u32 2147483647, %v2252
        %vm2306 = vcmp.eq.f32.partialorder %v2305, 8.507059e+37
        %v2307 = vand.u32 %v2252, 2147483648
        %v2308 = vor.u32 1.1754944e-38, %v2307
        %v2309 = vsel %vm2306, %v2308, %v2304
        %v2310 = vmul.f32 1.0, %v2309
        %v2311 = vrcp.pop %v2253
        %v2312 = vmul.f32 %v2253, %v2311
        %v2313 = vsub.f32 1.0, %v2312
        %v2314 = vmul.f32 %v2311, %v2313
        %v2315 = vadd.f32 %v2311, %v2314
        %vm2316 = vweird.f32 %v2253
        %vm2317 = vweird.f32 %v2311
        %vm2318 = vmor %vm2316, %vm2317
        %v2319 = vsel %vm2318, %v2311, %v2315
        %v2320 = vand.u32 2147483647, %v2253
        %vm2321 = vcmp.eq.f32.partialorder %v2320, 8.507059e+37
        %v2322 = vand.u32 %v2253, 2147483648
        %v2323 = vor.u32 1.1754944e-38, %v2322
        %v2324 = vsel %vm2321, %v2323, %v2319
        %v2325 = vmul.f32 1.0, %v2324
        %v2326 = vrcp.pop %v2254
        %v2327 = vmul.f32 %v2254, %v2326
        %v2328 = vsub.f32 1.0, %v2327
        %v2329 = vmul.f32 %v2326, %v2328
        %v2330 = vadd.f32 %v2326, %v2329
        %vm2331 = vweird.f32 %v2254
        %vm2332 = vweird.f32 %v2326
        %vm2333 = vmor %vm2331, %vm2332
        %v2334 = vsel %vm2333, %v2326, %v2330
        %v2335 = vand.u32 2147483647, %v2254
        %vm2336 = vcmp.eq.f32.partialorder %v2335, 8.507059e+37
        %v2337 = vand.u32 %v2254, 2147483648
        %v2338 = vor.u32 1.1754944e-38, %v2337
        %v2339 = vsel %vm2336, %v2338, %v2334
        %v2340 = vmul.f32 1.0, %v2339
        %v2341 = vrcp.pop %v2255
        %v2342 = vmul.f32 %v2255, %v2341
        %v2343 = vsub.f32 1.0, %v2342
        %v2344 = vmul.f32 %v2341, %v2343
        %v2345 = vadd.f32 %v2341, %v2344
        %vm2346 = vweird.f32 %v2255
        %vm2347 = vweird.f32 %v2341
        %vm2348 = vmor %vm2346, %vm2347
        %v2349 = vsel %vm2348, %v2341, %v2345
        %v2350 = vand.u32 2147483647, %v2255
        %vm2351 = vcmp.eq.f32.partialorder %v2350, 8.507059e+37
        %v2352 = vand.u32 %v2255, 2147483648
        %v2353 = vor.u32 1.1754944e-38, %v2352
        %v2354 = vsel %vm2351, %v2353, %v2349
        %v2355 = vmul.f32 1.0, %v2354
        %v2356 = vrcp.pop %v2256
        %v2357 = vmul.f32 %v2256, %v2356
        %v2358 = vsub.f32 1.0, %v2357
        %v2359 = vmul.f32 %v2356, %v2358
        %v2360 = vadd.f32 %v2356, %v2359
        %vm2361 = vweird.f32 %v2256
        %vm2362 = vweird.f32 %v2356
        %vm2363 = vmor %vm2361, %vm2362
        %v2364 = vsel %vm2363, %v2356, %v2360
        %v2365 = vand.u32 2147483647, %v2256
        %vm2366 = vcmp.eq.f32.partialorder %v2365, 8.507059e+37
        %v2367 = vand.u32 %v2256, 2147483648
        %v2368 = vor.u32 1.1754944e-38, %v2367
        %v2369 = vsel %vm2366, %v2368, %v2364
        %v2370 = vmul.f32 1.0, %v2369
        %v2371 = vrcp.pop %v2257
        %v2372 = vmul.f32 %v2257, %v2371
        %v2373 = vsub.f32 1.0, %v2372
        %v2374 = vmul.f32 %v2371, %v2373
        %v2375 = vadd.f32 %v2371, %v2374
        %vm2376 = vweird.f32 %v2257
        %vm2377 = vweird.f32 %v2371
        %vm2378 = vmor %vm2376, %vm2377
        %v2379 = vsel %vm2378, %v2371, %v2375
        %v2380 = vand.u32 2147483647, %v2257
        %vm2381 = vcmp.eq.f32.partialorder %v2380, 8.507059e+37
        %v2382 = vand.u32 %v2257, 2147483648
        %v2383 = vor.u32 1.1754944e-38, %v2382
        %v2384 = vsel %vm2381, %v2383, %v2379
        %v2385 = vmul.f32 1.0, %v2384
        %v2386 = vrcp.pop %v2258
        %v2387 = vmul.f32 %v2258, %v2386
        %v2388 = vsub.f32 1.0, %v2387
        %v2389 = vmul.f32 %v2386, %v2388
        %v2390 = vadd.f32 %v2386, %v2389
        %vm2391 = vweird.f32 %v2258
        %vm2392 = vweird.f32 %v2386
        %vm2393 = vmor %vm2391, %vm2392
        %v2394 = vsel %vm2393, %v2386, %v2390
        %v2395 = vand.u32 2147483647, %v2258
        %vm2396 = vcmp.eq.f32.partialorder %v2395, 8.507059e+37
        %v2397 = vand.u32 %v2258, 2147483648
        %v2398 = vor.u32 1.1754944e-38, %v2397
        %v2399 = vsel %vm2396, %v2398, %v2394
        %v2400 = vmul.f32 1.0, %v2399
        %v2401 = vrcp.pop %v2259
        %v2402 = vmul.f32 %v2259, %v2401
        %v2403 = vsub.f32 1.0, %v2402
        %v2404 = vmul.f32 %v2401, %v2403
        %v2405 = vadd.f32 %v2401, %v2404
        %vm2406 = vweird.f32 %v2259
        %vm2407 = vweird.f32 %v2401
        %vm2408 = vmor %vm2406, %vm2407
        %v2409 = vsel %vm2408, %v2401, %v2405
        %v2410 = vand.u32 2147483647, %v2259
        %vm2411 = vcmp.eq.f32.partialorder %v2410, 8.507059e+37
        %v2412 = vand.u32 %v2259, 2147483648
        %v2413 = vor.u32 1.1754944e-38, %v2412
        %v2414 = vsel %vm2411, %v2413, %v2409
        %v2415 = vmul.f32 1.0, %v2414
        %v2416 = vrcp.pop %v2260
        %v2417 = vmul.f32 %v2260, %v2416
        %v2418 = vsub.f32 1.0, %v2417
        %v2419 = vmul.f32 %v2416, %v2418
        %v2420 = vadd.f32 %v2416, %v2419
        %vm2421 = vweird.f32 %v2260
        %vm2422 = vweird.f32 %v2416
        %vm2423 = vmor %vm2421, %vm2422
        %v2424 = vsel %vm2423, %v2416, %v2420
        %v2425 = vand.u32 2147483647, %v2260
        %vm2426 = vcmp.eq.f32.partialorder %v2425, 8.507059e+37
        %v2427 = vand.u32 %v2260, 2147483648
        %v2428 = vor.u32 1.1754944e-38, %v2427
        %v2429 = vsel %vm2426, %v2428, %v2424
        %v2430 = vmul.f32 1.0, %v2429
        %v2431 = vrcp.pop %v2261
        %v2432 = vmul.f32 %v2261, %v2431
        %v2433 = vsub.f32 1.0, %v2432
        %v2434 = vmul.f32 %v2431, %v2433
        %v2435 = vadd.f32 %v2431, %v2434
        %vm2436 = vweird.f32 %v2261
        %vm2437 = vweird.f32 %v2431
        %vm2438 = vmor %vm2436, %vm2437
        %v2439 = vsel %vm2438, %v2431, %v2435
        %v2440 = vand.u32 2147483647, %v2261
        %vm2441 = vcmp.eq.f32.partialorder %v2440, 8.507059e+37
        %v2442 = vand.u32 %v2261, 2147483648
        %v2443 = vor.u32 1.1754944e-38, %v2442
        %v2444 = vsel %vm2441, %v2443, %v2439
        %v2445 = vmul.f32 1.0, %v2444
        %v2446 = vrcp.pop %v2262
        %v2447 = vmul.f32 %v2262, %v2446
        %v2448 = vsub.f32 1.0, %v2447
        %v2449 = vmul.f32 %v2446, %v2448
        %v2450 = vadd.f32 %v2446, %v2449
        %vm2451 = vweird.f32 %v2262
        %vm2452 = vweird.f32 %v2446
        %vm2453 = vmor %vm2451, %vm2452
        %v2454 = vsel %vm2453, %v2446, %v2450
        %v2455 = vand.u32 2147483647, %v2262
        %vm2456 = vcmp.eq.f32.partialorder %v2455, 8.507059e+37
        %v2457 = vand.u32 %v2262, 2147483648
        %v2458 = vor.u32 1.1754944e-38, %v2457
        %v2459 = vsel %vm2456, %v2458, %v2454
        %v2460 = vmul.f32 1.0, %v2459
        %v2461 = vrcp.pop %v2263
        %v2462 = vmul.f32 %v2263, %v2461
        %v2463 = vsub.f32 1.0, %v2462
        %v2464 = vmul.f32 %v2461, %v2463
        %v2465 = vadd.f32 %v2461, %v2464
        %vm2466 = vweird.f32 %v2263
        %vm2467 = vweird.f32 %v2461
        %vm2468 = vmor %vm2466, %vm2467
        %v2469 = vsel %vm2468, %v2461, %v2465
        %v2470 = vand.u32 2147483647, %v2263
        %vm2471 = vcmp.eq.f32.partialorder %v2470, 8.507059e+37
        %v2472 = vand.u32 %v2263, 2147483648
        %v2473 = vor.u32 1.1754944e-38, %v2472
        %v2474 = vsel %vm2471, %v2473, %v2469
        %v2475 = vmul.f32 1.0, %v2474
        %v2476 = vrcp.pop %v2264
        %v2477 = vmul.f32 %v2264, %v2476
        %v2478 = vsub.f32 1.0, %v2477
        %v2479 = vmul.f32 %v2476, %v2478
        %v2480 = vadd.f32 %v2476, %v2479
        %vm2481 = vweird.f32 %v2264
        %vm2482 = vweird.f32 %v2476
        %vm2483 = vmor %vm2481, %vm2482
        %v2484 = vsel %vm2483, %v2476, %v2480
        %v2485 = vand.u32 2147483647, %v2264
        %vm2486 = vcmp.eq.f32.partialorder %v2485, 8.507059e+37
        %v2487 = vand.u32 %v2264, 2147483648
        %v2488 = vor.u32 1.1754944e-38, %v2487
        %v2489 = vsel %vm2486, %v2488, %v2484
        %v2490 = vmul.f32 1.0, %v2489
        %v2491 = vrcp.pop %v2265
        %v2492 = vmul.f32 %v2265, %v2491
        %v2493 = vsub.f32 1.0, %v2492
        %v2494 = vmul.f32 %v2491, %v2493
        %v2495 = vadd.f32 %v2491, %v2494
        %vm2496 = vweird.f32 %v2265
        %vm2497 = vweird.f32 %v2491
        %vm2498 = vmor %vm2496, %vm2497
        %v2499 = vsel %vm2498, %v2491, %v2495
        %v2500 = vand.u32 2147483647, %v2265
        %vm2501 = vcmp.eq.f32.partialorder %v2500, 8.507059e+37
        %v2502 = vand.u32 %v2265, 2147483648
        %v2503 = vor.u32 1.1754944e-38, %v2502
        %v2504 = vsel %vm2501, %v2503, %v2499
        %v2505 = vmul.f32 1.0, %v2504
        %v2506 = vsel %vm2042, %v2280, 0.0
        %v2507 = vsel %vm2043, %v2295, 0.0
        %v2508 = vsel %vm2044, %v2310, 0.0
        %v2509 = vsel %vm2045, %v2325, 0.0
        %v2510 = vsel %vm2046, %v2340, 0.0
        %v2511 = vsel %vm2047, %v2355, 0.0
        %v2512 = vsel %vm2048, %v2370, 0.0
        %v2513 = vsel %vm2049, %v2385, 0.0
        %v2514 = vsel %vm2050, %v2400, 0.0
        %v2515 = vsel %vm2051, %v2415, 0.0
        %v2516 = vsel %vm2052, %v2430, 0.0
        %v2517 = vsel %vm2053, %v2445, 0.0
        %v2518 = vsel %vm2054, %v2460, 0.0
        %v2519 = vsel %vm2055, %v2475, 0.0
        %v2520 = vsel %vm2056, %v2490, 0.0
        %v2521 = vsel %vm2057, %v2505, 0.0
        %v2522 = vadd.f32 %v1946, %v2506
        %v2523 = vadd.f32 %v1947, %v2507
        %v2524 = vadd.f32 %v1948, %v2508
        %v2525 = vadd.f32 %v1949, %v2509
        %v2526 = vadd.f32 %v1950, %v2510
        %v2527 = vadd.f32 %v1951, %v2511
        %v2528 = vadd.f32 %v1952, %v2512
        %v2529 = vadd.f32 %v1953, %v2513
        %v2530 = vadd.f32 %v1954, %v2514
        %v2531 = vadd.f32 %v1955, %v2515
        %v2532 = vadd.f32 %v1956, %v2516
        %v2533 = vadd.f32 %v1957, %v2517
        %v2534 = vadd.f32 %v1958, %v2518
        %v2535 = vadd.f32 %v1959, %v2519
        %v2536 = vadd.f32 %v1960, %v2520
        %v2537 = vadd.f32 %v1961, %v2521
        %v2538 = vadd.f32 %v1962, %v2280
        %v2539 = vadd.f32 %v1963, %v2295
        %v2540 = vadd.f32 %v1964, %v2310
        %v2541 = vadd.f32 %v1965, %v2325
        %v2542 = vadd.f32 %v1966, %v2340
        %v2543 = vadd.f32 %v1967, %v2355
        %v2544 = vadd.f32 %v1968, %v2370
        %v2545 = vadd.f32 %v1969, %v2385
        %v2546 = vadd.f32 %v1970, %v2400
        %v2547 = vadd.f32 %v1971, %v2415
        %v2548 = vadd.f32 %v1972, %v2430
        %v2549 = vadd.f32 %v1973, %v2445
        %v2550 = vadd.f32 %v1974, %v2460
        %v2551 = vadd.f32 %v1975, %v2475
        %v2552 = vadd.f32 %v1976, %v2490
        %v2553 = vadd.f32 %v1977, %v2505
        %v2554 = vld [vmem:[%s369] sm:$0xff]
        %v2555 = vld [vmem:[%s369 + $0x8] sm:$0xff]
        %v2556 = vld [vmem:[%s369 + $0x10] sm:$0xff]
        %v2557 = vld [vmem:[%s369 + $0x18] sm:$0xff]
        %v2558 = vld [vmem:[%s369 + $0x20] sm:$0xff]
        %v2559 = vld [vmem:[%s369 + $0x28] sm:$0xff]
        %v2560 = vld [vmem:[%s369 + $0x30] sm:$0xff]
        %v2561 = vld [vmem:[%s369 + $0x38] sm:$0xff]
        %v2563 = vsel %vm383, %v2522, 0
        %v2566 = vsel %vm383, %v2523, 0
        %v2569 = vsel %vm383, %v2524, 0
        %v2572 = vsel %vm383, %v2525, 0
        %v2575 = vsel %vm383, %v2526, 0
        %v2578 = vsel %vm383, %v2527, 0
        %v2581 = vsel %vm383, %v2528, 0
        %v2584 = vsel %vm383, %v2529, 0
        %v2587 = vsel %vm383, %v2530, 0
        %v2590 = vsel %vm383, %v2531, 0
        %v2593 = vsel %vm383, %v2532, 0
        %v2596 = vsel %vm383, %v2533, 0
        %v2599 = vsel %vm383, %v2534, 0
        %v2602 = vsel %vm383, %v2535, 0
        %v2605 = vsel %vm383, %v2536, 0
        %v2608 = vsel %vm383, %v2537, 0
        %2610 = vmatpush.msra.mxu0 0.0
        %2611 = vmatpush.msra.mxu0 0.0
        %2612 = vmatpush.msra.mxu0 0.0
        %2613 = vmatpush.msra.mxu0 0.0
        %2614 = vmatpush.msra.mxu0 0.0
        %2615 = vmatpush.msra.mxu0 0.0
        %2616 = vmatpush.msra.mxu0 0.0
        %2617 = vmatpush.msra.mxu0 0.0
        %2618 = vmatpush.msra.mxu0 %v2561
        %2619 = vmatpush.msra.mxu0 %v2560
        %2620 = vmatpush.msra.mxu0 %v2559
        %2621 = vmatpush.msra.mxu0 %v2558
        %2622 = vmatpush.msra.mxu0 %v2557
        %2623 = vmatpush.msra.mxu0 %v2556
        %2624 = vmatpush.msra.mxu0 %v2555
        %2625 = vmatpush.msra.mxu0 %v2554
        %2626 = vmatmul.f32.gmra.mxu0 %v2563
        %v2627 = vpop.f32.mrf.mxu0
        %v2628 = vadd.f32 0.0, %v2627
        %2629 = vmatmul.f32.gmra.mxu0 %v2566
        %v2630 = vpop.f32.mrf.mxu0
        %v2631 = vadd.f32 0.0, %v2630
        %2632 = vmatmul.f32.gmra.mxu0 %v2569
        %v2633 = vpop.f32.mrf.mxu0
        %v2634 = vadd.f32 0.0, %v2633
        %2635 = vmatmul.f32.gmra.mxu0 %v2572
        %v2636 = vpop.f32.mrf.mxu0
        %v2637 = vadd.f32 0.0, %v2636
        %2638 = vmatmul.f32.gmra.mxu0 %v2575
        %v2639 = vpop.f32.mrf.mxu0
        %v2640 = vadd.f32 0.0, %v2639
        %2641 = vmatmul.f32.gmra.mxu0 %v2578
        %v2642 = vpop.f32.mrf.mxu0
        %v2643 = vadd.f32 0.0, %v2642
        %2644 = vmatmul.f32.gmra.mxu0 %v2581
        %v2645 = vpop.f32.mrf.mxu0
        %v2646 = vadd.f32 0.0, %v2645
        %2647 = vmatmul.f32.gmra.mxu0 %v2584
        %v2648 = vpop.f32.mrf.mxu0
        %v2649 = vadd.f32 0.0, %v2648
        %2650 = vmatmul.f32.gmra.mxu0 %v2587
        %v2651 = vpop.f32.mrf.mxu0
        %v2652 = vadd.f32 0.0, %v2651
        %2653 = vmatmul.f32.gmra.mxu0 %v2590
        %v2654 = vpop.f32.mrf.mxu0
        %v2655 = vadd.f32 0.0, %v2654
        %2656 = vmatmul.f32.gmra.mxu0 %v2593
        %v2657 = vpop.f32.mrf.mxu0
        %v2658 = vadd.f32 0.0, %v2657
        %2659 = vmatmul.f32.gmra.mxu0 %v2596
        %v2660 = vpop.f32.mrf.mxu0
        %v2661 = vadd.f32 0.0, %v2660
        %2662 = vmatmul.f32.gmra.mxu0 %v2599
        %v2663 = vpop.f32.mrf.mxu0
        %v2664 = vadd.f32 0.0, %v2663
        %2665 = vmatmul.f32.gmra.mxu0 %v2602
        %v2666 = vpop.f32.mrf.mxu0
        %v2667 = vadd.f32 0.0, %v2666
        %2668 = vmatmul.f32.gmra.mxu0 %v2605
        %v2669 = vpop.f32.mrf.mxu0
        %v2670 = vadd.f32 0.0, %v2669
        %2671 = vmatmul.f32.gmra.mxu0 %v2608
        %v2672 = vpop.f32.mrf.mxu0
        %v2673 = vadd.f32 0.0, %v2672
        %2674 = vdwg.mxu0
        %v2675 = vrcp.pop %v2538
        %v2676 = vmul.f32 %v2538, %v2675
        %v2677 = vsub.f32 1.0, %v2676
        %v2678 = vmul.f32 %v2675, %v2677
        %v2679 = vadd.f32 %v2675, %v2678
        %vm2680 = vweird.f32 %v2538
        %vm2681 = vweird.f32 %v2675
        %vm2682 = vmor %vm2680, %vm2681
        %v2683 = vsel %vm2682, %v2675, %v2679
        %v2684 = vand.u32 2147483647, %v2538
        %vm2685 = vcmp.eq.f32.partialorder %v2684, 8.507059e+37
        %v2686 = vand.u32 %v2538, 2147483648
        %v2687 = vor.u32 1.1754944e-38, %v2686
        %v2688 = vsel %vm2685, %v2687, %v2683
        %v2689 = vrcp.pop %v2539
        %v2690 = vmul.f32 %v2539, %v2689
        %v2691 = vsub.f32 1.0, %v2690
        %v2692 = vmul.f32 %v2689, %v2691
        %v2693 = vadd.f32 %v2689, %v2692
        %vm2694 = vweird.f32 %v2539
        %vm2695 = vweird.f32 %v2689
        %vm2696 = vmor %vm2694, %vm2695
        %v2697 = vsel %vm2696, %v2689, %v2693
        %v2698 = vand.u32 2147483647, %v2539
        %vm2699 = vcmp.eq.f32.partialorder %v2698, 8.507059e+37
        %v2700 = vand.u32 %v2539, 2147483648
        %v2701 = vor.u32 1.1754944e-38, %v2700
        %v2702 = vsel %vm2699, %v2701, %v2697
        %v2703 = vrcp.pop %v2540
        %v2704 = vmul.f32 %v2540, %v2703
        %v2705 = vsub.f32 1.0, %v2704
        %v2706 = vmul.f32 %v2703, %v2705
        %v2707 = vadd.f32 %v2703, %v2706
        %vm2708 = vweird.f32 %v2540
        %vm2709 = vweird.f32 %v2703
        %vm2710 = vmor %vm2708, %vm2709
        %v2711 = vsel %vm2710, %v2703, %v2707
        %v2712 = vand.u32 2147483647, %v2540
        %vm2713 = vcmp.eq.f32.partialorder %v2712, 8.507059e+37
        %v2714 = vand.u32 %v2540, 2147483648
        %v2715 = vor.u32 1.1754944e-38, %v2714
        %v2716 = vsel %vm2713, %v2715, %v2711
        %v2717 = vrcp.pop %v2541
        %v2718 = vmul.f32 %v2541, %v2717
        %v2719 = vsub.f32 1.0, %v2718
        %v2720 = vmul.f32 %v2717, %v2719
        %v2721 = vadd.f32 %v2717, %v2720
        %vm2722 = vweird.f32 %v2541
        %vm2723 = vweird.f32 %v2717
        %vm2724 = vmor %vm2722, %vm2723
        %v2725 = vsel %vm2724, %v2717, %v2721
        %v2726 = vand.u32 2147483647, %v2541
        %vm2727 = vcmp.eq.f32.partialorder %v2726, 8.507059e+37
        %v2728 = vand.u32 %v2541, 2147483648
        %v2729 = vor.u32 1.1754944e-38, %v2728
        %v2730 = vsel %vm2727, %v2729, %v2725
        %v2731 = vrcp.pop %v2542
        %v2732 = vmul.f32 %v2542, %v2731
        %v2733 = vsub.f32 1.0, %v2732
        %v2734 = vmul.f32 %v2731, %v2733
        %v2735 = vadd.f32 %v2731, %v2734
        %vm2736 = vweird.f32 %v2542
        %vm2737 = vweird.f32 %v2731
        %vm2738 = vmor %vm2736, %vm2737
        %v2739 = vsel %vm2738, %v2731, %v2735
        %v2740 = vand.u32 2147483647, %v2542
        %vm2741 = vcmp.eq.f32.partialorder %v2740, 8.507059e+37
        %v2742 = vand.u32 %v2542, 2147483648
        %v2743 = vor.u32 1.1754944e-38, %v2742
        %v2744 = vsel %vm2741, %v2743, %v2739
        %v2745 = vrcp.pop %v2543
        %v2746 = vmul.f32 %v2543, %v2745
        %v2747 = vsub.f32 1.0, %v2746
        %v2748 = vmul.f32 %v2745, %v2747
        %v2749 = vadd.f32 %v2745, %v2748
        %vm2750 = vweird.f32 %v2543
        %vm2751 = vweird.f32 %v2745
        %vm2752 = vmor %vm2750, %vm2751
        %v2753 = vsel %vm2752, %v2745, %v2749
        %v2754 = vand.u32 2147483647, %v2543
        %vm2755 = vcmp.eq.f32.partialorder %v2754, 8.507059e+37
        %v2756 = vand.u32 %v2543, 2147483648
        %v2757 = vor.u32 1.1754944e-38, %v2756
        %v2758 = vsel %vm2755, %v2757, %v2753
        %v2759 = vrcp.pop %v2544
        %v2760 = vmul.f32 %v2544, %v2759
        %v2761 = vsub.f32 1.0, %v2760
        %v2762 = vmul.f32 %v2759, %v2761
        %v2763 = vadd.f32 %v2759, %v2762
        %vm2764 = vweird.f32 %v2544
        %vm2765 = vweird.f32 %v2759
        %vm2766 = vmor %vm2764, %vm2765
        %v2767 = vsel %vm2766, %v2759, %v2763
        %v2768 = vand.u32 2147483647, %v2544
        %vm2769 = vcmp.eq.f32.partialorder %v2768, 8.507059e+37
        %v2770 = vand.u32 %v2544, 2147483648
        %v2771 = vor.u32 1.1754944e-38, %v2770
        %v2772 = vsel %vm2769, %v2771, %v2767
        %v2773 = vrcp.pop %v2545
        %v2774 = vmul.f32 %v2545, %v2773
        %v2775 = vsub.f32 1.0, %v2774
        %v2776 = vmul.f32 %v2773, %v2775
        %v2777 = vadd.f32 %v2773, %v2776
        %vm2778 = vweird.f32 %v2545
        %vm2779 = vweird.f32 %v2773
        %vm2780 = vmor %vm2778, %vm2779
        %v2781 = vsel %vm2780, %v2773, %v2777
        %v2782 = vand.u32 2147483647, %v2545
        %vm2783 = vcmp.eq.f32.partialorder %v2782, 8.507059e+37
        %v2784 = vand.u32 %v2545, 2147483648
        %v2785 = vor.u32 1.1754944e-38, %v2784
        %v2786 = vsel %vm2783, %v2785, %v2781
        %v2787 = vrcp.pop %v2546
        %v2788 = vmul.f32 %v2546, %v2787
        %v2789 = vsub.f32 1.0, %v2788
        %v2790 = vmul.f32 %v2787, %v2789
        %v2791 = vadd.f32 %v2787, %v2790
        %vm2792 = vweird.f32 %v2546
        %vm2793 = vweird.f32 %v2787
        %vm2794 = vmor %vm2792, %vm2793
        %v2795 = vsel %vm2794, %v2787, %v2791
        %v2796 = vand.u32 2147483647, %v2546
        %vm2797 = vcmp.eq.f32.partialorder %v2796, 8.507059e+37
        %v2798 = vand.u32 %v2546, 2147483648
        %v2799 = vor.u32 1.1754944e-38, %v2798
        %v2800 = vsel %vm2797, %v2799, %v2795
        %v2801 = vrcp.pop %v2547
        %v2802 = vmul.f32 %v2547, %v2801
        %v2803 = vsub.f32 1.0, %v2802
        %v2804 = vmul.f32 %v2801, %v2803
        %v2805 = vadd.f32 %v2801, %v2804
        %vm2806 = vweird.f32 %v2547
        %vm2807 = vweird.f32 %v2801
        %vm2808 = vmor %vm2806, %vm2807
        %v2809 = vsel %vm2808, %v2801, %v2805
        %v2810 = vand.u32 2147483647, %v2547
        %vm2811 = vcmp.eq.f32.partialorder %v2810, 8.507059e+37
        %v2812 = vand.u32 %v2547, 2147483648
        %v2813 = vor.u32 1.1754944e-38, %v2812
        %v2814 = vsel %vm2811, %v2813, %v2809
        %v2815 = vrcp.pop %v2548
        %v2816 = vmul.f32 %v2548, %v2815
        %v2817 = vsub.f32 1.0, %v2816
        %v2818 = vmul.f32 %v2815, %v2817
        %v2819 = vadd.f32 %v2815, %v2818
        %vm2820 = vweird.f32 %v2548
        %vm2821 = vweird.f32 %v2815
        %vm2822 = vmor %vm2820, %vm2821
        %v2823 = vsel %vm2822, %v2815, %v2819
        %v2824 = vand.u32 2147483647, %v2548
        %vm2825 = vcmp.eq.f32.partialorder %v2824, 8.507059e+37
        %v2826 = vand.u32 %v2548, 2147483648
        %v2827 = vor.u32 1.1754944e-38, %v2826
        %v2828 = vsel %vm2825, %v2827, %v2823
        %v2829 = vrcp.pop %v2549
        %v2830 = vmul.f32 %v2549, %v2829
        %v2831 = vsub.f32 1.0, %v2830
        %v2832 = vmul.f32 %v2829, %v2831
        %v2833 = vadd.f32 %v2829, %v2832
        %vm2834 = vweird.f32 %v2549
        %vm2835 = vweird.f32 %v2829
        %vm2836 = vmor %vm2834, %vm2835
        %v2837 = vsel %vm2836, %v2829, %v2833
        %v2838 = vand.u32 2147483647, %v2549
        %vm2839 = vcmp.eq.f32.partialorder %v2838, 8.507059e+37
        %v2840 = vand.u32 %v2549, 2147483648
        %v2841 = vor.u32 1.1754944e-38, %v2840
        %v2842 = vsel %vm2839, %v2841, %v2837
        %v2843 = vrcp.pop %v2550
        %v2844 = vmul.f32 %v2550, %v2843
        %v2845 = vsub.f32 1.0, %v2844
        %v2846 = vmul.f32 %v2843, %v2845
        %v2847 = vadd.f32 %v2843, %v2846
        %vm2848 = vweird.f32 %v2550
        %vm2849 = vweird.f32 %v2843
        %vm2850 = vmor %vm2848, %vm2849
        %v2851 = vsel %vm2850, %v2843, %v2847
        %v2852 = vand.u32 2147483647, %v2550
        %vm2853 = vcmp.eq.f32.partialorder %v2852, 8.507059e+37
        %v2854 = vand.u32 %v2550, 2147483648
        %v2855 = vor.u32 1.1754944e-38, %v2854
        %v2856 = vsel %vm2853, %v2855, %v2851
        %v2857 = vrcp.pop %v2551
        %v2858 = vmul.f32 %v2551, %v2857
        %v2859 = vsub.f32 1.0, %v2858
        %v2860 = vmul.f32 %v2857, %v2859
        %v2861 = vadd.f32 %v2857, %v2860
        %vm2862 = vweird.f32 %v2551
        %vm2863 = vweird.f32 %v2857
        %vm2864 = vmor %vm2862, %vm2863
        %v2865 = vsel %vm2864, %v2857, %v2861
        %v2866 = vand.u32 2147483647, %v2551
        %vm2867 = vcmp.eq.f32.partialorder %v2866, 8.507059e+37
        %v2868 = vand.u32 %v2551, 2147483648
        %v2869 = vor.u32 1.1754944e-38, %v2868
        %v2870 = vsel %vm2867, %v2869, %v2865
        %v2871 = vrcp.pop %v2552
        %v2872 = vmul.f32 %v2552, %v2871
        %v2873 = vsub.f32 1.0, %v2872
        %v2874 = vmul.f32 %v2871, %v2873
        %v2875 = vadd.f32 %v2871, %v2874
        %vm2876 = vweird.f32 %v2552
        %vm2877 = vweird.f32 %v2871
        %vm2878 = vmor %vm2876, %vm2877
        %v2879 = vsel %vm2878, %v2871, %v2875
        %v2880 = vand.u32 2147483647, %v2552
        %vm2881 = vcmp.eq.f32.partialorder %v2880, 8.507059e+37
        %v2882 = vand.u32 %v2552, 2147483648
        %v2883 = vor.u32 1.1754944e-38, %v2882
        %v2884 = vsel %vm2881, %v2883, %v2879
        %v2885 = vrcp.pop %v2553
        %v2886 = vmul.f32 %v2553, %v2885
        %v2887 = vsub.f32 1.0, %v2886
        %v2888 = vmul.f32 %v2885, %v2887
        %v2889 = vadd.f32 %v2885, %v2888
        %vm2890 = vweird.f32 %v2553
        %vm2891 = vweird.f32 %v2885
        %vm2892 = vmor %vm2890, %vm2891
        %v2893 = vsel %vm2892, %v2885, %v2889
        %v2894 = vand.u32 2147483647, %v2553
        %vm2895 = vcmp.eq.f32.partialorder %v2894, 8.507059e+37
        %v2896 = vand.u32 %v2553, 2147483648
        %v2897 = vor.u32 1.1754944e-38, %v2896
        %v2898 = vsel %vm2895, %v2897, %v2893
        %v2899 = vmul.f32 %v2628, %v2688
        %v2900 = vmul.f32 %v2631, %v2702
        %v2901 = vmul.f32 %v2634, %v2716
        %v2902 = vmul.f32 %v2637, %v2730
        %v2903 = vmul.f32 %v2640, %v2744
        %v2904 = vmul.f32 %v2643, %v2758
        %v2905 = vmul.f32 %v2646, %v2772
        %v2906 = vmul.f32 %v2649, %v2786
        %v2907 = vmul.f32 %v2652, %v2800
        %v2908 = vmul.f32 %v2655, %v2814
        %v2909 = vmul.f32 %v2658, %v2828
        %v2910 = vmul.f32 %v2661, %v2842
        %v2911 = vmul.f32 %v2664, %v2856
        %v2912 = vmul.f32 %v2667, %v2870
        %v2913 = vmul.f32 %v2670, %v2884
        %v2914 = vmul.f32 %v2673, %v2898
        %vm2915 = vcmask 261120
        %2916 = vst.msk [vmem:[#allocation2] sm:$0xff] %vm2915, %v2899
        %2917 = vst.msk [vmem:[#allocation2 + $0x8] sm:$0xff] %vm2915, %v2900
        %2918 = vst.msk [vmem:[#allocation2 + $0x10] sm:$0xff] %vm2915, %v2901
        %2919 = vst.msk [vmem:[#allocation2 + $0x18] sm:$0xff] %vm2915, %v2902
        %2920 = vst.msk [vmem:[#allocation2 + $0x20] sm:$0xff] %vm2915, %v2903
        %2921 = vst.msk [vmem:[#allocation2 + $0x28] sm:$0xff] %vm2915, %v2904
        %2922 = vst.msk [vmem:[#allocation2 + $0x30] sm:$0xff] %vm2915, %v2905
        %2923 = vst.msk [vmem:[#allocation2 + $0x38] sm:$0xff] %vm2915, %v2906
        %2924 = vst.msk [vmem:[#allocation2 + $0x40] sm:$0xff] %vm2915, %v2907
        %2925 = vst.msk [vmem:[#allocation2 + $0x48] sm:$0xff] %vm2915, %v2908
        %2926 = vst.msk [vmem:[#allocation2 + $0x50] sm:$0xff] %vm2915, %v2909
        %2927 = vst.msk [vmem:[#allocation2 + $0x58] sm:$0xff] %vm2915, %v2910
        %2928 = vst.msk [vmem:[#allocation2 + $0x60] sm:$0xff] %vm2915, %v2911
        %2929 = vst.msk [vmem:[#allocation2 + $0x68] sm:$0xff] %vm2915, %v2912
        %2930 = vst.msk [vmem:[#allocation2 + $0x70] sm:$0xff] %vm2915, %v2913
        %2931 = vst.msk [vmem:[#allocation2 + $0x78] sm:$0xff] %vm2915, %v2914
        %v2932 = vld [vmem:[%s359 + $0x80] sm:$0xff]
        %v2933 = vld [vmem:[%s359 + $0x88] sm:$0xff]
        %v2934 = vld [vmem:[%s359 + $0x90] sm:$0xff]
        %v2935 = vld [vmem:[%s359 + $0x98] sm:$0xff]
        %v2936 = vld [vmem:[%s359 + $0xa0] sm:$0xff]
        %v2937 = vld [vmem:[%s359 + $0xa8] sm:$0xff]
        %v2938 = vld [vmem:[%s359 + $0xb0] sm:$0xff]
        %v2939 = vld [vmem:[%s359 + $0xb8] sm:$0xff]
        %v2940 = vld [vmem:[%s359 + $0xc0] sm:$0xff]
        %v2941 = vld [vmem:[%s359 + $0xc8] sm:$0xff]
        %v2942 = vld [vmem:[%s359 + $0xd0] sm:$0xff]
        %v2943 = vld [vmem:[%s359 + $0xd8] sm:$0xff]
        %v2944 = vld [vmem:[%s359 + $0xe0] sm:$0xff]
        %v2945 = vld [vmem:[%s359 + $0xe8] sm:$0xff]
        %v2946 = vld [vmem:[%s359 + $0xf0] sm:$0xff]
        %v2947 = vld [vmem:[%s359 + $0xf8] sm:$0xff]
        %v2948 = vmul.f32 %v2932, %v2932
        %v2949 = vmul.f32 %v2933, %v2933
        %v2950 = vmul.f32 %v2934, %v2934
        %v2951 = vmul.f32 %v2935, %v2935
        %v2952 = vmul.f32 %v2936, %v2936
        %v2953 = vmul.f32 %v2937, %v2937
        %v2954 = vmul.f32 %v2938, %v2938
        %v2955 = vmul.f32 %v2939, %v2939
        %v2956 = vmul.f32 %v2940, %v2940
        %v2957 = vmul.f32 %v2941, %v2941
        %v2958 = vmul.f32 %v2942, %v2942
        %v2959 = vmul.f32 %v2943, %v2943
        %v2960 = vmul.f32 %v2944, %v2944
        %v2961 = vmul.f32 %v2945, %v2945
        %v2962 = vmul.f32 %v2946, %v2946
        %v2963 = vmul.f32 %v2947, %v2947
        %v2964 = vsel %vm616, %v2948, 0.0
        %2965 = vadd.xlane.f32.xlu0 %v2964
        %v2966 = vpop.xlane.xlu0 %2965
        %v2967 = vsel %vm616, %v2949, 0.0
        %2968 = vadd.xlane.f32.xlu0 %v2967
        %v2969 = vpop.xlane.xlu0 %2968
        %v2970 = vsel %vm616, %v2950, 0.0
        %2971 = vadd.xlane.f32.xlu0 %v2970
        %v2972 = vpop.xlane.xlu0 %2971
        %v2973 = vsel %vm616, %v2951, 0.0
        %2974 = vadd.xlane.f32.xlu0 %v2973
        %v2975 = vpop.xlane.xlu0 %2974
        %v2976 = vsel %vm616, %v2952, 0.0
        %2977 = vadd.xlane.f32.xlu0 %v2976
        %v2978 = vpop.xlane.xlu0 %2977
        %v2979 = vsel %vm616, %v2953, 0.0
        %2980 = vadd.xlane.f32.xlu0 %v2979
        %v2981 = vpop.xlane.xlu0 %2980
        %v2982 = vsel %vm616, %v2954, 0.0
        %2983 = vadd.xlane.f32.xlu0 %v2982
        %v2984 = vpop.xlane.xlu0 %2983
        %v2985 = vsel %vm616, %v2955, 0.0
        %2986 = vadd.xlane.f32.xlu0 %v2985
        %v2987 = vpop.xlane.xlu0 %2986
        %v2988 = vsel %vm616, %v2956, 0.0
        %2989 = vadd.xlane.f32.xlu0 %v2988
        %v2990 = vpop.xlane.xlu0 %2989
        %v2991 = vsel %vm616, %v2957, 0.0
        %2992 = vadd.xlane.f32.xlu0 %v2991
        %v2993 = vpop.xlane.xlu0 %2992
        %v2994 = vsel %vm616, %v2958, 0.0
        %2995 = vadd.xlane.f32.xlu0 %v2994
        %v2996 = vpop.xlane.xlu0 %2995
        %v2997 = vsel %vm616, %v2959, 0.0
        %2998 = vadd.xlane.f32.xlu0 %v2997
        %v2999 = vpop.xlane.xlu0 %2998
        %v3000 = vsel %vm616, %v2960, 0.0
        %3001 = vadd.xlane.f32.xlu0 %v3000
        %v3002 = vpop.xlane.xlu0 %3001
        %v3003 = vsel %vm616, %v2961, 0.0
        %3004 = vadd.xlane.f32.xlu0 %v3003
        %v3005 = vpop.xlane.xlu0 %3004
        %v3006 = vsel %vm616, %v2962, 0.0
        %3007 = vadd.xlane.f32.xlu0 %v3006
        %v3008 = vpop.xlane.xlu0 %3007
        %v3009 = vsel %vm616, %v2963, 0.0
        %3010 = vadd.xlane.f32.xlu0 %v3009
        %v3011 = vpop.xlane.xlu0 %3010
        %v3013 = vsel %vm616, %v2932, 0
        %v3016 = vsel %vm616, %v2933, 0
        %v3019 = vsel %vm616, %v2934, 0
        %v3022 = vsel %vm616, %v2935, 0
        %v3025 = vsel %vm616, %v2936, 0
        %v3028 = vsel %vm616, %v2937, 0
        %v3031 = vsel %vm616, %v2938, 0
        %v3034 = vsel %vm616, %v2939, 0
        %v3037 = vsel %vm616, %v2940, 0
        %v3040 = vsel %vm616, %v2941, 0
        %v3043 = vsel %vm616, %v2942, 0
        %v3046 = vsel %vm616, %v2943, 0
        %v3049 = vsel %vm616, %v2944, 0
        %v3052 = vsel %vm616, %v2945, 0
        %v3055 = vsel %vm616, %v2946, 0
        %v3058 = vsel %vm616, %v2947, 0
        %3060 = vmatpush.msra.mxu0 0.0
        %3061 = vmatpush.msra.mxu0 0.0
        %3062 = vmatpush.msra.mxu0 0.0
        %3063 = vmatpush.msra.mxu0 0.0
        %3064 = vmatpush.msra.mxu0 0.0
        %3065 = vmatpush.msra.mxu0 0.0
        %3066 = vmatpush.msra.mxu0 0.0
        %3067 = vmatpush.msra.mxu0 0.0
        %3068 = vmatpush.msra.mxu0 0.0
        %3069 = vmatpush.msra.mxu0 0.0
        %3070 = vmatpush.msra.mxu0 0.0
        %3071 = vmatpush.msra.mxu0 0.0
        %3072 = vmatpush.msra.mxu0 0.0
        %3073 = vmatpush.msra.mxu0 0.0
        %3074 = vmatpush.msra.mxu0 0.0
        %3075 = vmatpush.msra.mxu0 %v381
        %3076 = vmatmul.f32.gmra.mxu0 %v3013
        %v3077 = vpop.f32.mrf.mxu0
        %v3078 = vadd.f32 0.0, %v3077
        %3079 = vmatmul.f32.gmra.mxu0 %v3016
        %v3080 = vpop.f32.mrf.mxu0
        %v3081 = vadd.f32 0.0, %v3080
        %3082 = vmatmul.f32.gmra.mxu0 %v3019
        %v3083 = vpop.f32.mrf.mxu0
        %v3084 = vadd.f32 0.0, %v3083
        %3085 = vmatmul.f32.gmra.mxu0 %v3022
        %v3086 = vpop.f32.mrf.mxu0
        %v3087 = vadd.f32 0.0, %v3086
        %3088 = vmatmul.f32.gmra.mxu0 %v3025
        %v3089 = vpop.f32.mrf.mxu0
        %v3090 = vadd.f32 0.0, %v3089
        %3091 = vmatmul.f32.gmra.mxu0 %v3028
        %v3092 = vpop.f32.mrf.mxu0
        %v3093 = vadd.f32 0.0, %v3092
        %3094 = vmatmul.f32.gmra.mxu0 %v3031
        %v3095 = vpop.f32.mrf.mxu0
        %v3096 = vadd.f32 0.0, %v3095
        %3097 = vmatmul.f32.gmra.mxu0 %v3034
        %v3098 = vpop.f32.mrf.mxu0
        %v3099 = vadd.f32 0.0, %v3098
        %3100 = vmatmul.f32.gmra.mxu0 %v3037
        %v3101 = vpop.f32.mrf.mxu0
        %v3102 = vadd.f32 0.0, %v3101
        %3103 = vmatmul.f32.gmra.mxu0 %v3040
        %v3104 = vpop.f32.mrf.mxu0
        %v3105 = vadd.f32 0.0, %v3104
        %3106 = vmatmul.f32.gmra.mxu0 %v3043
        %v3107 = vpop.f32.mrf.mxu0
        %v3108 = vadd.f32 0.0, %v3107
        %3109 = vmatmul.f32.gmra.mxu0 %v3046
        %v3110 = vpop.f32.mrf.mxu0
        %v3111 = vadd.f32 0.0, %v3110
        %3112 = vmatmul.f32.gmra.mxu0 %v3049
        %v3113 = vpop.f32.mrf.mxu0
        %v3114 = vadd.f32 0.0, %v3113
        %3115 = vmatmul.f32.gmra.mxu0 %v3052
        %v3116 = vpop.f32.mrf.mxu0
        %v3117 = vadd.f32 0.0, %v3116
        %3118 = vmatmul.f32.gmra.mxu0 %v3055
        %v3119 = vpop.f32.mrf.mxu0
        %v3120 = vadd.f32 0.0, %v3119
        %3121 = vmatmul.f32.gmra.mxu0 %v3058
        %v3122 = vpop.f32.mrf.mxu0
        %v3123 = vadd.f32 0.0, %v3122
        %3124 = vdwg.mxu0
        %v3125 = vadd.f32 %v2966, %v390
        %v3126 = vadd.f32 %v2969, %v390
        %v3127 = vadd.f32 %v2972, %v390
        %v3128 = vadd.f32 %v2975, %v390
        %v3129 = vadd.f32 %v2978, %v390
        %v3130 = vadd.f32 %v2981, %v390
        %v3131 = vadd.f32 %v2984, %v390
        %v3132 = vadd.f32 %v2987, %v390
        %v3133 = vadd.f32 %v2990, %v390
        %v3134 = vadd.f32 %v2993, %v390
        %v3135 = vadd.f32 %v2996, %v390
        %v3136 = vadd.f32 %v2999, %v390
        %v3137 = vadd.f32 %v3002, %v390
        %v3138 = vadd.f32 %v3005, %v390
        %v3139 = vadd.f32 %v3008, %v390
        %v3140 = vadd.f32 %v3011, %v390
        %v3141 = vmul.f32 %v3078, 2.0
        %v3142 = vmul.f32 %v3081, 2.0
        %v3143 = vmul.f32 %v3084, 2.0
        %v3144 = vmul.f32 %v3087, 2.0
        %v3145 = vmul.f32 %v3090, 2.0
        %v3146 = vmul.f32 %v3093, 2.0
        %v3147 = vmul.f32 %v3096, 2.0
        %v3148 = vmul.f32 %v3099, 2.0
        %v3149 = vmul.f32 %v3102, 2.0
        %v3150 = vmul.f32 %v3105, 2.0
        %v3151 = vmul.f32 %v3108, 2.0
        %v3152 = vmul.f32 %v3111, 2.0
        %v3153 = vmul.f32 %v3114, 2.0
        %v3154 = vmul.f32 %v3117, 2.0
        %v3155 = vmul.f32 %v3120, 2.0
        %v3156 = vmul.f32 %v3123, 2.0
        %v3157 = vsub.f32 %v3125, %v3141
        %v3158 = vsub.f32 %v3126, %v3142
        %v3159 = vsub.f32 %v3127, %v3143
        %v3160 = vsub.f32 %v3128, %v3144
        %v3161 = vsub.f32 %v3129, %v3145
        %v3162 = vsub.f32 %v3130, %v3146
        %v3163 = vsub.f32 %v3131, %v3147
        %v3164 = vsub.f32 %v3132, %v3148
        %v3165 = vsub.f32 %v3133, %v3149
        %v3166 = vsub.f32 %v3134, %v3150
        %v3167 = vsub.f32 %v3135, %v3151
        %v3168 = vsub.f32 %v3136, %v3152
        %v3169 = vsub.f32 %v3137, %v3153
        %v3170 = vsub.f32 %v3138, %v3154
        %v3171 = vsub.f32 %v3139, %v3155
        %v3172 = vsub.f32 %v3140, %v3156
        %v3173 = vmax.f32 %v3157, 0.0
        %v3174 = vmax.f32 %v3158, 0.0
        %v3175 = vmax.f32 %v3159, 0.0
        %v3176 = vmax.f32 %v3160, 0.0
        %v3177 = vmax.f32 %v3161, 0.0
        %v3178 = vmax.f32 %v3162, 0.0
        %v3179 = vmax.f32 %v3163, 0.0
        %v3180 = vmax.f32 %v3164, 0.0
        %v3181 = vmax.f32 %v3165, 0.0
        %v3182 = vmax.f32 %v3166, 0.0
        %v3183 = vmax.f32 %v3167, 0.0
        %v3184 = vmax.f32 %v3168, 0.0
        %v3185 = vmax.f32 %v3169, 0.0
        %v3186 = vmax.f32 %v3170, 0.0
        %v3187 = vmax.f32 %v3171, 0.0
        %v3188 = vmax.f32 %v3172, 0.0
        %v3189 = vsel %vm383, %v3173, inf
        %3190 = vmin.xlane.f32.xlu0 %v3189
        %v3191 = vpop.xlane.xlu0 %3190
        %v3192 = vsel %vm383, %v3174, inf
        %3193 = vmin.xlane.f32.xlu0 %v3192
        %v3194 = vpop.xlane.xlu0 %3193
        %v3195 = vsel %vm383, %v3175, inf
        %3196 = vmin.xlane.f32.xlu0 %v3195
        %v3197 = vpop.xlane.xlu0 %3196
        %v3198 = vsel %vm383, %v3176, inf
        %3199 = vmin.xlane.f32.xlu0 %v3198
        %v3200 = vpop.xlane.xlu0 %3199
        %v3201 = vsel %vm383, %v3177, inf
        %3202 = vmin.xlane.f32.xlu0 %v3201
        %v3203 = vpop.xlane.xlu0 %3202
        %v3204 = vsel %vm383, %v3178, inf
        %3205 = vmin.xlane.f32.xlu0 %v3204
        %v3206 = vpop.xlane.xlu0 %3205
        %v3207 = vsel %vm383, %v3179, inf
        %3208 = vmin.xlane.f32.xlu0 %v3207
        %v3209 = vpop.xlane.xlu0 %3208
        %v3210 = vsel %vm383, %v3180, inf
        %3211 = vmin.xlane.f32.xlu0 %v3210
        %v3212 = vpop.xlane.xlu0 %3211
        %v3213 = vsel %vm383, %v3181, inf
        %3214 = vmin.xlane.f32.xlu0 %v3213
        %v3215 = vpop.xlane.xlu0 %3214
        %v3216 = vsel %vm383, %v3182, inf
        %3217 = vmin.xlane.f32.xlu0 %v3216
        %v3218 = vpop.xlane.xlu0 %3217
        %v3219 = vsel %vm383, %v3183, inf
        %3220 = vmin.xlane.f32.xlu0 %v3219
        %v3221 = vpop.xlane.xlu0 %3220
        %v3222 = vsel %vm383, %v3184, inf
        %3223 = vmin.xlane.f32.xlu0 %v3222
        %v3224 = vpop.xlane.xlu0 %3223
        %v3225 = vsel %vm383, %v3185, inf
        %3226 = vmin.xlane.f32.xlu0 %v3225
        %v3227 = vpop.xlane.xlu0 %3226
        %v3228 = vsel %vm383, %v3186, inf
        %3229 = vmin.xlane.f32.xlu0 %v3228
        %v3230 = vpop.xlane.xlu0 %3229
        %v3231 = vsel %vm383, %v3187, inf
        %3232 = vmin.xlane.f32.xlu0 %v3231
        %v3233 = vpop.xlane.xlu0 %3232
        %v3234 = vsel %vm383, %v3188, inf
        %3235 = vmin.xlane.f32.xlu0 %v3234
        %v3236 = vpop.xlane.xlu0 %3235
        %vm3237 = vcmp.eq.f32.partialorder %v3173, %v3191
        %vm3238 = vcmp.eq.f32.partialorder %v3174, %v3194
        %vm3239 = vcmp.eq.f32.partialorder %v3175, %v3197
        %vm3240 = vcmp.eq.f32.partialorder %v3176, %v3200
        %vm3241 = vcmp.eq.f32.partialorder %v3177, %v3203
        %vm3242 = vcmp.eq.f32.partialorder %v3178, %v3206
        %vm3243 = vcmp.eq.f32.partialorder %v3179, %v3209
        %vm3244 = vcmp.eq.f32.partialorder %v3180, %v3212
        %vm3245 = vcmp.eq.f32.partialorder %v3181, %v3215
        %vm3246 = vcmp.eq.f32.partialorder %v3182, %v3218
        %vm3247 = vcmp.eq.f32.partialorder %v3183, %v3221
        %vm3248 = vcmp.eq.f32.partialorder %v3184, %v3224
        %vm3249 = vcmp.eq.f32.partialorder %v3185, %v3227
        %vm3250 = vcmp.eq.f32.partialorder %v3186, %v3230
        %vm3251 = vcmp.eq.f32.partialorder %v3187, %v3233
        %vm3252 = vcmp.eq.f32.partialorder %v3188, %v3236
        %v3253 = vrsqrt.pop %v3191
        %v3254 = vmul.f32 %v3253, %v3191
        %v3255 = vmul.f32 %v3254, %v3253
        %v3256 = vmul.f32 0.5, %v3255
        %v3257 = vsub.f32 1.5, %v3256
        %v3258 = vmul.f32 %v3253, %v3257
        %v3259 = vmul.f32 %v3191, %v3258
        %vm3260 = vcmp.eq.f32.partialorder %v3191, inf
        %v3261 = vsel %vm3260, %v3191, %v3259
        %vm3262 = vcmp.eq.f32.partialorder %v3191, 0.0
        %v3263 = vand.u32 %v3191, 2147483648
        %v3264 = vsel %vm3262, %v3263, %v3261
        %v3265 = vrsqrt.pop %v3194
        %v3266 = vmul.f32 %v3265, %v3194
        %v3267 = vmul.f32 %v3266, %v3265
        %v3268 = vmul.f32 0.5, %v3267
        %v3269 = vsub.f32 1.5, %v3268
        %v3270 = vmul.f32 %v3265, %v3269
        %v3271 = vmul.f32 %v3194, %v3270
        %vm3272 = vcmp.eq.f32.partialorder %v3194, inf
        %v3273 = vsel %vm3272, %v3194, %v3271
        %vm3274 = vcmp.eq.f32.partialorder %v3194, 0.0
        %v3275 = vand.u32 %v3194, 2147483648
        %v3276 = vsel %vm3274, %v3275, %v3273
        %v3277 = vrsqrt.pop %v3197
        %v3278 = vmul.f32 %v3277, %v3197
        %v3279 = vmul.f32 %v3278, %v3277
        %v3280 = vmul.f32 0.5, %v3279
        %v3281 = vsub.f32 1.5, %v3280
        %v3282 = vmul.f32 %v3277, %v3281
        %v3283 = vmul.f32 %v3197, %v3282
        %vm3284 = vcmp.eq.f32.partialorder %v3197, inf
        %v3285 = vsel %vm3284, %v3197, %v3283
        %vm3286 = vcmp.eq.f32.partialorder %v3197, 0.0
        %v3287 = vand.u32 %v3197, 2147483648
        %v3288 = vsel %vm3286, %v3287, %v3285
        %v3289 = vrsqrt.pop %v3200
        %v3290 = vmul.f32 %v3289, %v3200
        %v3291 = vmul.f32 %v3290, %v3289
        %v3292 = vmul.f32 0.5, %v3291
        %v3293 = vsub.f32 1.5, %v3292
        %v3294 = vmul.f32 %v3289, %v3293
        %v3295 = vmul.f32 %v3200, %v3294
        %vm3296 = vcmp.eq.f32.partialorder %v3200, inf
        %v3297 = vsel %vm3296, %v3200, %v3295
        %vm3298 = vcmp.eq.f32.partialorder %v3200, 0.0
        %v3299 = vand.u32 %v3200, 2147483648
        %v3300 = vsel %vm3298, %v3299, %v3297
        %v3301 = vrsqrt.pop %v3203
        %v3302 = vmul.f32 %v3301, %v3203
        %v3303 = vmul.f32 %v3302, %v3301
        %v3304 = vmul.f32 0.5, %v3303
        %v3305 = vsub.f32 1.5, %v3304
        %v3306 = vmul.f32 %v3301, %v3305
        %v3307 = vmul.f32 %v3203, %v3306
        %vm3308 = vcmp.eq.f32.partialorder %v3203, inf
        %v3309 = vsel %vm3308, %v3203, %v3307
        %vm3310 = vcmp.eq.f32.partialorder %v3203, 0.0
        %v3311 = vand.u32 %v3203, 2147483648
        %v3312 = vsel %vm3310, %v3311, %v3309
        %v3313 = vrsqrt.pop %v3206
        %v3314 = vmul.f32 %v3313, %v3206
        %v3315 = vmul.f32 %v3314, %v3313
        %v3316 = vmul.f32 0.5, %v3315
        %v3317 = vsub.f32 1.5, %v3316
        %v3318 = vmul.f32 %v3313, %v3317
        %v3319 = vmul.f32 %v3206, %v3318
        %vm3320 = vcmp.eq.f32.partialorder %v3206, inf
        %v3321 = vsel %vm3320, %v3206, %v3319
        %vm3322 = vcmp.eq.f32.partialorder %v3206, 0.0
        %v3323 = vand.u32 %v3206, 2147483648
        %v3324 = vsel %vm3322, %v3323, %v3321
        %v3325 = vrsqrt.pop %v3209
        %v3326 = vmul.f32 %v3325, %v3209
        %v3327 = vmul.f32 %v3326, %v3325
        %v3328 = vmul.f32 0.5, %v3327
        %v3329 = vsub.f32 1.5, %v3328
        %v3330 = vmul.f32 %v3325, %v3329
        %v3331 = vmul.f32 %v3209, %v3330
        %vm3332 = vcmp.eq.f32.partialorder %v3209, inf
        %v3333 = vsel %vm3332, %v3209, %v3331
        %vm3334 = vcmp.eq.f32.partialorder %v3209, 0.0
        %v3335 = vand.u32 %v3209, 2147483648
        %v3336 = vsel %vm3334, %v3335, %v3333
        %v3337 = vrsqrt.pop %v3212
        %v3338 = vmul.f32 %v3337, %v3212
        %v3339 = vmul.f32 %v3338, %v3337
        %v3340 = vmul.f32 0.5, %v3339
        %v3341 = vsub.f32 1.5, %v3340
        %v3342 = vmul.f32 %v3337, %v3341
        %v3343 = vmul.f32 %v3212, %v3342
        %vm3344 = vcmp.eq.f32.partialorder %v3212, inf
        %v3345 = vsel %vm3344, %v3212, %v3343
        %vm3346 = vcmp.eq.f32.partialorder %v3212, 0.0
        %v3347 = vand.u32 %v3212, 2147483648
        %v3348 = vsel %vm3346, %v3347, %v3345
        %v3349 = vrsqrt.pop %v3215
        %v3350 = vmul.f32 %v3349, %v3215
        %v3351 = vmul.f32 %v3350, %v3349
        %v3352 = vmul.f32 0.5, %v3351
        %v3353 = vsub.f32 1.5, %v3352
        %v3354 = vmul.f32 %v3349, %v3353
        %v3355 = vmul.f32 %v3215, %v3354
        %vm3356 = vcmp.eq.f32.partialorder %v3215, inf
        %v3357 = vsel %vm3356, %v3215, %v3355
        %vm3358 = vcmp.eq.f32.partialorder %v3215, 0.0
        %v3359 = vand.u32 %v3215, 2147483648
        %v3360 = vsel %vm3358, %v3359, %v3357
        %v3361 = vrsqrt.pop %v3218
        %v3362 = vmul.f32 %v3361, %v3218
        %v3363 = vmul.f32 %v3362, %v3361
        %v3364 = vmul.f32 0.5, %v3363
        %v3365 = vsub.f32 1.5, %v3364
        %v3366 = vmul.f32 %v3361, %v3365
        %v3367 = vmul.f32 %v3218, %v3366
        %vm3368 = vcmp.eq.f32.partialorder %v3218, inf
        %v3369 = vsel %vm3368, %v3218, %v3367
        %vm3370 = vcmp.eq.f32.partialorder %v3218, 0.0
        %v3371 = vand.u32 %v3218, 2147483648
        %v3372 = vsel %vm3370, %v3371, %v3369
        %v3373 = vrsqrt.pop %v3221
        %v3374 = vmul.f32 %v3373, %v3221
        %v3375 = vmul.f32 %v3374, %v3373
        %v3376 = vmul.f32 0.5, %v3375
        %v3377 = vsub.f32 1.5, %v3376
        %v3378 = vmul.f32 %v3373, %v3377
        %v3379 = vmul.f32 %v3221, %v3378
        %vm3380 = vcmp.eq.f32.partialorder %v3221, inf
        %v3381 = vsel %vm3380, %v3221, %v3379
        %vm3382 = vcmp.eq.f32.partialorder %v3221, 0.0
        %v3383 = vand.u32 %v3221, 2147483648
        %v3384 = vsel %vm3382, %v3383, %v3381
        %v3385 = vrsqrt.pop %v3224
        %v3386 = vmul.f32 %v3385, %v3224
        %v3387 = vmul.f32 %v3386, %v3385
        %v3388 = vmul.f32 0.5, %v3387
        %v3389 = vsub.f32 1.5, %v3388
        %v3390 = vmul.f32 %v3385, %v3389
        %v3391 = vmul.f32 %v3224, %v3390
        %vm3392 = vcmp.eq.f32.partialorder %v3224, inf
        %v3393 = vsel %vm3392, %v3224, %v3391
        %vm3394 = vcmp.eq.f32.partialorder %v3224, 0.0
        %v3395 = vand.u32 %v3224, 2147483648
        %v3396 = vsel %vm3394, %v3395, %v3393
        %v3397 = vrsqrt.pop %v3227
        %v3398 = vmul.f32 %v3397, %v3227
        %v3399 = vmul.f32 %v3398, %v3397
        %v3400 = vmul.f32 0.5, %v3399
        %v3401 = vsub.f32 1.5, %v3400
        %v3402 = vmul.f32 %v3397, %v3401
        %v3403 = vmul.f32 %v3227, %v3402
        %vm3404 = vcmp.eq.f32.partialorder %v3227, inf
        %v3405 = vsel %vm3404, %v3227, %v3403
        %vm3406 = vcmp.eq.f32.partialorder %v3227, 0.0
        %v3407 = vand.u32 %v3227, 2147483648
        %v3408 = vsel %vm3406, %v3407, %v3405
        %v3409 = vrsqrt.pop %v3230
        %v3410 = vmul.f32 %v3409, %v3230
        %v3411 = vmul.f32 %v3410, %v3409
        %v3412 = vmul.f32 0.5, %v3411
        %v3413 = vsub.f32 1.5, %v3412
        %v3414 = vmul.f32 %v3409, %v3413
        %v3415 = vmul.f32 %v3230, %v3414
        %vm3416 = vcmp.eq.f32.partialorder %v3230, inf
        %v3417 = vsel %vm3416, %v3230, %v3415
        %vm3418 = vcmp.eq.f32.partialorder %v3230, 0.0
        %v3419 = vand.u32 %v3230, 2147483648
        %v3420 = vsel %vm3418, %v3419, %v3417
        %v3421 = vrsqrt.pop %v3233
        %v3422 = vmul.f32 %v3421, %v3233
        %v3423 = vmul.f32 %v3422, %v3421
        %v3424 = vmul.f32 0.5, %v3423
        %v3425 = vsub.f32 1.5, %v3424
        %v3426 = vmul.f32 %v3421, %v3425
        %v3427 = vmul.f32 %v3233, %v3426
        %vm3428 = vcmp.eq.f32.partialorder %v3233, inf
        %v3429 = vsel %vm3428, %v3233, %v3427
        %vm3430 = vcmp.eq.f32.partialorder %v3233, 0.0
        %v3431 = vand.u32 %v3233, 2147483648
        %v3432 = vsel %vm3430, %v3431, %v3429
        %v3433 = vrsqrt.pop %v3236
        %v3434 = vmul.f32 %v3433, %v3236
        %v3435 = vmul.f32 %v3434, %v3433
        %v3436 = vmul.f32 0.5, %v3435
        %v3437 = vsub.f32 1.5, %v3436
        %v3438 = vmul.f32 %v3433, %v3437
        %v3439 = vmul.f32 %v3236, %v3438
        %vm3440 = vcmp.eq.f32.partialorder %v3236, inf
        %v3441 = vsel %vm3440, %v3236, %v3439
        %vm3442 = vcmp.eq.f32.partialorder %v3236, 0.0
        %v3443 = vand.u32 %v3236, 2147483648
        %v3444 = vsel %vm3442, %v3443, %v3441
        %v3445 = vadd.f32 %v3264, 1e-08
        %v3446 = vadd.f32 %v3276, 1e-08
        %v3447 = vadd.f32 %v3288, 1e-08
        %v3448 = vadd.f32 %v3300, 1e-08
        %v3449 = vadd.f32 %v3312, 1e-08
        %v3450 = vadd.f32 %v3324, 1e-08
        %v3451 = vadd.f32 %v3336, 1e-08
        %v3452 = vadd.f32 %v3348, 1e-08
        %v3453 = vadd.f32 %v3360, 1e-08
        %v3454 = vadd.f32 %v3372, 1e-08
        %v3455 = vadd.f32 %v3384, 1e-08
        %v3456 = vadd.f32 %v3396, 1e-08
        %v3457 = vadd.f32 %v3408, 1e-08
        %v3458 = vadd.f32 %v3420, 1e-08
        %v3459 = vadd.f32 %v3432, 1e-08
        %v3460 = vadd.f32 %v3444, 1e-08
        %v3461 = vrcp.pop %v3445
        %v3462 = vmul.f32 %v3445, %v3461
        %v3463 = vsub.f32 1.0, %v3462
        %v3464 = vmul.f32 %v3461, %v3463
        %v3465 = vadd.f32 %v3461, %v3464
        %vm3466 = vweird.f32 %v3445
        %vm3467 = vweird.f32 %v3461
        %vm3468 = vmor %vm3466, %vm3467
        %v3469 = vsel %vm3468, %v3461, %v3465
        %v3470 = vand.u32 2147483647, %v3445
        %vm3471 = vcmp.eq.f32.partialorder %v3470, 8.507059e+37
        %v3472 = vand.u32 %v3445, 2147483648
        %v3473 = vor.u32 1.1754944e-38, %v3472
        %v3474 = vsel %vm3471, %v3473, %v3469
        %v3475 = vmul.f32 1.0, %v3474
        %v3476 = vrcp.pop %v3446
        %v3477 = vmul.f32 %v3446, %v3476
        %v3478 = vsub.f32 1.0, %v3477
        %v3479 = vmul.f32 %v3476, %v3478
        %v3480 = vadd.f32 %v3476, %v3479
        %vm3481 = vweird.f32 %v3446
        %vm3482 = vweird.f32 %v3476
        %vm3483 = vmor %vm3481, %vm3482
        %v3484 = vsel %vm3483, %v3476, %v3480
        %v3485 = vand.u32 2147483647, %v3446
        %vm3486 = vcmp.eq.f32.partialorder %v3485, 8.507059e+37
        %v3487 = vand.u32 %v3446, 2147483648
        %v3488 = vor.u32 1.1754944e-38, %v3487
        %v3489 = vsel %vm3486, %v3488, %v3484
        %v3490 = vmul.f32 1.0, %v3489
        %v3491 = vrcp.pop %v3447
        %v3492 = vmul.f32 %v3447, %v3491
        %v3493 = vsub.f32 1.0, %v3492
        %v3494 = vmul.f32 %v3491, %v3493
        %v3495 = vadd.f32 %v3491, %v3494
        %vm3496 = vweird.f32 %v3447
        %vm3497 = vweird.f32 %v3491
        %vm3498 = vmor %vm3496, %vm3497
        %v3499 = vsel %vm3498, %v3491, %v3495
        %v3500 = vand.u32 2147483647, %v3447
        %vm3501 = vcmp.eq.f32.partialorder %v3500, 8.507059e+37
        %v3502 = vand.u32 %v3447, 2147483648
        %v3503 = vor.u32 1.1754944e-38, %v3502
        %v3504 = vsel %vm3501, %v3503, %v3499
        %v3505 = vmul.f32 1.0, %v3504
        %v3506 = vrcp.pop %v3448
        %v3507 = vmul.f32 %v3448, %v3506
        %v3508 = vsub.f32 1.0, %v3507
        %v3509 = vmul.f32 %v3506, %v3508
        %v3510 = vadd.f32 %v3506, %v3509
        %vm3511 = vweird.f32 %v3448
        %vm3512 = vweird.f32 %v3506
        %vm3513 = vmor %vm3511, %vm3512
        %v3514 = vsel %vm3513, %v3506, %v3510
        %v3515 = vand.u32 2147483647, %v3448
        %vm3516 = vcmp.eq.f32.partialorder %v3515, 8.507059e+37
        %v3517 = vand.u32 %v3448, 2147483648
        %v3518 = vor.u32 1.1754944e-38, %v3517
        %v3519 = vsel %vm3516, %v3518, %v3514
        %v3520 = vmul.f32 1.0, %v3519
        %v3521 = vrcp.pop %v3449
        %v3522 = vmul.f32 %v3449, %v3521
        %v3523 = vsub.f32 1.0, %v3522
        %v3524 = vmul.f32 %v3521, %v3523
        %v3525 = vadd.f32 %v3521, %v3524
        %vm3526 = vweird.f32 %v3449
        %vm3527 = vweird.f32 %v3521
        %vm3528 = vmor %vm3526, %vm3527
        %v3529 = vsel %vm3528, %v3521, %v3525
        %v3530 = vand.u32 2147483647, %v3449
        %vm3531 = vcmp.eq.f32.partialorder %v3530, 8.507059e+37
        %v3532 = vand.u32 %v3449, 2147483648
        %v3533 = vor.u32 1.1754944e-38, %v3532
        %v3534 = vsel %vm3531, %v3533, %v3529
        %v3535 = vmul.f32 1.0, %v3534
        %v3536 = vrcp.pop %v3450
        %v3537 = vmul.f32 %v3450, %v3536
        %v3538 = vsub.f32 1.0, %v3537
        %v3539 = vmul.f32 %v3536, %v3538
        %v3540 = vadd.f32 %v3536, %v3539
        %vm3541 = vweird.f32 %v3450
        %vm3542 = vweird.f32 %v3536
        %vm3543 = vmor %vm3541, %vm3542
        %v3544 = vsel %vm3543, %v3536, %v3540
        %v3545 = vand.u32 2147483647, %v3450
        %vm3546 = vcmp.eq.f32.partialorder %v3545, 8.507059e+37
        %v3547 = vand.u32 %v3450, 2147483648
        %v3548 = vor.u32 1.1754944e-38, %v3547
        %v3549 = vsel %vm3546, %v3548, %v3544
        %v3550 = vmul.f32 1.0, %v3549
        %v3551 = vrcp.pop %v3451
        %v3552 = vmul.f32 %v3451, %v3551
        %v3553 = vsub.f32 1.0, %v3552
        %v3554 = vmul.f32 %v3551, %v3553
        %v3555 = vadd.f32 %v3551, %v3554
        %vm3556 = vweird.f32 %v3451
        %vm3557 = vweird.f32 %v3551
        %vm3558 = vmor %vm3556, %vm3557
        %v3559 = vsel %vm3558, %v3551, %v3555
        %v3560 = vand.u32 2147483647, %v3451
        %vm3561 = vcmp.eq.f32.partialorder %v3560, 8.507059e+37
        %v3562 = vand.u32 %v3451, 2147483648
        %v3563 = vor.u32 1.1754944e-38, %v3562
        %v3564 = vsel %vm3561, %v3563, %v3559
        %v3565 = vmul.f32 1.0, %v3564
        %v3566 = vrcp.pop %v3452
        %v3567 = vmul.f32 %v3452, %v3566
        %v3568 = vsub.f32 1.0, %v3567
        %v3569 = vmul.f32 %v3566, %v3568
        %v3570 = vadd.f32 %v3566, %v3569
        %vm3571 = vweird.f32 %v3452
        %vm3572 = vweird.f32 %v3566
        %vm3573 = vmor %vm3571, %vm3572
        %v3574 = vsel %vm3573, %v3566, %v3570
        %v3575 = vand.u32 2147483647, %v3452
        %vm3576 = vcmp.eq.f32.partialorder %v3575, 8.507059e+37
        %v3577 = vand.u32 %v3452, 2147483648
        %v3578 = vor.u32 1.1754944e-38, %v3577
        %v3579 = vsel %vm3576, %v3578, %v3574
        %v3580 = vmul.f32 1.0, %v3579
        %v3581 = vrcp.pop %v3453
        %v3582 = vmul.f32 %v3453, %v3581
        %v3583 = vsub.f32 1.0, %v3582
        %v3584 = vmul.f32 %v3581, %v3583
        %v3585 = vadd.f32 %v3581, %v3584
        %vm3586 = vweird.f32 %v3453
        %vm3587 = vweird.f32 %v3581
        %vm3588 = vmor %vm3586, %vm3587
        %v3589 = vsel %vm3588, %v3581, %v3585
        %v3590 = vand.u32 2147483647, %v3453
        %vm3591 = vcmp.eq.f32.partialorder %v3590, 8.507059e+37
        %v3592 = vand.u32 %v3453, 2147483648
        %v3593 = vor.u32 1.1754944e-38, %v3592
        %v3594 = vsel %vm3591, %v3593, %v3589
        %v3595 = vmul.f32 1.0, %v3594
        %v3596 = vrcp.pop %v3454
        %v3597 = vmul.f32 %v3454, %v3596
        %v3598 = vsub.f32 1.0, %v3597
        %v3599 = vmul.f32 %v3596, %v3598
        %v3600 = vadd.f32 %v3596, %v3599
        %vm3601 = vweird.f32 %v3454
        %vm3602 = vweird.f32 %v3596
        %vm3603 = vmor %vm3601, %vm3602
        %v3604 = vsel %vm3603, %v3596, %v3600
        %v3605 = vand.u32 2147483647, %v3454
        %vm3606 = vcmp.eq.f32.partialorder %v3605, 8.507059e+37
        %v3607 = vand.u32 %v3454, 2147483648
        %v3608 = vor.u32 1.1754944e-38, %v3607
        %v3609 = vsel %vm3606, %v3608, %v3604
        %v3610 = vmul.f32 1.0, %v3609
        %v3611 = vrcp.pop %v3455
        %v3612 = vmul.f32 %v3455, %v3611
        %v3613 = vsub.f32 1.0, %v3612
        %v3614 = vmul.f32 %v3611, %v3613
        %v3615 = vadd.f32 %v3611, %v3614
        %vm3616 = vweird.f32 %v3455
        %vm3617 = vweird.f32 %v3611
        %vm3618 = vmor %vm3616, %vm3617
        %v3619 = vsel %vm3618, %v3611, %v3615
        %v3620 = vand.u32 2147483647, %v3455
        %vm3621 = vcmp.eq.f32.partialorder %v3620, 8.507059e+37
        %v3622 = vand.u32 %v3455, 2147483648
        %v3623 = vor.u32 1.1754944e-38, %v3622
        %v3624 = vsel %vm3621, %v3623, %v3619
        %v3625 = vmul.f32 1.0, %v3624
        %v3626 = vrcp.pop %v3456
        %v3627 = vmul.f32 %v3456, %v3626
        %v3628 = vsub.f32 1.0, %v3627
        %v3629 = vmul.f32 %v3626, %v3628
        %v3630 = vadd.f32 %v3626, %v3629
        %vm3631 = vweird.f32 %v3456
        %vm3632 = vweird.f32 %v3626
        %vm3633 = vmor %vm3631, %vm3632
        %v3634 = vsel %vm3633, %v3626, %v3630
        %v3635 = vand.u32 2147483647, %v3456
        %vm3636 = vcmp.eq.f32.partialorder %v3635, 8.507059e+37
        %v3637 = vand.u32 %v3456, 2147483648
        %v3638 = vor.u32 1.1754944e-38, %v3637
        %v3639 = vsel %vm3636, %v3638, %v3634
        %v3640 = vmul.f32 1.0, %v3639
        %v3641 = vrcp.pop %v3457
        %v3642 = vmul.f32 %v3457, %v3641
        %v3643 = vsub.f32 1.0, %v3642
        %v3644 = vmul.f32 %v3641, %v3643
        %v3645 = vadd.f32 %v3641, %v3644
        %vm3646 = vweird.f32 %v3457
        %vm3647 = vweird.f32 %v3641
        %vm3648 = vmor %vm3646, %vm3647
        %v3649 = vsel %vm3648, %v3641, %v3645
        %v3650 = vand.u32 2147483647, %v3457
        %vm3651 = vcmp.eq.f32.partialorder %v3650, 8.507059e+37
        %v3652 = vand.u32 %v3457, 2147483648
        %v3653 = vor.u32 1.1754944e-38, %v3652
        %v3654 = vsel %vm3651, %v3653, %v3649
        %v3655 = vmul.f32 1.0, %v3654
        %v3656 = vrcp.pop %v3458
        %v3657 = vmul.f32 %v3458, %v3656
        %v3658 = vsub.f32 1.0, %v3657
        %v3659 = vmul.f32 %v3656, %v3658
        %v3660 = vadd.f32 %v3656, %v3659
        %vm3661 = vweird.f32 %v3458
        %vm3662 = vweird.f32 %v3656
        %vm3663 = vmor %vm3661, %vm3662
        %v3664 = vsel %vm3663, %v3656, %v3660
        %v3665 = vand.u32 2147483647, %v3458
        %vm3666 = vcmp.eq.f32.partialorder %v3665, 8.507059e+37
        %v3667 = vand.u32 %v3458, 2147483648
        %v3668 = vor.u32 1.1754944e-38, %v3667
        %v3669 = vsel %vm3666, %v3668, %v3664
        %v3670 = vmul.f32 1.0, %v3669
        %v3671 = vrcp.pop %v3459
        %v3672 = vmul.f32 %v3459, %v3671
        %v3673 = vsub.f32 1.0, %v3672
        %v3674 = vmul.f32 %v3671, %v3673
        %v3675 = vadd.f32 %v3671, %v3674
        %vm3676 = vweird.f32 %v3459
        %vm3677 = vweird.f32 %v3671
        %vm3678 = vmor %vm3676, %vm3677
        %v3679 = vsel %vm3678, %v3671, %v3675
        %v3680 = vand.u32 2147483647, %v3459
        %vm3681 = vcmp.eq.f32.partialorder %v3680, 8.507059e+37
        %v3682 = vand.u32 %v3459, 2147483648
        %v3683 = vor.u32 1.1754944e-38, %v3682
        %v3684 = vsel %vm3681, %v3683, %v3679
        %v3685 = vmul.f32 1.0, %v3684
        %v3686 = vrcp.pop %v3460
        %v3687 = vmul.f32 %v3460, %v3686
        %v3688 = vsub.f32 1.0, %v3687
        %v3689 = vmul.f32 %v3686, %v3688
        %v3690 = vadd.f32 %v3686, %v3689
        %vm3691 = vweird.f32 %v3460
        %vm3692 = vweird.f32 %v3686
        %vm3693 = vmor %vm3691, %vm3692
        %v3694 = vsel %vm3693, %v3686, %v3690
        %v3695 = vand.u32 2147483647, %v3460
        %vm3696 = vcmp.eq.f32.partialorder %v3695, 8.507059e+37
        %v3697 = vand.u32 %v3460, 2147483648
        %v3698 = vor.u32 1.1754944e-38, %v3697
        %v3699 = vsel %vm3696, %v3698, %v3694
        %v3700 = vmul.f32 1.0, %v3699
        %v3701 = vsel %vm3237, %v3475, 0.0
        %v3702 = vsel %vm3238, %v3490, 0.0
        %v3703 = vsel %vm3239, %v3505, 0.0
        %v3704 = vsel %vm3240, %v3520, 0.0
        %v3705 = vsel %vm3241, %v3535, 0.0
        %v3706 = vsel %vm3242, %v3550, 0.0
        %v3707 = vsel %vm3243, %v3565, 0.0
        %v3708 = vsel %vm3244, %v3580, 0.0
        %v3709 = vsel %vm3245, %v3595, 0.0
        %v3710 = vsel %vm3246, %v3610, 0.0
        %v3711 = vsel %vm3247, %v3625, 0.0
        %v3712 = vsel %vm3248, %v3640, 0.0
        %v3713 = vsel %vm3249, %v3655, 0.0
        %v3714 = vsel %vm3250, %v3670, 0.0
        %v3715 = vsel %vm3251, %v3685, 0.0
        %v3716 = vsel %vm3252, %v3700, 0.0
        %v3717 = vadd.f32 %v3701, 0.0
        %v3718 = vadd.f32 %v3702, 0.0
        %v3719 = vadd.f32 %v3703, 0.0
        %v3720 = vadd.f32 %v3704, 0.0
        %v3721 = vadd.f32 %v3705, 0.0
        %v3722 = vadd.f32 %v3706, 0.0
        %v3723 = vadd.f32 %v3707, 0.0
        %v3724 = vadd.f32 %v3708, 0.0
        %v3725 = vadd.f32 %v3709, 0.0
        %v3726 = vadd.f32 %v3710, 0.0
        %v3727 = vadd.f32 %v3711, 0.0
        %v3728 = vadd.f32 %v3712, 0.0
        %v3729 = vadd.f32 %v3713, 0.0
        %v3730 = vadd.f32 %v3714, 0.0
        %v3731 = vadd.f32 %v3715, 0.0
        %v3732 = vadd.f32 %v3716, 0.0
        %v3733 = vadd.f32 %v3475, 0.0
        %v3734 = vadd.f32 %v3490, 0.0
        %v3735 = vadd.f32 %v3505, 0.0
        %v3736 = vadd.f32 %v3520, 0.0
        %v3737 = vadd.f32 %v3535, 0.0
        %v3738 = vadd.f32 %v3550, 0.0
        %v3739 = vadd.f32 %v3565, 0.0
        %v3740 = vadd.f32 %v3580, 0.0
        %v3741 = vadd.f32 %v3595, 0.0
        %v3742 = vadd.f32 %v3610, 0.0
        %v3743 = vadd.f32 %v3625, 0.0
        %v3744 = vadd.f32 %v3640, 0.0
        %v3745 = vadd.f32 %v3655, 0.0
        %v3746 = vadd.f32 %v3670, 0.0
        %v3747 = vadd.f32 %v3685, 0.0
        %v3748 = vadd.f32 %v3700, 0.0
        %v3749 = vsel %vm3237, inf, %v3173
        %v3750 = vsel %vm3238, inf, %v3174
        %v3751 = vsel %vm3239, inf, %v3175
        %v3752 = vsel %vm3240, inf, %v3176
        %v3753 = vsel %vm3241, inf, %v3177
        %v3754 = vsel %vm3242, inf, %v3178
        %v3755 = vsel %vm3243, inf, %v3179
        %v3756 = vsel %vm3244, inf, %v3180
        %v3757 = vsel %vm3245, inf, %v3181
        %v3758 = vsel %vm3246, inf, %v3182
        %v3759 = vsel %vm3247, inf, %v3183
        %v3760 = vsel %vm3248, inf, %v3184
        %v3761 = vsel %vm3249, inf, %v3185
        %v3762 = vsel %vm3250, inf, %v3186
        %v3763 = vsel %vm3251, inf, %v3187
        %v3764 = vsel %vm3252, inf, %v3188
        %v3765 = vsel %vm383, %v3749, inf
        %3766 = vmin.xlane.f32.xlu0 %v3765
        %v3767 = vpop.xlane.xlu0 %3766
        %v3768 = vsel %vm383, %v3750, inf
        %3769 = vmin.xlane.f32.xlu0 %v3768
        %v3770 = vpop.xlane.xlu0 %3769
        %v3771 = vsel %vm383, %v3751, inf
        %3772 = vmin.xlane.f32.xlu0 %v3771
        %v3773 = vpop.xlane.xlu0 %3772
        %v3774 = vsel %vm383, %v3752, inf
        %3775 = vmin.xlane.f32.xlu0 %v3774
        %v3776 = vpop.xlane.xlu0 %3775
        %v3777 = vsel %vm383, %v3753, inf
        %3778 = vmin.xlane.f32.xlu0 %v3777
        %v3779 = vpop.xlane.xlu0 %3778
        %v3780 = vsel %vm383, %v3754, inf
        %3781 = vmin.xlane.f32.xlu0 %v3780
        %v3782 = vpop.xlane.xlu0 %3781
        %v3783 = vsel %vm383, %v3755, inf
        %3784 = vmin.xlane.f32.xlu0 %v3783
        %v3785 = vpop.xlane.xlu0 %3784
        %v3786 = vsel %vm383, %v3756, inf
        %3787 = vmin.xlane.f32.xlu0 %v3786
        %v3788 = vpop.xlane.xlu0 %3787
        %v3789 = vsel %vm383, %v3757, inf
        %3790 = vmin.xlane.f32.xlu0 %v3789
        %v3791 = vpop.xlane.xlu0 %3790
        %v3792 = vsel %vm383, %v3758, inf
        %3793 = vmin.xlane.f32.xlu0 %v3792
        %v3794 = vpop.xlane.xlu0 %3793
        %v3795 = vsel %vm383, %v3759, inf
        %3796 = vmin.xlane.f32.xlu0 %v3795
        %v3797 = vpop.xlane.xlu0 %3796
        %v3798 = vsel %vm383, %v3760, inf
        %3799 = vmin.xlane.f32.xlu0 %v3798
        %v3800 = vpop.xlane.xlu0 %3799
        %v3801 = vsel %vm383, %v3761, inf
        %3802 = vmin.xlane.f32.xlu0 %v3801
        %v3803 = vpop.xlane.xlu0 %3802
        %v3804 = vsel %vm383, %v3762, inf
        %3805 = vmin.xlane.f32.xlu0 %v3804
        %v3806 = vpop.xlane.xlu0 %3805
        %v3807 = vsel %vm383, %v3763, inf
        %3808 = vmin.xlane.f32.xlu0 %v3807
        %v3809 = vpop.xlane.xlu0 %3808
        %v3810 = vsel %vm383, %v3764, inf
        %3811 = vmin.xlane.f32.xlu0 %v3810
        %v3812 = vpop.xlane.xlu0 %3811
        %vm3813 = vcmp.eq.f32.partialorder %v3749, %v3767
        %vm3814 = vcmp.eq.f32.partialorder %v3750, %v3770
        %vm3815 = vcmp.eq.f32.partialorder %v3751, %v3773
        %vm3816 = vcmp.eq.f32.partialorder %v3752, %v3776
        %vm3817 = vcmp.eq.f32.partialorder %v3753, %v3779
        %vm3818 = vcmp.eq.f32.partialorder %v3754, %v3782
        %vm3819 = vcmp.eq.f32.partialorder %v3755, %v3785
        %vm3820 = vcmp.eq.f32.partialorder %v3756, %v3788
        %vm3821 = vcmp.eq.f32.partialorder %v3757, %v3791
        %vm3822 = vcmp.eq.f32.partialorder %v3758, %v3794
        %vm3823 = vcmp.eq.f32.partialorder %v3759, %v3797
        %vm3824 = vcmp.eq.f32.partialorder %v3760, %v3800
        %vm3825 = vcmp.eq.f32.partialorder %v3761, %v3803
        %vm3826 = vcmp.eq.f32.partialorder %v3762, %v3806
        %vm3827 = vcmp.eq.f32.partialorder %v3763, %v3809
        %vm3828 = vcmp.eq.f32.partialorder %v3764, %v3812
        %v3829 = vrsqrt.pop %v3767
        %v3830 = vmul.f32 %v3829, %v3767
        %v3831 = vmul.f32 %v3830, %v3829
        %v3832 = vmul.f32 0.5, %v3831
        %v3833 = vsub.f32 1.5, %v3832
        %v3834 = vmul.f32 %v3829, %v3833
        %v3835 = vmul.f32 %v3767, %v3834
        %vm3836 = vcmp.eq.f32.partialorder %v3767, inf
        %v3837 = vsel %vm3836, %v3767, %v3835
        %vm3838 = vcmp.eq.f32.partialorder %v3767, 0.0
        %v3839 = vand.u32 %v3767, 2147483648
        %v3840 = vsel %vm3838, %v3839, %v3837
        %v3841 = vrsqrt.pop %v3770
        %v3842 = vmul.f32 %v3841, %v3770
        %v3843 = vmul.f32 %v3842, %v3841
        %v3844 = vmul.f32 0.5, %v3843
        %v3845 = vsub.f32 1.5, %v3844
        %v3846 = vmul.f32 %v3841, %v3845
        %v3847 = vmul.f32 %v3770, %v3846
        %vm3848 = vcmp.eq.f32.partialorder %v3770, inf
        %v3849 = vsel %vm3848, %v3770, %v3847
        %vm3850 = vcmp.eq.f32.partialorder %v3770, 0.0
        %v3851 = vand.u32 %v3770, 2147483648
        %v3852 = vsel %vm3850, %v3851, %v3849
        %v3853 = vrsqrt.pop %v3773
        %v3854 = vmul.f32 %v3853, %v3773
        %v3855 = vmul.f32 %v3854, %v3853
        %v3856 = vmul.f32 0.5, %v3855
        %v3857 = vsub.f32 1.5, %v3856
        %v3858 = vmul.f32 %v3853, %v3857
        %v3859 = vmul.f32 %v3773, %v3858
        %vm3860 = vcmp.eq.f32.partialorder %v3773, inf
        %v3861 = vsel %vm3860, %v3773, %v3859
        %vm3862 = vcmp.eq.f32.partialorder %v3773, 0.0
        %v3863 = vand.u32 %v3773, 2147483648
        %v3864 = vsel %vm3862, %v3863, %v3861
        %v3865 = vrsqrt.pop %v3776
        %v3866 = vmul.f32 %v3865, %v3776
        %v3867 = vmul.f32 %v3866, %v3865
        %v3868 = vmul.f32 0.5, %v3867
        %v3869 = vsub.f32 1.5, %v3868
        %v3870 = vmul.f32 %v3865, %v3869
        %v3871 = vmul.f32 %v3776, %v3870
        %vm3872 = vcmp.eq.f32.partialorder %v3776, inf
        %v3873 = vsel %vm3872, %v3776, %v3871
        %vm3874 = vcmp.eq.f32.partialorder %v3776, 0.0
        %v3875 = vand.u32 %v3776, 2147483648
        %v3876 = vsel %vm3874, %v3875, %v3873
        %v3877 = vrsqrt.pop %v3779
        %v3878 = vmul.f32 %v3877, %v3779
        %v3879 = vmul.f32 %v3878, %v3877
        %v3880 = vmul.f32 0.5, %v3879
        %v3881 = vsub.f32 1.5, %v3880
        %v3882 = vmul.f32 %v3877, %v3881
        %v3883 = vmul.f32 %v3779, %v3882
        %vm3884 = vcmp.eq.f32.partialorder %v3779, inf
        %v3885 = vsel %vm3884, %v3779, %v3883
        %vm3886 = vcmp.eq.f32.partialorder %v3779, 0.0
        %v3887 = vand.u32 %v3779, 2147483648
        %v3888 = vsel %vm3886, %v3887, %v3885
        %v3889 = vrsqrt.pop %v3782
        %v3890 = vmul.f32 %v3889, %v3782
        %v3891 = vmul.f32 %v3890, %v3889
        %v3892 = vmul.f32 0.5, %v3891
        %v3893 = vsub.f32 1.5, %v3892
        %v3894 = vmul.f32 %v3889, %v3893
        %v3895 = vmul.f32 %v3782, %v3894
        %vm3896 = vcmp.eq.f32.partialorder %v3782, inf
        %v3897 = vsel %vm3896, %v3782, %v3895
        %vm3898 = vcmp.eq.f32.partialorder %v3782, 0.0
        %v3899 = vand.u32 %v3782, 2147483648
        %v3900 = vsel %vm3898, %v3899, %v3897
        %v3901 = vrsqrt.pop %v3785
        %v3902 = vmul.f32 %v3901, %v3785
        %v3903 = vmul.f32 %v3902, %v3901
        %v3904 = vmul.f32 0.5, %v3903
        %v3905 = vsub.f32 1.5, %v3904
        %v3906 = vmul.f32 %v3901, %v3905
        %v3907 = vmul.f32 %v3785, %v3906
        %vm3908 = vcmp.eq.f32.partialorder %v3785, inf
        %v3909 = vsel %vm3908, %v3785, %v3907
        %vm3910 = vcmp.eq.f32.partialorder %v3785, 0.0
        %v3911 = vand.u32 %v3785, 2147483648
        %v3912 = vsel %vm3910, %v3911, %v3909
        %v3913 = vrsqrt.pop %v3788
        %v3914 = vmul.f32 %v3913, %v3788
        %v3915 = vmul.f32 %v3914, %v3913
        %v3916 = vmul.f32 0.5, %v3915
        %v3917 = vsub.f32 1.5, %v3916
        %v3918 = vmul.f32 %v3913, %v3917
        %v3919 = vmul.f32 %v3788, %v3918
        %vm3920 = vcmp.eq.f32.partialorder %v3788, inf
        %v3921 = vsel %vm3920, %v3788, %v3919
        %vm3922 = vcmp.eq.f32.partialorder %v3788, 0.0
        %v3923 = vand.u32 %v3788, 2147483648
        %v3924 = vsel %vm3922, %v3923, %v3921
        %v3925 = vrsqrt.pop %v3791
        %v3926 = vmul.f32 %v3925, %v3791
        %v3927 = vmul.f32 %v3926, %v3925
        %v3928 = vmul.f32 0.5, %v3927
        %v3929 = vsub.f32 1.5, %v3928
        %v3930 = vmul.f32 %v3925, %v3929
        %v3931 = vmul.f32 %v3791, %v3930
        %vm3932 = vcmp.eq.f32.partialorder %v3791, inf
        %v3933 = vsel %vm3932, %v3791, %v3931
        %vm3934 = vcmp.eq.f32.partialorder %v3791, 0.0
        %v3935 = vand.u32 %v3791, 2147483648
        %v3936 = vsel %vm3934, %v3935, %v3933
        %v3937 = vrsqrt.pop %v3794
        %v3938 = vmul.f32 %v3937, %v3794
        %v3939 = vmul.f32 %v3938, %v3937
        %v3940 = vmul.f32 0.5, %v3939
        %v3941 = vsub.f32 1.5, %v3940
        %v3942 = vmul.f32 %v3937, %v3941
        %v3943 = vmul.f32 %v3794, %v3942
        %vm3944 = vcmp.eq.f32.partialorder %v3794, inf
        %v3945 = vsel %vm3944, %v3794, %v3943
        %vm3946 = vcmp.eq.f32.partialorder %v3794, 0.0
        %v3947 = vand.u32 %v3794, 2147483648
        %v3948 = vsel %vm3946, %v3947, %v3945
        %v3949 = vrsqrt.pop %v3797
        %v3950 = vmul.f32 %v3949, %v3797
        %v3951 = vmul.f32 %v3950, %v3949
        %v3952 = vmul.f32 0.5, %v3951
        %v3953 = vsub.f32 1.5, %v3952
        %v3954 = vmul.f32 %v3949, %v3953
        %v3955 = vmul.f32 %v3797, %v3954
        %vm3956 = vcmp.eq.f32.partialorder %v3797, inf
        %v3957 = vsel %vm3956, %v3797, %v3955
        %vm3958 = vcmp.eq.f32.partialorder %v3797, 0.0
        %v3959 = vand.u32 %v3797, 2147483648
        %v3960 = vsel %vm3958, %v3959, %v3957
        %v3961 = vrsqrt.pop %v3800
        %v3962 = vmul.f32 %v3961, %v3800
        %v3963 = vmul.f32 %v3962, %v3961
        %v3964 = vmul.f32 0.5, %v3963
        %v3965 = vsub.f32 1.5, %v3964
        %v3966 = vmul.f32 %v3961, %v3965
        %v3967 = vmul.f32 %v3800, %v3966
        %vm3968 = vcmp.eq.f32.partialorder %v3800, inf
        %v3969 = vsel %vm3968, %v3800, %v3967
        %vm3970 = vcmp.eq.f32.partialorder %v3800, 0.0
        %v3971 = vand.u32 %v3800, 2147483648
        %v3972 = vsel %vm3970, %v3971, %v3969
        %v3973 = vrsqrt.pop %v3803
        %v3974 = vmul.f32 %v3973, %v3803
        %v3975 = vmul.f32 %v3974, %v3973
        %v3976 = vmul.f32 0.5, %v3975
        %v3977 = vsub.f32 1.5, %v3976
        %v3978 = vmul.f32 %v3973, %v3977
        %v3979 = vmul.f32 %v3803, %v3978
        %vm3980 = vcmp.eq.f32.partialorder %v3803, inf
        %v3981 = vsel %vm3980, %v3803, %v3979
        %vm3982 = vcmp.eq.f32.partialorder %v3803, 0.0
        %v3983 = vand.u32 %v3803, 2147483648
        %v3984 = vsel %vm3982, %v3983, %v3981
        %v3985 = vrsqrt.pop %v3806
        %v3986 = vmul.f32 %v3985, %v3806
        %v3987 = vmul.f32 %v3986, %v3985
        %v3988 = vmul.f32 0.5, %v3987
        %v3989 = vsub.f32 1.5, %v3988
        %v3990 = vmul.f32 %v3985, %v3989
        %v3991 = vmul.f32 %v3806, %v3990
        %vm3992 = vcmp.eq.f32.partialorder %v3806, inf
        %v3993 = vsel %vm3992, %v3806, %v3991
        %vm3994 = vcmp.eq.f32.partialorder %v3806, 0.0
        %v3995 = vand.u32 %v3806, 2147483648
        %v3996 = vsel %vm3994, %v3995, %v3993
        %v3997 = vrsqrt.pop %v3809
        %v3998 = vmul.f32 %v3997, %v3809
        %v3999 = vmul.f32 %v3998, %v3997
        %v4000 = vmul.f32 0.5, %v3999
        %v4001 = vsub.f32 1.5, %v4000
        %v4002 = vmul.f32 %v3997, %v4001
        %v4003 = vmul.f32 %v3809, %v4002
        %vm4004 = vcmp.eq.f32.partialorder %v3809, inf
        %v4005 = vsel %vm4004, %v3809, %v4003
        %vm4006 = vcmp.eq.f32.partialorder %v3809, 0.0
        %v4007 = vand.u32 %v3809, 2147483648
        %v4008 = vsel %vm4006, %v4007, %v4005
        %v4009 = vrsqrt.pop %v3812
        %v4010 = vmul.f32 %v4009, %v3812
        %v4011 = vmul.f32 %v4010, %v4009
        %v4012 = vmul.f32 0.5, %v4011
        %v4013 = vsub.f32 1.5, %v4012
        %v4014 = vmul.f32 %v4009, %v4013
        %v4015 = vmul.f32 %v3812, %v4014
        %vm4016 = vcmp.eq.f32.partialorder %v3812, inf
        %v4017 = vsel %vm4016, %v3812, %v4015
        %vm4018 = vcmp.eq.f32.partialorder %v3812, 0.0
        %v4019 = vand.u32 %v3812, 2147483648
        %v4020 = vsel %vm4018, %v4019, %v4017
        %v4021 = vadd.f32 %v3840, 1e-08
        %v4022 = vadd.f32 %v3852, 1e-08
        %v4023 = vadd.f32 %v3864, 1e-08
        %v4024 = vadd.f32 %v3876, 1e-08
        %v4025 = vadd.f32 %v3888, 1e-08
        %v4026 = vadd.f32 %v3900, 1e-08
        %v4027 = vadd.f32 %v3912, 1e-08
        %v4028 = vadd.f32 %v3924, 1e-08
        %v4029 = vadd.f32 %v3936, 1e-08
        %v4030 = vadd.f32 %v3948, 1e-08
        %v4031 = vadd.f32 %v3960, 1e-08
        %v4032 = vadd.f32 %v3972, 1e-08
        %v4033 = vadd.f32 %v3984, 1e-08
        %v4034 = vadd.f32 %v3996, 1e-08
        %v4035 = vadd.f32 %v4008, 1e-08
        %v4036 = vadd.f32 %v4020, 1e-08
        %v4037 = vrcp.pop %v4021
        %v4038 = vmul.f32 %v4021, %v4037
        %v4039 = vsub.f32 1.0, %v4038
        %v4040 = vmul.f32 %v4037, %v4039
        %v4041 = vadd.f32 %v4037, %v4040
        %vm4042 = vweird.f32 %v4021
        %vm4043 = vweird.f32 %v4037
        %vm4044 = vmor %vm4042, %vm4043
        %v4045 = vsel %vm4044, %v4037, %v4041
        %v4046 = vand.u32 2147483647, %v4021
        %vm4047 = vcmp.eq.f32.partialorder %v4046, 8.507059e+37
        %v4048 = vand.u32 %v4021, 2147483648
        %v4049 = vor.u32 1.1754944e-38, %v4048
        %v4050 = vsel %vm4047, %v4049, %v4045
        %v4051 = vmul.f32 1.0, %v4050
        %v4052 = vrcp.pop %v4022
        %v4053 = vmul.f32 %v4022, %v4052
        %v4054 = vsub.f32 1.0, %v4053
        %v4055 = vmul.f32 %v4052, %v4054
        %v4056 = vadd.f32 %v4052, %v4055
        %vm4057 = vweird.f32 %v4022
        %vm4058 = vweird.f32 %v4052
        %vm4059 = vmor %vm4057, %vm4058
        %v4060 = vsel %vm4059, %v4052, %v4056
        %v4061 = vand.u32 2147483647, %v4022
        %vm4062 = vcmp.eq.f32.partialorder %v4061, 8.507059e+37
        %v4063 = vand.u32 %v4022, 2147483648
        %v4064 = vor.u32 1.1754944e-38, %v4063
        %v4065 = vsel %vm4062, %v4064, %v4060
        %v4066 = vmul.f32 1.0, %v4065
        %v4067 = vrcp.pop %v4023
        %v4068 = vmul.f32 %v4023, %v4067
        %v4069 = vsub.f32 1.0, %v4068
        %v4070 = vmul.f32 %v4067, %v4069
        %v4071 = vadd.f32 %v4067, %v4070
        %vm4072 = vweird.f32 %v4023
        %vm4073 = vweird.f32 %v4067
        %vm4074 = vmor %vm4072, %vm4073
        %v4075 = vsel %vm4074, %v4067, %v4071
        %v4076 = vand.u32 2147483647, %v4023
        %vm4077 = vcmp.eq.f32.partialorder %v4076, 8.507059e+37
        %v4078 = vand.u32 %v4023, 2147483648
        %v4079 = vor.u32 1.1754944e-38, %v4078
        %v4080 = vsel %vm4077, %v4079, %v4075
        %v4081 = vmul.f32 1.0, %v4080
        %v4082 = vrcp.pop %v4024
        %v4083 = vmul.f32 %v4024, %v4082
        %v4084 = vsub.f32 1.0, %v4083
        %v4085 = vmul.f32 %v4082, %v4084
        %v4086 = vadd.f32 %v4082, %v4085
        %vm4087 = vweird.f32 %v4024
        %vm4088 = vweird.f32 %v4082
        %vm4089 = vmor %vm4087, %vm4088
        %v4090 = vsel %vm4089, %v4082, %v4086
        %v4091 = vand.u32 2147483647, %v4024
        %vm4092 = vcmp.eq.f32.partialorder %v4091, 8.507059e+37
        %v4093 = vand.u32 %v4024, 2147483648
        %v4094 = vor.u32 1.1754944e-38, %v4093
        %v4095 = vsel %vm4092, %v4094, %v4090
        %v4096 = vmul.f32 1.0, %v4095
        %v4097 = vrcp.pop %v4025
        %v4098 = vmul.f32 %v4025, %v4097
        %v4099 = vsub.f32 1.0, %v4098
        %v4100 = vmul.f32 %v4097, %v4099
        %v4101 = vadd.f32 %v4097, %v4100
        %vm4102 = vweird.f32 %v4025
        %vm4103 = vweird.f32 %v4097
        %vm4104 = vmor %vm4102, %vm4103
        %v4105 = vsel %vm4104, %v4097, %v4101
        %v4106 = vand.u32 2147483647, %v4025
        %vm4107 = vcmp.eq.f32.partialorder %v4106, 8.507059e+37
        %v4108 = vand.u32 %v4025, 2147483648
        %v4109 = vor.u32 1.1754944e-38, %v4108
        %v4110 = vsel %vm4107, %v4109, %v4105
        %v4111 = vmul.f32 1.0, %v4110
        %v4112 = vrcp.pop %v4026
        %v4113 = vmul.f32 %v4026, %v4112
        %v4114 = vsub.f32 1.0, %v4113
        %v4115 = vmul.f32 %v4112, %v4114
        %v4116 = vadd.f32 %v4112, %v4115
        %vm4117 = vweird.f32 %v4026
        %vm4118 = vweird.f32 %v4112
        %vm4119 = vmor %vm4117, %vm4118
        %v4120 = vsel %vm4119, %v4112, %v4116
        %v4121 = vand.u32 2147483647, %v4026
        %vm4122 = vcmp.eq.f32.partialorder %v4121, 8.507059e+37
        %v4123 = vand.u32 %v4026, 2147483648
        %v4124 = vor.u32 1.1754944e-38, %v4123
        %v4125 = vsel %vm4122, %v4124, %v4120
        %v4126 = vmul.f32 1.0, %v4125
        %v4127 = vrcp.pop %v4027
        %v4128 = vmul.f32 %v4027, %v4127
        %v4129 = vsub.f32 1.0, %v4128
        %v4130 = vmul.f32 %v4127, %v4129
        %v4131 = vadd.f32 %v4127, %v4130
        %vm4132 = vweird.f32 %v4027
        %vm4133 = vweird.f32 %v4127
        %vm4134 = vmor %vm4132, %vm4133
        %v4135 = vsel %vm4134, %v4127, %v4131
        %v4136 = vand.u32 2147483647, %v4027
        %vm4137 = vcmp.eq.f32.partialorder %v4136, 8.507059e+37
        %v4138 = vand.u32 %v4027, 2147483648
        %v4139 = vor.u32 1.1754944e-38, %v4138
        %v4140 = vsel %vm4137, %v4139, %v4135
        %v4141 = vmul.f32 1.0, %v4140
        %v4142 = vrcp.pop %v4028
        %v4143 = vmul.f32 %v4028, %v4142
        %v4144 = vsub.f32 1.0, %v4143
        %v4145 = vmul.f32 %v4142, %v4144
        %v4146 = vadd.f32 %v4142, %v4145
        %vm4147 = vweird.f32 %v4028
        %vm4148 = vweird.f32 %v4142
        %vm4149 = vmor %vm4147, %vm4148
        %v4150 = vsel %vm4149, %v4142, %v4146
        %v4151 = vand.u32 2147483647, %v4028
        %vm4152 = vcmp.eq.f32.partialorder %v4151, 8.507059e+37
        %v4153 = vand.u32 %v4028, 2147483648
        %v4154 = vor.u32 1.1754944e-38, %v4153
        %v4155 = vsel %vm4152, %v4154, %v4150
        %v4156 = vmul.f32 1.0, %v4155
        %v4157 = vrcp.pop %v4029
        %v4158 = vmul.f32 %v4029, %v4157
        %v4159 = vsub.f32 1.0, %v4158
        %v4160 = vmul.f32 %v4157, %v4159
        %v4161 = vadd.f32 %v4157, %v4160
        %vm4162 = vweird.f32 %v4029
        %vm4163 = vweird.f32 %v4157
        %vm4164 = vmor %vm4162, %vm4163
        %v4165 = vsel %vm4164, %v4157, %v4161
        %v4166 = vand.u32 2147483647, %v4029
        %vm4167 = vcmp.eq.f32.partialorder %v4166, 8.507059e+37
        %v4168 = vand.u32 %v4029, 2147483648
        %v4169 = vor.u32 1.1754944e-38, %v4168
        %v4170 = vsel %vm4167, %v4169, %v4165
        %v4171 = vmul.f32 1.0, %v4170
        %v4172 = vrcp.pop %v4030
        %v4173 = vmul.f32 %v4030, %v4172
        %v4174 = vsub.f32 1.0, %v4173
        %v4175 = vmul.f32 %v4172, %v4174
        %v4176 = vadd.f32 %v4172, %v4175
        %vm4177 = vweird.f32 %v4030
        %vm4178 = vweird.f32 %v4172
        %vm4179 = vmor %vm4177, %vm4178
        %v4180 = vsel %vm4179, %v4172, %v4176
        %v4181 = vand.u32 2147483647, %v4030
        %vm4182 = vcmp.eq.f32.partialorder %v4181, 8.507059e+37
        %v4183 = vand.u32 %v4030, 2147483648
        %v4184 = vor.u32 1.1754944e-38, %v4183
        %v4185 = vsel %vm4182, %v4184, %v4180
        %v4186 = vmul.f32 1.0, %v4185
        %v4187 = vrcp.pop %v4031
        %v4188 = vmul.f32 %v4031, %v4187
        %v4189 = vsub.f32 1.0, %v4188
        %v4190 = vmul.f32 %v4187, %v4189
        %v4191 = vadd.f32 %v4187, %v4190
        %vm4192 = vweird.f32 %v4031
        %vm4193 = vweird.f32 %v4187
        %vm4194 = vmor %vm4192, %vm4193
        %v4195 = vsel %vm4194, %v4187, %v4191
        %v4196 = vand.u32 2147483647, %v4031
        %vm4197 = vcmp.eq.f32.partialorder %v4196, 8.507059e+37
        %v4198 = vand.u32 %v4031, 2147483648
        %v4199 = vor.u32 1.1754944e-38, %v4198
        %v4200 = vsel %vm4197, %v4199, %v4195
        %v4201 = vmul.f32 1.0, %v4200
        %v4202 = vrcp.pop %v4032
        %v4203 = vmul.f32 %v4032, %v4202
        %v4204 = vsub.f32 1.0, %v4203
        %v4205 = vmul.f32 %v4202, %v4204
        %v4206 = vadd.f32 %v4202, %v4205
        %vm4207 = vweird.f32 %v4032
        %vm4208 = vweird.f32 %v4202
        %vm4209 = vmor %vm4207, %vm4208
        %v4210 = vsel %vm4209, %v4202, %v4206
        %v4211 = vand.u32 2147483647, %v4032
        %vm4212 = vcmp.eq.f32.partialorder %v4211, 8.507059e+37
        %v4213 = vand.u32 %v4032, 2147483648
        %v4214 = vor.u32 1.1754944e-38, %v4213
        %v4215 = vsel %vm4212, %v4214, %v4210
        %v4216 = vmul.f32 1.0, %v4215
        %v4217 = vrcp.pop %v4033
        %v4218 = vmul.f32 %v4033, %v4217
        %v4219 = vsub.f32 1.0, %v4218
        %v4220 = vmul.f32 %v4217, %v4219
        %v4221 = vadd.f32 %v4217, %v4220
        %vm4222 = vweird.f32 %v4033
        %vm4223 = vweird.f32 %v4217
        %vm4224 = vmor %vm4222, %vm4223
        %v4225 = vsel %vm4224, %v4217, %v4221
        %v4226 = vand.u32 2147483647, %v4033
        %vm4227 = vcmp.eq.f32.partialorder %v4226, 8.507059e+37
        %v4228 = vand.u32 %v4033, 2147483648
        %v4229 = vor.u32 1.1754944e-38, %v4228
        %v4230 = vsel %vm4227, %v4229, %v4225
        %v4231 = vmul.f32 1.0, %v4230
        %v4232 = vrcp.pop %v4034
        %v4233 = vmul.f32 %v4034, %v4232
        %v4234 = vsub.f32 1.0, %v4233
        %v4235 = vmul.f32 %v4232, %v4234
        %v4236 = vadd.f32 %v4232, %v4235
        %vm4237 = vweird.f32 %v4034
        %vm4238 = vweird.f32 %v4232
        %vm4239 = vmor %vm4237, %vm4238
        %v4240 = vsel %vm4239, %v4232, %v4236
        %v4241 = vand.u32 2147483647, %v4034
        %vm4242 = vcmp.eq.f32.partialorder %v4241, 8.507059e+37
        %v4243 = vand.u32 %v4034, 2147483648
        %v4244 = vor.u32 1.1754944e-38, %v4243
        %v4245 = vsel %vm4242, %v4244, %v4240
        %v4246 = vmul.f32 1.0, %v4245
        %v4247 = vrcp.pop %v4035
        %v4248 = vmul.f32 %v4035, %v4247
        %v4249 = vsub.f32 1.0, %v4248
        %v4250 = vmul.f32 %v4247, %v4249
        %v4251 = vadd.f32 %v4247, %v4250
        %vm4252 = vweird.f32 %v4035
        %vm4253 = vweird.f32 %v4247
        %vm4254 = vmor %vm4252, %vm4253
        %v4255 = vsel %vm4254, %v4247, %v4251
        %v4256 = vand.u32 2147483647, %v4035
        %vm4257 = vcmp.eq.f32.partialorder %v4256, 8.507059e+37
        %v4258 = vand.u32 %v4035, 2147483648
        %v4259 = vor.u32 1.1754944e-38, %v4258
        %v4260 = vsel %vm4257, %v4259, %v4255
        %v4261 = vmul.f32 1.0, %v4260
        %v4262 = vrcp.pop %v4036
        %v4263 = vmul.f32 %v4036, %v4262
        %v4264 = vsub.f32 1.0, %v4263
        %v4265 = vmul.f32 %v4262, %v4264
        %v4266 = vadd.f32 %v4262, %v4265
        %vm4267 = vweird.f32 %v4036
        %vm4268 = vweird.f32 %v4262
        %vm4269 = vmor %vm4267, %vm4268
        %v4270 = vsel %vm4269, %v4262, %v4266
        %v4271 = vand.u32 2147483647, %v4036
        %vm4272 = vcmp.eq.f32.partialorder %v4271, 8.507059e+37
        %v4273 = vand.u32 %v4036, 2147483648
        %v4274 = vor.u32 1.1754944e-38, %v4273
        %v4275 = vsel %vm4272, %v4274, %v4270
        %v4276 = vmul.f32 1.0, %v4275
        %v4277 = vsel %vm3813, %v4051, 0.0
        %v4278 = vsel %vm3814, %v4066, 0.0
        %v4279 = vsel %vm3815, %v4081, 0.0
        %v4280 = vsel %vm3816, %v4096, 0.0
        %v4281 = vsel %vm3817, %v4111, 0.0
        %v4282 = vsel %vm3818, %v4126, 0.0
        %v4283 = vsel %vm3819, %v4141, 0.0
        %v4284 = vsel %vm3820, %v4156, 0.0
        %v4285 = vsel %vm3821, %v4171, 0.0
        %v4286 = vsel %vm3822, %v4186, 0.0
        %v4287 = vsel %vm3823, %v4201, 0.0
        %v4288 = vsel %vm3824, %v4216, 0.0
        %v4289 = vsel %vm3825, %v4231, 0.0
        %v4290 = vsel %vm3826, %v4246, 0.0
        %v4291 = vsel %vm3827, %v4261, 0.0
        %v4292 = vsel %vm3828, %v4276, 0.0
        %v4293 = vadd.f32 %v3717, %v4277
        %v4294 = vadd.f32 %v3718, %v4278
        %v4295 = vadd.f32 %v3719, %v4279
        %v4296 = vadd.f32 %v3720, %v4280
        %v4297 = vadd.f32 %v3721, %v4281
        %v4298 = vadd.f32 %v3722, %v4282
        %v4299 = vadd.f32 %v3723, %v4283
        %v4300 = vadd.f32 %v3724, %v4284
        %v4301 = vadd.f32 %v3725, %v4285
        %v4302 = vadd.f32 %v3726, %v4286
        %v4303 = vadd.f32 %v3727, %v4287
        %v4304 = vadd.f32 %v3728, %v4288
        %v4305 = vadd.f32 %v3729, %v4289
        %v4306 = vadd.f32 %v3730, %v4290
        %v4307 = vadd.f32 %v3731, %v4291
        %v4308 = vadd.f32 %v3732, %v4292
        %v4309 = vadd.f32 %v3733, %v4051
        %v4310 = vadd.f32 %v3734, %v4066
        %v4311 = vadd.f32 %v3735, %v4081
        %v4312 = vadd.f32 %v3736, %v4096
        %v4313 = vadd.f32 %v3737, %v4111
        %v4314 = vadd.f32 %v3738, %v4126
        %v4315 = vadd.f32 %v3739, %v4141
        %v4316 = vadd.f32 %v3740, %v4156
        %v4317 = vadd.f32 %v3741, %v4171
        %v4318 = vadd.f32 %v3742, %v4186
        %v4319 = vadd.f32 %v3743, %v4201
        %v4320 = vadd.f32 %v3744, %v4216
        %v4321 = vadd.f32 %v3745, %v4231
        %v4322 = vadd.f32 %v3746, %v4246
        %v4323 = vadd.f32 %v3747, %v4261
        %v4324 = vadd.f32 %v3748, %v4276
        %v4325 = vsel %vm3813, inf, %v3749
        %v4326 = vsel %vm3814, inf, %v3750
        %v4327 = vsel %vm3815, inf, %v3751
        %v4328 = vsel %vm3816, inf, %v3752
        %v4329 = vsel %vm3817, inf, %v3753
        %v4330 = vsel %vm3818, inf, %v3754
        %v4331 = vsel %vm3819, inf, %v3755
        %v4332 = vsel %vm3820, inf, %v3756
        %v4333 = vsel %vm3821, inf, %v3757
        %v4334 = vsel %vm3822, inf, %v3758
        %v4335 = vsel %vm3823, inf, %v3759
        %v4336 = vsel %vm3824, inf, %v3760
        %v4337 = vsel %vm3825, inf, %v3761
        %v4338 = vsel %vm3826, inf, %v3762
        %v4339 = vsel %vm3827, inf, %v3763
        %v4340 = vsel %vm3828, inf, %v3764
        %v4341 = vsel %vm383, %v4325, inf
        %4342 = vmin.xlane.f32.xlu0 %v4341
        %v4343 = vpop.xlane.xlu0 %4342
        %v4344 = vsel %vm383, %v4326, inf
        %4345 = vmin.xlane.f32.xlu0 %v4344
        %v4346 = vpop.xlane.xlu0 %4345
        %v4347 = vsel %vm383, %v4327, inf
        %4348 = vmin.xlane.f32.xlu0 %v4347
        %v4349 = vpop.xlane.xlu0 %4348
        %v4350 = vsel %vm383, %v4328, inf
        %4351 = vmin.xlane.f32.xlu0 %v4350
        %v4352 = vpop.xlane.xlu0 %4351
        %v4353 = vsel %vm383, %v4329, inf
        %4354 = vmin.xlane.f32.xlu0 %v4353
        %v4355 = vpop.xlane.xlu0 %4354
        %v4356 = vsel %vm383, %v4330, inf
        %4357 = vmin.xlane.f32.xlu0 %v4356
        %v4358 = vpop.xlane.xlu0 %4357
        %v4359 = vsel %vm383, %v4331, inf
        %4360 = vmin.xlane.f32.xlu0 %v4359
        %v4361 = vpop.xlane.xlu0 %4360
        %v4362 = vsel %vm383, %v4332, inf
        %4363 = vmin.xlane.f32.xlu0 %v4362
        %v4364 = vpop.xlane.xlu0 %4363
        %v4365 = vsel %vm383, %v4333, inf
        %4366 = vmin.xlane.f32.xlu0 %v4365
        %v4367 = vpop.xlane.xlu0 %4366
        %v4368 = vsel %vm383, %v4334, inf
        %4369 = vmin.xlane.f32.xlu0 %v4368
        %v4370 = vpop.xlane.xlu0 %4369
        %v4371 = vsel %vm383, %v4335, inf
        %4372 = vmin.xlane.f32.xlu0 %v4371
        %v4373 = vpop.xlane.xlu0 %4372
        %v4374 = vsel %vm383, %v4336, inf
        %4375 = vmin.xlane.f32.xlu0 %v4374
        %v4376 = vpop.xlane.xlu0 %4375
        %v4377 = vsel %vm383, %v4337, inf
        %4378 = vmin.xlane.f32.xlu0 %v4377
        %v4379 = vpop.xlane.xlu0 %4378
        %v4380 = vsel %vm383, %v4338, inf
        %4381 = vmin.xlane.f32.xlu0 %v4380
        %v4382 = vpop.xlane.xlu0 %4381
        %v4383 = vsel %vm383, %v4339, inf
        %4384 = vmin.xlane.f32.xlu0 %v4383
        %v4385 = vpop.xlane.xlu0 %4384
        %v4386 = vsel %vm383, %v4340, inf
        %4387 = vmin.xlane.f32.xlu0 %v4386
        %v4388 = vpop.xlane.xlu0 %4387
        %vm4389 = vcmp.eq.f32.partialorder %v4325, %v4343
        %vm4390 = vcmp.eq.f32.partialorder %v4326, %v4346
        %vm4391 = vcmp.eq.f32.partialorder %v4327, %v4349
        %vm4392 = vcmp.eq.f32.partialorder %v4328, %v4352
        %vm4393 = vcmp.eq.f32.partialorder %v4329, %v4355
        %vm4394 = vcmp.eq.f32.partialorder %v4330, %v4358
        %vm4395 = vcmp.eq.f32.partialorder %v4331, %v4361
        %vm4396 = vcmp.eq.f32.partialorder %v4332, %v4364
        %vm4397 = vcmp.eq.f32.partialorder %v4333, %v4367
        %vm4398 = vcmp.eq.f32.partialorder %v4334, %v4370
        %vm4399 = vcmp.eq.f32.partialorder %v4335, %v4373
        %vm4400 = vcmp.eq.f32.partialorder %v4336, %v4376
        %vm4401 = vcmp.eq.f32.partialorder %v4337, %v4379
        %vm4402 = vcmp.eq.f32.partialorder %v4338, %v4382
        %vm4403 = vcmp.eq.f32.partialorder %v4339, %v4385
        %vm4404 = vcmp.eq.f32.partialorder %v4340, %v4388
        %v4405 = vrsqrt.pop %v4343
        %v4406 = vmul.f32 %v4405, %v4343
        %v4407 = vmul.f32 %v4406, %v4405
        %v4408 = vmul.f32 0.5, %v4407
        %v4409 = vsub.f32 1.5, %v4408
        %v4410 = vmul.f32 %v4405, %v4409
        %v4411 = vmul.f32 %v4343, %v4410
        %vm4412 = vcmp.eq.f32.partialorder %v4343, inf
        %v4413 = vsel %vm4412, %v4343, %v4411
        %vm4414 = vcmp.eq.f32.partialorder %v4343, 0.0
        %v4415 = vand.u32 %v4343, 2147483648
        %v4416 = vsel %vm4414, %v4415, %v4413
        %v4417 = vrsqrt.pop %v4346
        %v4418 = vmul.f32 %v4417, %v4346
        %v4419 = vmul.f32 %v4418, %v4417
        %v4420 = vmul.f32 0.5, %v4419
        %v4421 = vsub.f32 1.5, %v4420
        %v4422 = vmul.f32 %v4417, %v4421
        %v4423 = vmul.f32 %v4346, %v4422
        %vm4424 = vcmp.eq.f32.partialorder %v4346, inf
        %v4425 = vsel %vm4424, %v4346, %v4423
        %vm4426 = vcmp.eq.f32.partialorder %v4346, 0.0
        %v4427 = vand.u32 %v4346, 2147483648
        %v4428 = vsel %vm4426, %v4427, %v4425
        %v4429 = vrsqrt.pop %v4349
        %v4430 = vmul.f32 %v4429, %v4349
        %v4431 = vmul.f32 %v4430, %v4429
        %v4432 = vmul.f32 0.5, %v4431
        %v4433 = vsub.f32 1.5, %v4432
        %v4434 = vmul.f32 %v4429, %v4433
        %v4435 = vmul.f32 %v4349, %v4434
        %vm4436 = vcmp.eq.f32.partialorder %v4349, inf
        %v4437 = vsel %vm4436, %v4349, %v4435
        %vm4438 = vcmp.eq.f32.partialorder %v4349, 0.0
        %v4439 = vand.u32 %v4349, 2147483648
        %v4440 = vsel %vm4438, %v4439, %v4437
        %v4441 = vrsqrt.pop %v4352
        %v4442 = vmul.f32 %v4441, %v4352
        %v4443 = vmul.f32 %v4442, %v4441
        %v4444 = vmul.f32 0.5, %v4443
        %v4445 = vsub.f32 1.5, %v4444
        %v4446 = vmul.f32 %v4441, %v4445
        %v4447 = vmul.f32 %v4352, %v4446
        %vm4448 = vcmp.eq.f32.partialorder %v4352, inf
        %v4449 = vsel %vm4448, %v4352, %v4447
        %vm4450 = vcmp.eq.f32.partialorder %v4352, 0.0
        %v4451 = vand.u32 %v4352, 2147483648
        %v4452 = vsel %vm4450, %v4451, %v4449
        %v4453 = vrsqrt.pop %v4355
        %v4454 = vmul.f32 %v4453, %v4355
        %v4455 = vmul.f32 %v4454, %v4453
        %v4456 = vmul.f32 0.5, %v4455
        %v4457 = vsub.f32 1.5, %v4456
        %v4458 = vmul.f32 %v4453, %v4457
        %v4459 = vmul.f32 %v4355, %v4458
        %vm4460 = vcmp.eq.f32.partialorder %v4355, inf
        %v4461 = vsel %vm4460, %v4355, %v4459
        %vm4462 = vcmp.eq.f32.partialorder %v4355, 0.0
        %v4463 = vand.u32 %v4355, 2147483648
        %v4464 = vsel %vm4462, %v4463, %v4461
        %v4465 = vrsqrt.pop %v4358
        %v4466 = vmul.f32 %v4465, %v4358
        %v4467 = vmul.f32 %v4466, %v4465
        %v4468 = vmul.f32 0.5, %v4467
        %v4469 = vsub.f32 1.5, %v4468
        %v4470 = vmul.f32 %v4465, %v4469
        %v4471 = vmul.f32 %v4358, %v4470
        %vm4472 = vcmp.eq.f32.partialorder %v4358, inf
        %v4473 = vsel %vm4472, %v4358, %v4471
        %vm4474 = vcmp.eq.f32.partialorder %v4358, 0.0
        %v4475 = vand.u32 %v4358, 2147483648
        %v4476 = vsel %vm4474, %v4475, %v4473
        %v4477 = vrsqrt.pop %v4361
        %v4478 = vmul.f32 %v4477, %v4361
        %v4479 = vmul.f32 %v4478, %v4477
        %v4480 = vmul.f32 0.5, %v4479
        %v4481 = vsub.f32 1.5, %v4480
        %v4482 = vmul.f32 %v4477, %v4481
        %v4483 = vmul.f32 %v4361, %v4482
        %vm4484 = vcmp.eq.f32.partialorder %v4361, inf
        %v4485 = vsel %vm4484, %v4361, %v4483
        %vm4486 = vcmp.eq.f32.partialorder %v4361, 0.0
        %v4487 = vand.u32 %v4361, 2147483648
        %v4488 = vsel %vm4486, %v4487, %v4485
        %v4489 = vrsqrt.pop %v4364
        %v4490 = vmul.f32 %v4489, %v4364
        %v4491 = vmul.f32 %v4490, %v4489
        %v4492 = vmul.f32 0.5, %v4491
        %v4493 = vsub.f32 1.5, %v4492
        %v4494 = vmul.f32 %v4489, %v4493
        %v4495 = vmul.f32 %v4364, %v4494
        %vm4496 = vcmp.eq.f32.partialorder %v4364, inf
        %v4497 = vsel %vm4496, %v4364, %v4495
        %vm4498 = vcmp.eq.f32.partialorder %v4364, 0.0
        %v4499 = vand.u32 %v4364, 2147483648
        %v4500 = vsel %vm4498, %v4499, %v4497
        %v4501 = vrsqrt.pop %v4367
        %v4502 = vmul.f32 %v4501, %v4367
        %v4503 = vmul.f32 %v4502, %v4501
        %v4504 = vmul.f32 0.5, %v4503
        %v4505 = vsub.f32 1.5, %v4504
        %v4506 = vmul.f32 %v4501, %v4505
        %v4507 = vmul.f32 %v4367, %v4506
        %vm4508 = vcmp.eq.f32.partialorder %v4367, inf
        %v4509 = vsel %vm4508, %v4367, %v4507
        %vm4510 = vcmp.eq.f32.partialorder %v4367, 0.0
        %v4511 = vand.u32 %v4367, 2147483648
        %v4512 = vsel %vm4510, %v4511, %v4509
        %v4513 = vrsqrt.pop %v4370
        %v4514 = vmul.f32 %v4513, %v4370
        %v4515 = vmul.f32 %v4514, %v4513
        %v4516 = vmul.f32 0.5, %v4515
        %v4517 = vsub.f32 1.5, %v4516
        %v4518 = vmul.f32 %v4513, %v4517
        %v4519 = vmul.f32 %v4370, %v4518
        %vm4520 = vcmp.eq.f32.partialorder %v4370, inf
        %v4521 = vsel %vm4520, %v4370, %v4519
        %vm4522 = vcmp.eq.f32.partialorder %v4370, 0.0
        %v4523 = vand.u32 %v4370, 2147483648
        %v4524 = vsel %vm4522, %v4523, %v4521
        %v4525 = vrsqrt.pop %v4373
        %v4526 = vmul.f32 %v4525, %v4373
        %v4527 = vmul.f32 %v4526, %v4525
        %v4528 = vmul.f32 0.5, %v4527
        %v4529 = vsub.f32 1.5, %v4528
        %v4530 = vmul.f32 %v4525, %v4529
        %v4531 = vmul.f32 %v4373, %v4530
        %vm4532 = vcmp.eq.f32.partialorder %v4373, inf
        %v4533 = vsel %vm4532, %v4373, %v4531
        %vm4534 = vcmp.eq.f32.partialorder %v4373, 0.0
        %v4535 = vand.u32 %v4373, 2147483648
        %v4536 = vsel %vm4534, %v4535, %v4533
        %v4537 = vrsqrt.pop %v4376
        %v4538 = vmul.f32 %v4537, %v4376
        %v4539 = vmul.f32 %v4538, %v4537
        %v4540 = vmul.f32 0.5, %v4539
        %v4541 = vsub.f32 1.5, %v4540
        %v4542 = vmul.f32 %v4537, %v4541
        %v4543 = vmul.f32 %v4376, %v4542
        %vm4544 = vcmp.eq.f32.partialorder %v4376, inf
        %v4545 = vsel %vm4544, %v4376, %v4543
        %vm4546 = vcmp.eq.f32.partialorder %v4376, 0.0
        %v4547 = vand.u32 %v4376, 2147483648
        %v4548 = vsel %vm4546, %v4547, %v4545
        %v4549 = vrsqrt.pop %v4379
        %v4550 = vmul.f32 %v4549, %v4379
        %v4551 = vmul.f32 %v4550, %v4549
        %v4552 = vmul.f32 0.5, %v4551
        %v4553 = vsub.f32 1.5, %v4552
        %v4554 = vmul.f32 %v4549, %v4553
        %v4555 = vmul.f32 %v4379, %v4554
        %vm4556 = vcmp.eq.f32.partialorder %v4379, inf
        %v4557 = vsel %vm4556, %v4379, %v4555
        %vm4558 = vcmp.eq.f32.partialorder %v4379, 0.0
        %v4559 = vand.u32 %v4379, 2147483648
        %v4560 = vsel %vm4558, %v4559, %v4557
        %v4561 = vrsqrt.pop %v4382
        %v4562 = vmul.f32 %v4561, %v4382
        %v4563 = vmul.f32 %v4562, %v4561
        %v4564 = vmul.f32 0.5, %v4563
        %v4565 = vsub.f32 1.5, %v4564
        %v4566 = vmul.f32 %v4561, %v4565
        %v4567 = vmul.f32 %v4382, %v4566
        %vm4568 = vcmp.eq.f32.partialorder %v4382, inf
        %v4569 = vsel %vm4568, %v4382, %v4567
        %vm4570 = vcmp.eq.f32.partialorder %v4382, 0.0
        %v4571 = vand.u32 %v4382, 2147483648
        %v4572 = vsel %vm4570, %v4571, %v4569
        %v4573 = vrsqrt.pop %v4385
        %v4574 = vmul.f32 %v4573, %v4385
        %v4575 = vmul.f32 %v4574, %v4573
        %v4576 = vmul.f32 0.5, %v4575
        %v4577 = vsub.f32 1.5, %v4576
        %v4578 = vmul.f32 %v4573, %v4577
        %v4579 = vmul.f32 %v4385, %v4578
        %vm4580 = vcmp.eq.f32.partialorder %v4385, inf
        %v4581 = vsel %vm4580, %v4385, %v4579
        %vm4582 = vcmp.eq.f32.partialorder %v4385, 0.0
        %v4583 = vand.u32 %v4385, 2147483648
        %v4584 = vsel %vm4582, %v4583, %v4581
        %v4585 = vrsqrt.pop %v4388
        %v4586 = vmul.f32 %v4585, %v4388
        %v4587 = vmul.f32 %v4586, %v4585
        %v4588 = vmul.f32 0.5, %v4587
        %v4589 = vsub.f32 1.5, %v4588
        %v4590 = vmul.f32 %v4585, %v4589
        %v4591 = vmul.f32 %v4388, %v4590
        %vm4592 = vcmp.eq.f32.partialorder %v4388, inf
        %v4593 = vsel %vm4592, %v4388, %v4591
        %vm4594 = vcmp.eq.f32.partialorder %v4388, 0.0
        %v4595 = vand.u32 %v4388, 2147483648
        %v4596 = vsel %vm4594, %v4595, %v4593
        %v4597 = vadd.f32 %v4416, 1e-08
        %v4598 = vadd.f32 %v4428, 1e-08
        %v4599 = vadd.f32 %v4440, 1e-08
        %v4600 = vadd.f32 %v4452, 1e-08
        %v4601 = vadd.f32 %v4464, 1e-08
        %v4602 = vadd.f32 %v4476, 1e-08
        %v4603 = vadd.f32 %v4488, 1e-08
        %v4604 = vadd.f32 %v4500, 1e-08
        %v4605 = vadd.f32 %v4512, 1e-08
        %v4606 = vadd.f32 %v4524, 1e-08
        %v4607 = vadd.f32 %v4536, 1e-08
        %v4608 = vadd.f32 %v4548, 1e-08
        %v4609 = vadd.f32 %v4560, 1e-08
        %v4610 = vadd.f32 %v4572, 1e-08
        %v4611 = vadd.f32 %v4584, 1e-08
        %v4612 = vadd.f32 %v4596, 1e-08
        %v4613 = vrcp.pop %v4597
        %v4614 = vmul.f32 %v4597, %v4613
        %v4615 = vsub.f32 1.0, %v4614
        %v4616 = vmul.f32 %v4613, %v4615
        %v4617 = vadd.f32 %v4613, %v4616
        %vm4618 = vweird.f32 %v4597
        %vm4619 = vweird.f32 %v4613
        %vm4620 = vmor %vm4618, %vm4619
        %v4621 = vsel %vm4620, %v4613, %v4617
        %v4622 = vand.u32 2147483647, %v4597
        %vm4623 = vcmp.eq.f32.partialorder %v4622, 8.507059e+37
        %v4624 = vand.u32 %v4597, 2147483648
        %v4625 = vor.u32 1.1754944e-38, %v4624
        %v4626 = vsel %vm4623, %v4625, %v4621
        %v4627 = vmul.f32 1.0, %v4626
        %v4628 = vrcp.pop %v4598
        %v4629 = vmul.f32 %v4598, %v4628
        %v4630 = vsub.f32 1.0, %v4629
        %v4631 = vmul.f32 %v4628, %v4630
        %v4632 = vadd.f32 %v4628, %v4631
        %vm4633 = vweird.f32 %v4598
        %vm4634 = vweird.f32 %v4628
        %vm4635 = vmor %vm4633, %vm4634
        %v4636 = vsel %vm4635, %v4628, %v4632
        %v4637 = vand.u32 2147483647, %v4598
        %vm4638 = vcmp.eq.f32.partialorder %v4637, 8.507059e+37
        %v4639 = vand.u32 %v4598, 2147483648
        %v4640 = vor.u32 1.1754944e-38, %v4639
        %v4641 = vsel %vm4638, %v4640, %v4636
        %v4642 = vmul.f32 1.0, %v4641
        %v4643 = vrcp.pop %v4599
        %v4644 = vmul.f32 %v4599, %v4643
        %v4645 = vsub.f32 1.0, %v4644
        %v4646 = vmul.f32 %v4643, %v4645
        %v4647 = vadd.f32 %v4643, %v4646
        %vm4648 = vweird.f32 %v4599
        %vm4649 = vweird.f32 %v4643
        %vm4650 = vmor %vm4648, %vm4649
        %v4651 = vsel %vm4650, %v4643, %v4647
        %v4652 = vand.u32 2147483647, %v4599
        %vm4653 = vcmp.eq.f32.partialorder %v4652, 8.507059e+37
        %v4654 = vand.u32 %v4599, 2147483648
        %v4655 = vor.u32 1.1754944e-38, %v4654
        %v4656 = vsel %vm4653, %v4655, %v4651
        %v4657 = vmul.f32 1.0, %v4656
        %v4658 = vrcp.pop %v4600
        %v4659 = vmul.f32 %v4600, %v4658
        %v4660 = vsub.f32 1.0, %v4659
        %v4661 = vmul.f32 %v4658, %v4660
        %v4662 = vadd.f32 %v4658, %v4661
        %vm4663 = vweird.f32 %v4600
        %vm4664 = vweird.f32 %v4658
        %vm4665 = vmor %vm4663, %vm4664
        %v4666 = vsel %vm4665, %v4658, %v4662
        %v4667 = vand.u32 2147483647, %v4600
        %vm4668 = vcmp.eq.f32.partialorder %v4667, 8.507059e+37
        %v4669 = vand.u32 %v4600, 2147483648
        %v4670 = vor.u32 1.1754944e-38, %v4669
        %v4671 = vsel %vm4668, %v4670, %v4666
        %v4672 = vmul.f32 1.0, %v4671
        %v4673 = vrcp.pop %v4601
        %v4674 = vmul.f32 %v4601, %v4673
        %v4675 = vsub.f32 1.0, %v4674
        %v4676 = vmul.f32 %v4673, %v4675
        %v4677 = vadd.f32 %v4673, %v4676
        %vm4678 = vweird.f32 %v4601
        %vm4679 = vweird.f32 %v4673
        %vm4680 = vmor %vm4678, %vm4679
        %v4681 = vsel %vm4680, %v4673, %v4677
        %v4682 = vand.u32 2147483647, %v4601
        %vm4683 = vcmp.eq.f32.partialorder %v4682, 8.507059e+37
        %v4684 = vand.u32 %v4601, 2147483648
        %v4685 = vor.u32 1.1754944e-38, %v4684
        %v4686 = vsel %vm4683, %v4685, %v4681
        %v4687 = vmul.f32 1.0, %v4686
        %v4688 = vrcp.pop %v4602
        %v4689 = vmul.f32 %v4602, %v4688
        %v4690 = vsub.f32 1.0, %v4689
        %v4691 = vmul.f32 %v4688, %v4690
        %v4692 = vadd.f32 %v4688, %v4691
        %vm4693 = vweird.f32 %v4602
        %vm4694 = vweird.f32 %v4688
        %vm4695 = vmor %vm4693, %vm4694
        %v4696 = vsel %vm4695, %v4688, %v4692
        %v4697 = vand.u32 2147483647, %v4602
        %vm4698 = vcmp.eq.f32.partialorder %v4697, 8.507059e+37
        %v4699 = vand.u32 %v4602, 2147483648
        %v4700 = vor.u32 1.1754944e-38, %v4699
        %v4701 = vsel %vm4698, %v4700, %v4696
        %v4702 = vmul.f32 1.0, %v4701
        %v4703 = vrcp.pop %v4603
        %v4704 = vmul.f32 %v4603, %v4703
        %v4705 = vsub.f32 1.0, %v4704
        %v4706 = vmul.f32 %v4703, %v4705
        %v4707 = vadd.f32 %v4703, %v4706
        %vm4708 = vweird.f32 %v4603
        %vm4709 = vweird.f32 %v4703
        %vm4710 = vmor %vm4708, %vm4709
        %v4711 = vsel %vm4710, %v4703, %v4707
        %v4712 = vand.u32 2147483647, %v4603
        %vm4713 = vcmp.eq.f32.partialorder %v4712, 8.507059e+37
        %v4714 = vand.u32 %v4603, 2147483648
        %v4715 = vor.u32 1.1754944e-38, %v4714
        %v4716 = vsel %vm4713, %v4715, %v4711
        %v4717 = vmul.f32 1.0, %v4716
        %v4718 = vrcp.pop %v4604
        %v4719 = vmul.f32 %v4604, %v4718
        %v4720 = vsub.f32 1.0, %v4719
        %v4721 = vmul.f32 %v4718, %v4720
        %v4722 = vadd.f32 %v4718, %v4721
        %vm4723 = vweird.f32 %v4604
        %vm4724 = vweird.f32 %v4718
        %vm4725 = vmor %vm4723, %vm4724
        %v4726 = vsel %vm4725, %v4718, %v4722
        %v4727 = vand.u32 2147483647, %v4604
        %vm4728 = vcmp.eq.f32.partialorder %v4727, 8.507059e+37
        %v4729 = vand.u32 %v4604, 2147483648
        %v4730 = vor.u32 1.1754944e-38, %v4729
        %v4731 = vsel %vm4728, %v4730, %v4726
        %v4732 = vmul.f32 1.0, %v4731
        %v4733 = vrcp.pop %v4605
        %v4734 = vmul.f32 %v4605, %v4733
        %v4735 = vsub.f32 1.0, %v4734
        %v4736 = vmul.f32 %v4733, %v4735
        %v4737 = vadd.f32 %v4733, %v4736
        %vm4738 = vweird.f32 %v4605
        %vm4739 = vweird.f32 %v4733
        %vm4740 = vmor %vm4738, %vm4739
        %v4741 = vsel %vm4740, %v4733, %v4737
        %v4742 = vand.u32 2147483647, %v4605
        %vm4743 = vcmp.eq.f32.partialorder %v4742, 8.507059e+37
        %v4744 = vand.u32 %v4605, 2147483648
        %v4745 = vor.u32 1.1754944e-38, %v4744
        %v4746 = vsel %vm4743, %v4745, %v4741
        %v4747 = vmul.f32 1.0, %v4746
        %v4748 = vrcp.pop %v4606
        %v4749 = vmul.f32 %v4606, %v4748
        %v4750 = vsub.f32 1.0, %v4749
        %v4751 = vmul.f32 %v4748, %v4750
        %v4752 = vadd.f32 %v4748, %v4751
        %vm4753 = vweird.f32 %v4606
        %vm4754 = vweird.f32 %v4748
        %vm4755 = vmor %vm4753, %vm4754
        %v4756 = vsel %vm4755, %v4748, %v4752
        %v4757 = vand.u32 2147483647, %v4606
        %vm4758 = vcmp.eq.f32.partialorder %v4757, 8.507059e+37
        %v4759 = vand.u32 %v4606, 2147483648
        %v4760 = vor.u32 1.1754944e-38, %v4759
        %v4761 = vsel %vm4758, %v4760, %v4756
        %v4762 = vmul.f32 1.0, %v4761
        %v4763 = vrcp.pop %v4607
        %v4764 = vmul.f32 %v4607, %v4763
        %v4765 = vsub.f32 1.0, %v4764
        %v4766 = vmul.f32 %v4763, %v4765
        %v4767 = vadd.f32 %v4763, %v4766
        %vm4768 = vweird.f32 %v4607
        %vm4769 = vweird.f32 %v4763
        %vm4770 = vmor %vm4768, %vm4769
        %v4771 = vsel %vm4770, %v4763, %v4767
        %v4772 = vand.u32 2147483647, %v4607
        %vm4773 = vcmp.eq.f32.partialorder %v4772, 8.507059e+37
        %v4774 = vand.u32 %v4607, 2147483648
        %v4775 = vor.u32 1.1754944e-38, %v4774
        %v4776 = vsel %vm4773, %v4775, %v4771
        %v4777 = vmul.f32 1.0, %v4776
        %v4778 = vrcp.pop %v4608
        %v4779 = vmul.f32 %v4608, %v4778
        %v4780 = vsub.f32 1.0, %v4779
        %v4781 = vmul.f32 %v4778, %v4780
        %v4782 = vadd.f32 %v4778, %v4781
        %vm4783 = vweird.f32 %v4608
        %vm4784 = vweird.f32 %v4778
        %vm4785 = vmor %vm4783, %vm4784
        %v4786 = vsel %vm4785, %v4778, %v4782
        %v4787 = vand.u32 2147483647, %v4608
        %vm4788 = vcmp.eq.f32.partialorder %v4787, 8.507059e+37
        %v4789 = vand.u32 %v4608, 2147483648
        %v4790 = vor.u32 1.1754944e-38, %v4789
        %v4791 = vsel %vm4788, %v4790, %v4786
        %v4792 = vmul.f32 1.0, %v4791
        %v4793 = vrcp.pop %v4609
        %v4794 = vmul.f32 %v4609, %v4793
        %v4795 = vsub.f32 1.0, %v4794
        %v4796 = vmul.f32 %v4793, %v4795
        %v4797 = vadd.f32 %v4793, %v4796
        %vm4798 = vweird.f32 %v4609
        %vm4799 = vweird.f32 %v4793
        %vm4800 = vmor %vm4798, %vm4799
        %v4801 = vsel %vm4800, %v4793, %v4797
        %v4802 = vand.u32 2147483647, %v4609
        %vm4803 = vcmp.eq.f32.partialorder %v4802, 8.507059e+37
        %v4804 = vand.u32 %v4609, 2147483648
        %v4805 = vor.u32 1.1754944e-38, %v4804
        %v4806 = vsel %vm4803, %v4805, %v4801
        %v4807 = vmul.f32 1.0, %v4806
        %v4808 = vrcp.pop %v4610
        %v4809 = vmul.f32 %v4610, %v4808
        %v4810 = vsub.f32 1.0, %v4809
        %v4811 = vmul.f32 %v4808, %v4810
        %v4812 = vadd.f32 %v4808, %v4811
        %vm4813 = vweird.f32 %v4610
        %vm4814 = vweird.f32 %v4808
        %vm4815 = vmor %vm4813, %vm4814
        %v4816 = vsel %vm4815, %v4808, %v4812
        %v4817 = vand.u32 2147483647, %v4610
        %vm4818 = vcmp.eq.f32.partialorder %v4817, 8.507059e+37
        %v4819 = vand.u32 %v4610, 2147483648
        %v4820 = vor.u32 1.1754944e-38, %v4819
        %v4821 = vsel %vm4818, %v4820, %v4816
        %v4822 = vmul.f32 1.0, %v4821
        %v4823 = vrcp.pop %v4611
        %v4824 = vmul.f32 %v4611, %v4823
        %v4825 = vsub.f32 1.0, %v4824
        %v4826 = vmul.f32 %v4823, %v4825
        %v4827 = vadd.f32 %v4823, %v4826
        %vm4828 = vweird.f32 %v4611
        %vm4829 = vweird.f32 %v4823
        %vm4830 = vmor %vm4828, %vm4829
        %v4831 = vsel %vm4830, %v4823, %v4827
        %v4832 = vand.u32 2147483647, %v4611
        %vm4833 = vcmp.eq.f32.partialorder %v4832, 8.507059e+37
        %v4834 = vand.u32 %v4611, 2147483648
        %v4835 = vor.u32 1.1754944e-38, %v4834
        %v4836 = vsel %vm4833, %v4835, %v4831
        %v4837 = vmul.f32 1.0, %v4836
        %v4838 = vrcp.pop %v4612
        %v4839 = vmul.f32 %v4612, %v4838
        %v4840 = vsub.f32 1.0, %v4839
        %v4841 = vmul.f32 %v4838, %v4840
        %v4842 = vadd.f32 %v4838, %v4841
        %vm4843 = vweird.f32 %v4612
        %vm4844 = vweird.f32 %v4838
        %vm4845 = vmor %vm4843, %vm4844
        %v4846 = vsel %vm4845, %v4838, %v4842
        %v4847 = vand.u32 2147483647, %v4612
        %vm4848 = vcmp.eq.f32.partialorder %v4847, 8.507059e+37
        %v4849 = vand.u32 %v4612, 2147483648
        %v4850 = vor.u32 1.1754944e-38, %v4849
        %v4851 = vsel %vm4848, %v4850, %v4846
        %v4852 = vmul.f32 1.0, %v4851
        %v4853 = vsel %vm4389, %v4627, 0.0
        %v4854 = vsel %vm4390, %v4642, 0.0
        %v4855 = vsel %vm4391, %v4657, 0.0
        %v4856 = vsel %vm4392, %v4672, 0.0
        %v4857 = vsel %vm4393, %v4687, 0.0
        %v4858 = vsel %vm4394, %v4702, 0.0
        %v4859 = vsel %vm4395, %v4717, 0.0
        %v4860 = vsel %vm4396, %v4732, 0.0
        %v4861 = vsel %vm4397, %v4747, 0.0
        %v4862 = vsel %vm4398, %v4762, 0.0
        %v4863 = vsel %vm4399, %v4777, 0.0
        %v4864 = vsel %vm4400, %v4792, 0.0
        %v4865 = vsel %vm4401, %v4807, 0.0
        %v4866 = vsel %vm4402, %v4822, 0.0
        %v4867 = vsel %vm4403, %v4837, 0.0
        %v4868 = vsel %vm4404, %v4852, 0.0
        %v4869 = vadd.f32 %v4293, %v4853
        %v4870 = vadd.f32 %v4294, %v4854
        %v4871 = vadd.f32 %v4295, %v4855
        %v4872 = vadd.f32 %v4296, %v4856
        %v4873 = vadd.f32 %v4297, %v4857
        %v4874 = vadd.f32 %v4298, %v4858
        %v4875 = vadd.f32 %v4299, %v4859
        %v4876 = vadd.f32 %v4300, %v4860
        %v4877 = vadd.f32 %v4301, %v4861
        %v4878 = vadd.f32 %v4302, %v4862
        %v4879 = vadd.f32 %v4303, %v4863
        %v4880 = vadd.f32 %v4304, %v4864
        %v4881 = vadd.f32 %v4305, %v4865
        %v4882 = vadd.f32 %v4306, %v4866
        %v4883 = vadd.f32 %v4307, %v4867
        %v4884 = vadd.f32 %v4308, %v4868
        %v4885 = vadd.f32 %v4309, %v4627
        %v4886 = vadd.f32 %v4310, %v4642
        %v4887 = vadd.f32 %v4311, %v4657
        %v4888 = vadd.f32 %v4312, %v4672
        %v4889 = vadd.f32 %v4313, %v4687
        %v4890 = vadd.f32 %v4314, %v4702
        %v4891 = vadd.f32 %v4315, %v4717
        %v4892 = vadd.f32 %v4316, %v4732
        %v4893 = vadd.f32 %v4317, %v4747
        %v4894 = vadd.f32 %v4318, %v4762
        %v4895 = vadd.f32 %v4319, %v4777
        %v4896 = vadd.f32 %v4320, %v4792
        %v4897 = vadd.f32 %v4321, %v4807
        %v4898 = vadd.f32 %v4322, %v4822
        %v4899 = vadd.f32 %v4323, %v4837
        %v4900 = vadd.f32 %v4324, %v4852
        %v4901 = vld [vmem:[%s369] sm:$0xff]
        %v4902 = vld [vmem:[%s369 + $0x8] sm:$0xff]
        %v4903 = vld [vmem:[%s369 + $0x10] sm:$0xff]
        %v4904 = vld [vmem:[%s369 + $0x18] sm:$0xff]
        %v4905 = vld [vmem:[%s369 + $0x20] sm:$0xff]
        %v4906 = vld [vmem:[%s369 + $0x28] sm:$0xff]
        %v4907 = vld [vmem:[%s369 + $0x30] sm:$0xff]
        %v4908 = vld [vmem:[%s369 + $0x38] sm:$0xff]
        %v4910 = vsel %vm383, %v4869, 0
        %v4913 = vsel %vm383, %v4870, 0
        %v4916 = vsel %vm383, %v4871, 0
        %v4919 = vsel %vm383, %v4872, 0
        %v4922 = vsel %vm383, %v4873, 0
        %v4925 = vsel %vm383, %v4874, 0
        %v4928 = vsel %vm383, %v4875, 0
        %v4931 = vsel %vm383, %v4876, 0
        %v4934 = vsel %vm383, %v4877, 0
        %v4937 = vsel %vm383, %v4878, 0
        %v4940 = vsel %vm383, %v4879, 0
        %v4943 = vsel %vm383, %v4880, 0
        %v4946 = vsel %vm383, %v4881, 0
        %v4949 = vsel %vm383, %v4882, 0
        %v4952 = vsel %vm383, %v4883, 0
        %v4955 = vsel %vm383, %v4884, 0
        %4957 = vmatpush.msra.mxu0 0.0
        %4958 = vmatpush.msra.mxu0 0.0
        %4959 = vmatpush.msra.mxu0 0.0
        %4960 = vmatpush.msra.mxu0 0.0
        %4961 = vmatpush.msra.mxu0 0.0
        %4962 = vmatpush.msra.mxu0 0.0
        %4963 = vmatpush.msra.mxu0 0.0
        %4964 = vmatpush.msra.mxu0 0.0
        %4965 = vmatpush.msra.mxu0 %v4908
        %4966 = vmatpush.msra.mxu0 %v4907
        %4967 = vmatpush.msra.mxu0 %v4906
        %4968 = vmatpush.msra.mxu0 %v4905
        %4969 = vmatpush.msra.mxu0 %v4904
        %4970 = vmatpush.msra.mxu0 %v4903
        %4971 = vmatpush.msra.mxu0 %v4902
        %4972 = vmatpush.msra.mxu0 %v4901
        %4973 = vmatmul.f32.gmra.mxu0 %v4910
        %v4974 = vpop.f32.mrf.mxu0
        %v4975 = vadd.f32 0.0, %v4974
        %4976 = vmatmul.f32.gmra.mxu0 %v4913
        %v4977 = vpop.f32.mrf.mxu0
        %v4978 = vadd.f32 0.0, %v4977
        %4979 = vmatmul.f32.gmra.mxu0 %v4916
        %v4980 = vpop.f32.mrf.mxu0
        %v4981 = vadd.f32 0.0, %v4980
        %4982 = vmatmul.f32.gmra.mxu0 %v4919
        %v4983 = vpop.f32.mrf.mxu0
        %v4984 = vadd.f32 0.0, %v4983
        %4985 = vmatmul.f32.gmra.mxu0 %v4922
        %v4986 = vpop.f32.mrf.mxu0
        %v4987 = vadd.f32 0.0, %v4986
        %4988 = vmatmul.f32.gmra.mxu0 %v4925
        %v4989 = vpop.f32.mrf.mxu0
        %v4990 = vadd.f32 0.0, %v4989
        %4991 = vmatmul.f32.gmra.mxu0 %v4928
        %v4992 = vpop.f32.mrf.mxu0
        %v4993 = vadd.f32 0.0, %v4992
        %4994 = vmatmul.f32.gmra.mxu0 %v4931
        %v4995 = vpop.f32.mrf.mxu0
        %v4996 = vadd.f32 0.0, %v4995
        %4997 = vmatmul.f32.gmra.mxu0 %v4934
        %v4998 = vpop.f32.mrf.mxu0
        %v4999 = vadd.f32 0.0, %v4998
        %5000 = vmatmul.f32.gmra.mxu0 %v4937
        %v5001 = vpop.f32.mrf.mxu0
        %v5002 = vadd.f32 0.0, %v5001
        %5003 = vmatmul.f32.gmra.mxu0 %v4940
        %v5004 = vpop.f32.mrf.mxu0
        %v5005 = vadd.f32 0.0, %v5004
        %5006 = vmatmul.f32.gmra.mxu0 %v4943
        %v5007 = vpop.f32.mrf.mxu0
        %v5008 = vadd.f32 0.0, %v5007
        %5009 = vmatmul.f32.gmra.mxu0 %v4946
        %v5010 = vpop.f32.mrf.mxu0
        %v5011 = vadd.f32 0.0, %v5010
        %5012 = vmatmul.f32.gmra.mxu0 %v4949
        %v5013 = vpop.f32.mrf.mxu0
        %v5014 = vadd.f32 0.0, %v5013
        %5015 = vmatmul.f32.gmra.mxu0 %v4952
        %v5016 = vpop.f32.mrf.mxu0
        %v5017 = vadd.f32 0.0, %v5016
        %5018 = vmatmul.f32.gmra.mxu0 %v4955
        %v5019 = vpop.f32.mrf.mxu0
        %v5020 = vadd.f32 0.0, %v5019
        %5021 = vdwg.mxu0
        %v5022 = vrcp.pop %v4885
        %v5023 = vmul.f32 %v4885, %v5022
        %v5024 = vsub.f32 1.0, %v5023
        %v5025 = vmul.f32 %v5022, %v5024
        %v5026 = vadd.f32 %v5022, %v5025
        %vm5027 = vweird.f32 %v4885
        %vm5028 = vweird.f32 %v5022
        %vm5029 = vmor %vm5027, %vm5028
        %v5030 = vsel %vm5029, %v5022, %v5026
        %v5031 = vand.u32 2147483647, %v4885
        %vm5032 = vcmp.eq.f32.partialorder %v5031, 8.507059e+37
        %v5033 = vand.u32 %v4885, 2147483648
        %v5034 = vor.u32 1.1754944e-38, %v5033
        %v5035 = vsel %vm5032, %v5034, %v5030
        %v5036 = vrcp.pop %v4886
        %v5037 = vmul.f32 %v4886, %v5036
        %v5038 = vsub.f32 1.0, %v5037
        %v5039 = vmul.f32 %v5036, %v5038
        %v5040 = vadd.f32 %v5036, %v5039
        %vm5041 = vweird.f32 %v4886
        %vm5042 = vweird.f32 %v5036
        %vm5043 = vmor %vm5041, %vm5042
        %v5044 = vsel %vm5043, %v5036, %v5040
        %v5045 = vand.u32 2147483647, %v4886
        %vm5046 = vcmp.eq.f32.partialorder %v5045, 8.507059e+37
        %v5047 = vand.u32 %v4886, 2147483648
        %v5048 = vor.u32 1.1754944e-38, %v5047
        %v5049 = vsel %vm5046, %v5048, %v5044
        %v5050 = vrcp.pop %v4887
        %v5051 = vmul.f32 %v4887, %v5050
        %v5052 = vsub.f32 1.0, %v5051
        %v5053 = vmul.f32 %v5050, %v5052
        %v5054 = vadd.f32 %v5050, %v5053
        %vm5055 = vweird.f32 %v4887
        %vm5056 = vweird.f32 %v5050
        %vm5057 = vmor %vm5055, %vm5056
        %v5058 = vsel %vm5057, %v5050, %v5054
        %v5059 = vand.u32 2147483647, %v4887
        %vm5060 = vcmp.eq.f32.partialorder %v5059, 8.507059e+37
        %v5061 = vand.u32 %v4887, 2147483648
        %v5062 = vor.u32 1.1754944e-38, %v5061
        %v5063 = vsel %vm5060, %v5062, %v5058
        %v5064 = vrcp.pop %v4888
        %v5065 = vmul.f32 %v4888, %v5064
        %v5066 = vsub.f32 1.0, %v5065
        %v5067 = vmul.f32 %v5064, %v5066
        %v5068 = vadd.f32 %v5064, %v5067
        %vm5069 = vweird.f32 %v4888
        %vm5070 = vweird.f32 %v5064
        %vm5071 = vmor %vm5069, %vm5070
        %v5072 = vsel %vm5071, %v5064, %v5068
        %v5073 = vand.u32 2147483647, %v4888
        %vm5074 = vcmp.eq.f32.partialorder %v5073, 8.507059e+37
        %v5075 = vand.u32 %v4888, 2147483648
        %v5076 = vor.u32 1.1754944e-38, %v5075
        %v5077 = vsel %vm5074, %v5076, %v5072
        %v5078 = vrcp.pop %v4889
        %v5079 = vmul.f32 %v4889, %v5078
        %v5080 = vsub.f32 1.0, %v5079
        %v5081 = vmul.f32 %v5078, %v5080
        %v5082 = vadd.f32 %v5078, %v5081
        %vm5083 = vweird.f32 %v4889
        %vm5084 = vweird.f32 %v5078
        %vm5085 = vmor %vm5083, %vm5084
        %v5086 = vsel %vm5085, %v5078, %v5082
        %v5087 = vand.u32 2147483647, %v4889
        %vm5088 = vcmp.eq.f32.partialorder %v5087, 8.507059e+37
        %v5089 = vand.u32 %v4889, 2147483648
        %v5090 = vor.u32 1.1754944e-38, %v5089
        %v5091 = vsel %vm5088, %v5090, %v5086
        %v5092 = vrcp.pop %v4890
        %v5093 = vmul.f32 %v4890, %v5092
        %v5094 = vsub.f32 1.0, %v5093
        %v5095 = vmul.f32 %v5092, %v5094
        %v5096 = vadd.f32 %v5092, %v5095
        %vm5097 = vweird.f32 %v4890
        %vm5098 = vweird.f32 %v5092
        %vm5099 = vmor %vm5097, %vm5098
        %v5100 = vsel %vm5099, %v5092, %v5096
        %v5101 = vand.u32 2147483647, %v4890
        %vm5102 = vcmp.eq.f32.partialorder %v5101, 8.507059e+37
        %v5103 = vand.u32 %v4890, 2147483648
        %v5104 = vor.u32 1.1754944e-38, %v5103
        %v5105 = vsel %vm5102, %v5104, %v5100
        %v5106 = vrcp.pop %v4891
        %v5107 = vmul.f32 %v4891, %v5106
        %v5108 = vsub.f32 1.0, %v5107
        %v5109 = vmul.f32 %v5106, %v5108
        %v5110 = vadd.f32 %v5106, %v5109
        %vm5111 = vweird.f32 %v4891
        %vm5112 = vweird.f32 %v5106
        %vm5113 = vmor %vm5111, %vm5112
        %v5114 = vsel %vm5113, %v5106, %v5110
        %v5115 = vand.u32 2147483647, %v4891
        %vm5116 = vcmp.eq.f32.partialorder %v5115, 8.507059e+37
        %v5117 = vand.u32 %v4891, 2147483648
        %v5118 = vor.u32 1.1754944e-38, %v5117
        %v5119 = vsel %vm5116, %v5118, %v5114
        %v5120 = vrcp.pop %v4892
        %v5121 = vmul.f32 %v4892, %v5120
        %v5122 = vsub.f32 1.0, %v5121
        %v5123 = vmul.f32 %v5120, %v5122
        %v5124 = vadd.f32 %v5120, %v5123
        %vm5125 = vweird.f32 %v4892
        %vm5126 = vweird.f32 %v5120
        %vm5127 = vmor %vm5125, %vm5126
        %v5128 = vsel %vm5127, %v5120, %v5124
        %v5129 = vand.u32 2147483647, %v4892
        %vm5130 = vcmp.eq.f32.partialorder %v5129, 8.507059e+37
        %v5131 = vand.u32 %v4892, 2147483648
        %v5132 = vor.u32 1.1754944e-38, %v5131
        %v5133 = vsel %vm5130, %v5132, %v5128
        %v5134 = vrcp.pop %v4893
        %v5135 = vmul.f32 %v4893, %v5134
        %v5136 = vsub.f32 1.0, %v5135
        %v5137 = vmul.f32 %v5134, %v5136
        %v5138 = vadd.f32 %v5134, %v5137
        %vm5139 = vweird.f32 %v4893
        %vm5140 = vweird.f32 %v5134
        %vm5141 = vmor %vm5139, %vm5140
        %v5142 = vsel %vm5141, %v5134, %v5138
        %v5143 = vand.u32 2147483647, %v4893
        %vm5144 = vcmp.eq.f32.partialorder %v5143, 8.507059e+37
        %v5145 = vand.u32 %v4893, 2147483648
        %v5146 = vor.u32 1.1754944e-38, %v5145
        %v5147 = vsel %vm5144, %v5146, %v5142
        %v5148 = vrcp.pop %v4894
        %v5149 = vmul.f32 %v4894, %v5148
        %v5150 = vsub.f32 1.0, %v5149
        %v5151 = vmul.f32 %v5148, %v5150
        %v5152 = vadd.f32 %v5148, %v5151
        %vm5153 = vweird.f32 %v4894
        %vm5154 = vweird.f32 %v5148
        %vm5155 = vmor %vm5153, %vm5154
        %v5156 = vsel %vm5155, %v5148, %v5152
        %v5157 = vand.u32 2147483647, %v4894
        %vm5158 = vcmp.eq.f32.partialorder %v5157, 8.507059e+37
        %v5159 = vand.u32 %v4894, 2147483648
        %v5160 = vor.u32 1.1754944e-38, %v5159
        %v5161 = vsel %vm5158, %v5160, %v5156
        %v5162 = vrcp.pop %v4895
        %v5163 = vmul.f32 %v4895, %v5162
        %v5164 = vsub.f32 1.0, %v5163
        %v5165 = vmul.f32 %v5162, %v5164
        %v5166 = vadd.f32 %v5162, %v5165
        %vm5167 = vweird.f32 %v4895
        %vm5168 = vweird.f32 %v5162
        %vm5169 = vmor %vm5167, %vm5168
        %v5170 = vsel %vm5169, %v5162, %v5166
        %v5171 = vand.u32 2147483647, %v4895
        %vm5172 = vcmp.eq.f32.partialorder %v5171, 8.507059e+37
        %v5173 = vand.u32 %v4895, 2147483648
        %v5174 = vor.u32 1.1754944e-38, %v5173
        %v5175 = vsel %vm5172, %v5174, %v5170
        %v5176 = vrcp.pop %v4896
        %v5177 = vmul.f32 %v4896, %v5176
        %v5178 = vsub.f32 1.0, %v5177
        %v5179 = vmul.f32 %v5176, %v5178
        %v5180 = vadd.f32 %v5176, %v5179
        %vm5181 = vweird.f32 %v4896
        %vm5182 = vweird.f32 %v5176
        %vm5183 = vmor %vm5181, %vm5182
        %v5184 = vsel %vm5183, %v5176, %v5180
        %v5185 = vand.u32 2147483647, %v4896
        %vm5186 = vcmp.eq.f32.partialorder %v5185, 8.507059e+37
        %v5187 = vand.u32 %v4896, 2147483648
        %v5188 = vor.u32 1.1754944e-38, %v5187
        %v5189 = vsel %vm5186, %v5188, %v5184
        %v5190 = vrcp.pop %v4897
        %v5191 = vmul.f32 %v4897, %v5190
        %v5192 = vsub.f32 1.0, %v5191
        %v5193 = vmul.f32 %v5190, %v5192
        %v5194 = vadd.f32 %v5190, %v5193
        %vm5195 = vweird.f32 %v4897
        %vm5196 = vweird.f32 %v5190
        %vm5197 = vmor %vm5195, %vm5196
        %v5198 = vsel %vm5197, %v5190, %v5194
        %v5199 = vand.u32 2147483647, %v4897
        %vm5200 = vcmp.eq.f32.partialorder %v5199, 8.507059e+37
        %v5201 = vand.u32 %v4897, 2147483648
        %v5202 = vor.u32 1.1754944e-38, %v5201
        %v5203 = vsel %vm5200, %v5202, %v5198
        %v5204 = vrcp.pop %v4898
        %v5205 = vmul.f32 %v4898, %v5204
        %v5206 = vsub.f32 1.0, %v5205
        %v5207 = vmul.f32 %v5204, %v5206
        %v5208 = vadd.f32 %v5204, %v5207
        %vm5209 = vweird.f32 %v4898
        %vm5210 = vweird.f32 %v5204
        %vm5211 = vmor %vm5209, %vm5210
        %v5212 = vsel %vm5211, %v5204, %v5208
        %v5213 = vand.u32 2147483647, %v4898
        %vm5214 = vcmp.eq.f32.partialorder %v5213, 8.507059e+37
        %v5215 = vand.u32 %v4898, 2147483648
        %v5216 = vor.u32 1.1754944e-38, %v5215
        %v5217 = vsel %vm5214, %v5216, %v5212
        %v5218 = vrcp.pop %v4899
        %v5219 = vmul.f32 %v4899, %v5218
        %v5220 = vsub.f32 1.0, %v5219
        %v5221 = vmul.f32 %v5218, %v5220
        %v5222 = vadd.f32 %v5218, %v5221
        %vm5223 = vweird.f32 %v4899
        %vm5224 = vweird.f32 %v5218
        %vm5225 = vmor %vm5223, %vm5224
        %v5226 = vsel %vm5225, %v5218, %v5222
        %v5227 = vand.u32 2147483647, %v4899
        %vm5228 = vcmp.eq.f32.partialorder %v5227, 8.507059e+37
        %v5229 = vand.u32 %v4899, 2147483648
        %v5230 = vor.u32 1.1754944e-38, %v5229
        %v5231 = vsel %vm5228, %v5230, %v5226
        %v5232 = vrcp.pop %v4900
        %v5233 = vmul.f32 %v4900, %v5232
        %v5234 = vsub.f32 1.0, %v5233
        %v5235 = vmul.f32 %v5232, %v5234
        %v5236 = vadd.f32 %v5232, %v5235
        %vm5237 = vweird.f32 %v4900
        %vm5238 = vweird.f32 %v5232
        %vm5239 = vmor %vm5237, %vm5238
        %v5240 = vsel %vm5239, %v5232, %v5236
        %v5241 = vand.u32 2147483647, %v4900
        %vm5242 = vcmp.eq.f32.partialorder %v5241, 8.507059e+37
        %v5243 = vand.u32 %v4900, 2147483648
        %v5244 = vor.u32 1.1754944e-38, %v5243
        %v5245 = vsel %vm5242, %v5244, %v5240
        %v5246 = vmul.f32 %v4975, %v5035
        %v5247 = vmul.f32 %v4978, %v5049
        %v5248 = vmul.f32 %v4981, %v5063
        %v5249 = vmul.f32 %v4984, %v5077
        %v5250 = vmul.f32 %v4987, %v5091
        %v5251 = vmul.f32 %v4990, %v5105
        %v5252 = vmul.f32 %v4993, %v5119
        %v5253 = vmul.f32 %v4996, %v5133
        %v5254 = vmul.f32 %v4999, %v5147
        %v5255 = vmul.f32 %v5002, %v5161
        %v5256 = vmul.f32 %v5005, %v5175
        %v5257 = vmul.f32 %v5008, %v5189
        %v5258 = vmul.f32 %v5011, %v5203
        %v5259 = vmul.f32 %v5014, %v5217
        %v5260 = vmul.f32 %v5017, %v5231
        %v5261 = vmul.f32 %v5020, %v5245
        %5262 = vst.msk [vmem:[#allocation2 + $0x80] sm:$0xff] %vm2915, %v5246
        %5263 = vst.msk [vmem:[#allocation2 + $0x88] sm:$0xff] %vm2915, %v5247
        %5264 = vst.msk [vmem:[#allocation2 + $0x90] sm:$0xff] %vm2915, %v5248
        %5265 = vst.msk [vmem:[#allocation2 + $0x98] sm:$0xff] %vm2915, %v5249
        %5266 = vst.msk [vmem:[#allocation2 + $0xa0] sm:$0xff] %vm2915, %v5250
        %5267 = vst.msk [vmem:[#allocation2 + $0xa8] sm:$0xff] %vm2915, %v5251
        %5268 = vst.msk [vmem:[#allocation2 + $0xb0] sm:$0xff] %vm2915, %v5252
        %5269 = vst.msk [vmem:[#allocation2 + $0xb8] sm:$0xff] %vm2915, %v5253
        %5270 = vst.msk [vmem:[#allocation2 + $0xc0] sm:$0xff] %vm2915, %v5254
        %5271 = vst.msk [vmem:[#allocation2 + $0xc8] sm:$0xff] %vm2915, %v5255
        %5272 = vst.msk [vmem:[#allocation2 + $0xd0] sm:$0xff] %vm2915, %v5256
        %5273 = vst.msk [vmem:[#allocation2 + $0xd8] sm:$0xff] %vm2915, %v5257
        %5274 = vst.msk [vmem:[#allocation2 + $0xe0] sm:$0xff] %vm2915, %v5258
        %5275 = vst.msk [vmem:[#allocation2 + $0xe8] sm:$0xff] %vm2915, %v5259
        %5276 = vst.msk [vmem:[#allocation2 + $0xf0] sm:$0xff] %vm2915, %v5260
        %5277 = vst.msk [vmem:[#allocation2 + $0xf8] sm:$0xff] %vm2915, %v5261
        %v5278 = vld [vmem:[#allocation2] sm:$0xff]
        %v5279 = vld [vmem:[#allocation2 + $0x8] sm:$0xff]
        %v5280 = vld [vmem:[#allocation2 + $0x10] sm:$0xff]
        %v5281 = vld [vmem:[#allocation2 + $0x18] sm:$0xff]
        %v5282 = vld [vmem:[#allocation2 + $0x20] sm:$0xff]
        %v5283 = vld [vmem:[#allocation2 + $0x28] sm:$0xff]
        %v5284 = vld [vmem:[#allocation2 + $0x30] sm:$0xff]
        %v5285 = vld [vmem:[#allocation2 + $0x38] sm:$0xff]
        %v5286 = vld [vmem:[#allocation2 + $0x40] sm:$0xff]
        %v5287 = vld [vmem:[#allocation2 + $0x48] sm:$0xff]
        %v5288 = vld [vmem:[#allocation2 + $0x50] sm:$0xff]
        %v5289 = vld [vmem:[#allocation2 + $0x58] sm:$0xff]
        %v5290 = vld [vmem:[#allocation2 + $0x60] sm:$0xff]
        %v5291 = vld [vmem:[#allocation2 + $0x68] sm:$0xff]
        %v5292 = vld [vmem:[#allocation2 + $0x70] sm:$0xff]
        %v5293 = vld [vmem:[#allocation2 + $0x78] sm:$0xff]
        %v5294 = vld [vmem:[#allocation2 + $0x80] sm:$0xff]
        %v5295 = vld [vmem:[#allocation2 + $0x88] sm:$0xff]
        %v5296 = vld [vmem:[#allocation2 + $0x90] sm:$0xff]
        %v5297 = vld [vmem:[#allocation2 + $0x98] sm:$0xff]
        %v5298 = vld [vmem:[#allocation2 + $0xa0] sm:$0xff]
        %v5299 = vld [vmem:[#allocation2 + $0xa8] sm:$0xff]
        %v5300 = vld [vmem:[#allocation2 + $0xb0] sm:$0xff]
        %v5301 = vld [vmem:[#allocation2 + $0xb8] sm:$0xff]
        %v5302 = vld [vmem:[#allocation2 + $0xc0] sm:$0xff]
        %v5303 = vld [vmem:[#allocation2 + $0xc8] sm:$0xff]
        %v5304 = vld [vmem:[#allocation2 + $0xd0] sm:$0xff]
        %v5305 = vld [vmem:[#allocation2 + $0xd8] sm:$0xff]
        %v5306 = vld [vmem:[#allocation2 + $0xe0] sm:$0xff]
        %v5307 = vld [vmem:[#allocation2 + $0xe8] sm:$0xff]
        %v5308 = vld [vmem:[#allocation2 + $0xf0] sm:$0xff]
        %v5309 = vld [vmem:[#allocation2 + $0xf8] sm:$0xff]
        %v5310 = vld [vmem:[%s4] sm:$0xff]
        %v5311 = vld [vmem:[%s4 + $0x8] sm:$0xff]
        %v5312 = vld [vmem:[%s4 + $0x10] sm:$0xff]
        %v5313 = vld [vmem:[%s4 + $0x18] sm:$0xff]
        %v5314 = vld [vmem:[%s4 + $0x20] sm:$0xff]
        %v5315 = vld [vmem:[%s4 + $0x28] sm:$0xff]
        %v5316 = vld [vmem:[%s6] sm:$0x1]
        %v5317 = vperm.slane %v5316, 0
        %vm5318 = vcmask 392192
        %v5320 = vsel %vm5318, %v5278, 0
        %v5323 = vsel %vm5318, %v5279, 0
        %v5326 = vsel %vm5318, %v5280, 0
        %v5329 = vsel %vm5318, %v5281, 0
        %v5332 = vsel %vm5318, %v5282, 0
        %v5335 = vsel %vm5318, %v5283, 0
        %v5338 = vsel %vm5318, %v5284, 0
        %v5341 = vsel %vm5318, %v5285, 0
        %v5344 = vsel %vm5318, %v5286, 0
        %v5347 = vsel %vm5318, %v5287, 0
        %v5350 = vsel %vm5318, %v5288, 0
        %v5353 = vsel %vm5318, %v5289, 0
        %v5356 = vsel %vm5318, %v5290, 0
        %v5359 = vsel %vm5318, %v5291, 0
        %v5362 = vsel %vm5318, %v5292, 0
        %v5365 = vsel %vm5318, %v5293, 0
        %v5368 = vsel %vm5318, %v5294, 0
        %v5371 = vsel %vm5318, %v5295, 0
        %v5374 = vsel %vm5318, %v5296, 0
        %v5377 = vsel %vm5318, %v5297, 0
        %v5380 = vsel %vm5318, %v5298, 0
        %v5383 = vsel %vm5318, %v5299, 0
        %v5386 = vsel %vm5318, %v5300, 0
        %v5389 = vsel %vm5318, %v5301, 0
        %v5392 = vsel %vm5318, %v5302, 0
        %v5395 = vsel %vm5318, %v5303, 0
        %v5398 = vsel %vm5318, %v5304, 0
        %v5401 = vsel %vm5318, %v5305, 0
        %v5404 = vsel %vm5318, %v5306, 0
        %v5407 = vsel %vm5318, %v5307, 0
        %v5410 = vsel %vm5318, %v5308, 0
        %v5413 = vsel %vm5318, %v5309, 0
        %5415 = vmatpush.msra.mxu0 0.0
        %5416 = vmatpush.msra.mxu0 0.0
        %5417 = vmatpush.msra.mxu0 0.0
        %5418 = vmatpush.msra.mxu0 0.0
        %5419 = vmatpush.msra.mxu0 0.0
        %5420 = vmatpush.msra.mxu0 0.0
        %5421 = vmatpush.msra.mxu0 0.0
        %5422 = vmatpush.msra.mxu0 0.0
        %5423 = vmatpush.msra.mxu0 0.0
        %5424 = vmatpush.msra.mxu0 0.0
        %5425 = vmatpush.msra.mxu0 %v5315
        %5426 = vmatpush.msra.mxu0 %v5314
        %5427 = vmatpush.msra.mxu0 %v5313
        %5428 = vmatpush.msra.mxu0 %v5312
        %5429 = vmatpush.msra.mxu0 %v5311
        %5430 = vmatpush.msra.mxu0 %v5310
        %5431 = vmatmul.f32.gmra.mxu0 %v5320
        %v5432 = vpop.f32.mrf.mxu0
        %v5433 = vadd.f32 %v5317, %v5432
        %5434 = vmatmul.f32.gmra.mxu0 %v5323
        %v5435 = vpop.f32.mrf.mxu0
        %v5436 = vadd.f32 %v5317, %v5435
        %5437 = vmatmul.f32.gmra.mxu0 %v5326
        %v5438 = vpop.f32.mrf.mxu0
        %v5439 = vadd.f32 %v5317, %v5438
        %5440 = vmatmul.f32.gmra.mxu0 %v5329
        %v5441 = vpop.f32.mrf.mxu0
        %v5442 = vadd.f32 %v5317, %v5441
        %5443 = vmatmul.f32.gmra.mxu0 %v5332
        %v5444 = vpop.f32.mrf.mxu0
        %v5445 = vadd.f32 %v5317, %v5444
        %5446 = vmatmul.f32.gmra.mxu0 %v5335
        %v5447 = vpop.f32.mrf.mxu0
        %v5448 = vadd.f32 %v5317, %v5447
        %5449 = vmatmul.f32.gmra.mxu0 %v5338
        %v5450 = vpop.f32.mrf.mxu0
        %v5451 = vadd.f32 %v5317, %v5450
        %5452 = vmatmul.f32.gmra.mxu0 %v5341
        %v5453 = vpop.f32.mrf.mxu0
        %v5454 = vadd.f32 %v5317, %v5453
        %5455 = vmatmul.f32.gmra.mxu0 %v5344
        %v5456 = vpop.f32.mrf.mxu0
        %v5457 = vadd.f32 %v5317, %v5456
        %5458 = vmatmul.f32.gmra.mxu0 %v5347
        %v5459 = vpop.f32.mrf.mxu0
        %v5460 = vadd.f32 %v5317, %v5459
        %5461 = vmatmul.f32.gmra.mxu0 %v5350
        %v5462 = vpop.f32.mrf.mxu0
        %v5463 = vadd.f32 %v5317, %v5462
        %5464 = vmatmul.f32.gmra.mxu0 %v5353
        %v5465 = vpop.f32.mrf.mxu0
        %v5466 = vadd.f32 %v5317, %v5465
        %5467 = vmatmul.f32.gmra.mxu0 %v5356
        %v5468 = vpop.f32.mrf.mxu0
        %v5469 = vadd.f32 %v5317, %v5468
        %5470 = vmatmul.f32.gmra.mxu0 %v5359
        %v5471 = vpop.f32.mrf.mxu0
        %v5472 = vadd.f32 %v5317, %v5471
        %5473 = vmatmul.f32.gmra.mxu0 %v5362
        %v5474 = vpop.f32.mrf.mxu0
        %v5475 = vadd.f32 %v5317, %v5474
        %5476 = vmatmul.f32.gmra.mxu0 %v5365
        %v5477 = vpop.f32.mrf.mxu0
        %v5478 = vadd.f32 %v5317, %v5477
        %5479 = vmatmul.f32.gmra.mxu0 %v5368
        %v5480 = vpop.f32.mrf.mxu0
        %v5481 = vadd.f32 %v5317, %v5480
        %5482 = vmatmul.f32.gmra.mxu0 %v5371
        %v5483 = vpop.f32.mrf.mxu0
        %v5484 = vadd.f32 %v5317, %v5483
        %5485 = vmatmul.f32.gmra.mxu0 %v5374
        %v5486 = vpop.f32.mrf.mxu0
        %v5487 = vadd.f32 %v5317, %v5486
        %5488 = vmatmul.f32.gmra.mxu0 %v5377
        %v5489 = vpop.f32.mrf.mxu0
        %v5490 = vadd.f32 %v5317, %v5489
        %5491 = vmatmul.f32.gmra.mxu0 %v5380
        %v5492 = vpop.f32.mrf.mxu0
        %v5493 = vadd.f32 %v5317, %v5492
        %5494 = vmatmul.f32.gmra.mxu0 %v5383
        %v5495 = vpop.f32.mrf.mxu0
        %v5496 = vadd.f32 %v5317, %v5495
        %5497 = vmatmul.f32.gmra.mxu0 %v5386
        %v5498 = vpop.f32.mrf.mxu0
        %v5499 = vadd.f32 %v5317, %v5498
        %5500 = vmatmul.f32.gmra.mxu0 %v5389
        %v5501 = vpop.f32.mrf.mxu0
        %v5502 = vadd.f32 %v5317, %v5501
        %5503 = vmatmul.f32.gmra.mxu0 %v5392
        %v5504 = vpop.f32.mrf.mxu0
        %v5505 = vadd.f32 %v5317, %v5504
        %5506 = vmatmul.f32.gmra.mxu0 %v5395
        %v5507 = vpop.f32.mrf.mxu0
        %v5508 = vadd.f32 %v5317, %v5507
        %5509 = vmatmul.f32.gmra.mxu0 %v5398
        %v5510 = vpop.f32.mrf.mxu0
        %v5511 = vadd.f32 %v5317, %v5510
        %5512 = vmatmul.f32.gmra.mxu0 %v5401
        %v5513 = vpop.f32.mrf.mxu0
        %v5514 = vadd.f32 %v5317, %v5513
        %5515 = vmatmul.f32.gmra.mxu0 %v5404
        %v5516 = vpop.f32.mrf.mxu0
        %v5517 = vadd.f32 %v5317, %v5516
        %5518 = vmatmul.f32.gmra.mxu0 %v5407
        %v5519 = vpop.f32.mrf.mxu0
        %v5520 = vadd.f32 %v5317, %v5519
        %5521 = vmatmul.f32.gmra.mxu0 %v5410
        %v5522 = vpop.f32.mrf.mxu0
        %v5523 = vadd.f32 %v5317, %v5522
        %5524 = vmatmul.f32.gmra.mxu0 %v5413
        %v5525 = vpop.f32.mrf.mxu0
        %v5526 = vadd.f32 %v5317, %v5525
        %5527 = vdwg.mxu0
        %v5528 = vmax.f32 %v5433, 0.0
        %v5529 = vmax.f32 %v5436, 0.0
        %v5530 = vmax.f32 %v5439, 0.0
        %v5531 = vmax.f32 %v5442, 0.0
        %v5532 = vmax.f32 %v5445, 0.0
        %v5533 = vmax.f32 %v5448, 0.0
        %v5534 = vmax.f32 %v5451, 0.0
        %v5535 = vmax.f32 %v5454, 0.0
        %v5536 = vmax.f32 %v5457, 0.0
        %v5537 = vmax.f32 %v5460, 0.0
        %v5538 = vmax.f32 %v5463, 0.0
        %v5539 = vmax.f32 %v5466, 0.0
        %v5540 = vmax.f32 %v5469, 0.0
        %v5541 = vmax.f32 %v5472, 0.0
        %v5542 = vmax.f32 %v5475, 0.0
        %v5543 = vmax.f32 %v5478, 0.0
        %v5544 = vmax.f32 %v5481, 0.0
        %v5545 = vmax.f32 %v5484, 0.0
        %v5546 = vmax.f32 %v5487, 0.0
        %v5547 = vmax.f32 %v5490, 0.0
        %v5548 = vmax.f32 %v5493, 0.0
        %v5549 = vmax.f32 %v5496, 0.0
        %v5550 = vmax.f32 %v5499, 0.0
        %v5551 = vmax.f32 %v5502, 0.0
        %v5552 = vmax.f32 %v5505, 0.0
        %v5553 = vmax.f32 %v5508, 0.0
        %v5554 = vmax.f32 %v5511, 0.0
        %v5555 = vmax.f32 %v5514, 0.0
        %v5556 = vmax.f32 %v5517, 0.0
        %v5557 = vmax.f32 %v5520, 0.0
        %v5558 = vmax.f32 %v5523, 0.0
        %v5559 = vmax.f32 %v5526, 0.0
        %v5560 = vld [vmem:[%s5] sm:$0xff]
        %v5561 = vld [vmem:[%s5 + $0x8] sm:$0xff]
        %v5562 = vld [vmem:[%s5 + $0x10] sm:$0xff]
        %v5563 = vld [vmem:[%s5 + $0x18] sm:$0xff]
        %v5564 = vld [vmem:[%s5 + $0x20] sm:$0xff]
        %v5565 = vld [vmem:[%s5 + $0x28] sm:$0xff]
        %v5566 = vld [vmem:[%s5 + $0x30] sm:$0xff]
        %v5567 = vld [vmem:[%s5 + $0x38] sm:$0xff]
        %v5568 = vld [vmem:[%s6 + $0x1] sm:$0x1]
        %v5569 = vperm.slane %v5568, 0
        %v5571 = vsel %vm383, %v5528, 0
        %v5574 = vsel %vm383, %v5529, 0
        %v5577 = vsel %vm383, %v5530, 0
        %v5580 = vsel %vm383, %v5531, 0
        %v5583 = vsel %vm383, %v5532, 0
        %v5586 = vsel %vm383, %v5533, 0
        %v5589 = vsel %vm383, %v5534, 0
        %v5592 = vsel %vm383, %v5535, 0
        %v5595 = vsel %vm383, %v5536, 0
        %v5598 = vsel %vm383, %v5537, 0
        %v5601 = vsel %vm383, %v5538, 0
        %v5604 = vsel %vm383, %v5539, 0
        %v5607 = vsel %vm383, %v5540, 0
        %v5610 = vsel %vm383, %v5541, 0
        %v5613 = vsel %vm383, %v5542, 0
        %v5616 = vsel %vm383, %v5543, 0
        %v5619 = vsel %vm383, %v5544, 0
        %v5622 = vsel %vm383, %v5545, 0
        %v5625 = vsel %vm383, %v5546, 0
        %v5628 = vsel %vm383, %v5547, 0
        %v5631 = vsel %vm383, %v5548, 0
        %v5634 = vsel %vm383, %v5549, 0
        %v5637 = vsel %vm383, %v5550, 0
        %v5640 = vsel %vm383, %v5551, 0
        %v5643 = vsel %vm383, %v5552, 0
        %v5646 = vsel %vm383, %v5553, 0
        %v5649 = vsel %vm383, %v5554, 0
        %v5652 = vsel %vm383, %v5555, 0
        %v5655 = vsel %vm383, %v5556, 0
        %v5658 = vsel %vm383, %v5557, 0
        %v5661 = vsel %vm383, %v5558, 0
        %v5664 = vsel %vm383, %v5559, 0
        %5666 = vmatpush.msra.mxu0 0.0
        %5667 = vmatpush.msra.mxu0 0.0
        %5668 = vmatpush.msra.mxu0 0.0
        %5669 = vmatpush.msra.mxu0 0.0
        %5670 = vmatpush.msra.mxu0 0.0
        %5671 = vmatpush.msra.mxu0 0.0
        %5672 = vmatpush.msra.mxu0 0.0
        %5673 = vmatpush.msra.mxu0 0.0
        %5674 = vmatpush.msra.mxu0 %v5567
        %5675 = vmatpush.msra.mxu0 %v5566
        %5676 = vmatpush.msra.mxu0 %v5565
        %5677 = vmatpush.msra.mxu0 %v5564
        %5678 = vmatpush.msra.mxu0 %v5563
        %5679 = vmatpush.msra.mxu0 %v5562
        %5680 = vmatpush.msra.mxu0 %v5561
        %5681 = vmatpush.msra.mxu0 %v5560
        %5682 = vmatmul.f32.gmra.mxu0 %v5571
        %v5683 = vpop.f32.mrf.mxu0
        %v5684 = vadd.f32 %v5569, %v5683
        %5685 = vmatmul.f32.gmra.mxu0 %v5574
        %v5686 = vpop.f32.mrf.mxu0
        %v5687 = vadd.f32 %v5569, %v5686
        %5688 = vmatmul.f32.gmra.mxu0 %v5577
        %v5689 = vpop.f32.mrf.mxu0
        %v5690 = vadd.f32 %v5569, %v5689
        %5691 = vmatmul.f32.gmra.mxu0 %v5580
        %v5692 = vpop.f32.mrf.mxu0
        %v5693 = vadd.f32 %v5569, %v5692
        %5694 = vmatmul.f32.gmra.mxu0 %v5583
        %v5695 = vpop.f32.mrf.mxu0
        %v5696 = vadd.f32 %v5569, %v5695
        %5697 = vmatmul.f32.gmra.mxu0 %v5586
        %v5698 = vpop.f32.mrf.mxu0
        %v5699 = vadd.f32 %v5569, %v5698
        %5700 = vmatmul.f32.gmra.mxu0 %v5589
        %v5701 = vpop.f32.mrf.mxu0
        %v5702 = vadd.f32 %v5569, %v5701
        %5703 = vmatmul.f32.gmra.mxu0 %v5592
        %v5704 = vpop.f32.mrf.mxu0
        %v5705 = vadd.f32 %v5569, %v5704
        %5706 = vmatmul.f32.gmra.mxu0 %v5595
        %v5707 = vpop.f32.mrf.mxu0
        %v5708 = vadd.f32 %v5569, %v5707
        %5709 = vmatmul.f32.gmra.mxu0 %v5598
        %v5710 = vpop.f32.mrf.mxu0
        %v5711 = vadd.f32 %v5569, %v5710
        %5712 = vmatmul.f32.gmra.mxu0 %v5601
        %v5713 = vpop.f32.mrf.mxu0
        %v5714 = vadd.f32 %v5569, %v5713
        %5715 = vmatmul.f32.gmra.mxu0 %v5604
        %v5716 = vpop.f32.mrf.mxu0
        %v5717 = vadd.f32 %v5569, %v5716
        %5718 = vmatmul.f32.gmra.mxu0 %v5607
        %v5719 = vpop.f32.mrf.mxu0
        %v5720 = vadd.f32 %v5569, %v5719
        %5721 = vmatmul.f32.gmra.mxu0 %v5610
        %v5722 = vpop.f32.mrf.mxu0
        %v5723 = vadd.f32 %v5569, %v5722
        %5724 = vmatmul.f32.gmra.mxu0 %v5613
        %v5725 = vpop.f32.mrf.mxu0
        %v5726 = vadd.f32 %v5569, %v5725
        %5727 = vmatmul.f32.gmra.mxu0 %v5616
        %v5728 = vpop.f32.mrf.mxu0
        %v5729 = vadd.f32 %v5569, %v5728
        %5730 = vmatmul.f32.gmra.mxu0 %v5619
        %v5731 = vpop.f32.mrf.mxu0
        %v5732 = vadd.f32 %v5569, %v5731
        %5733 = vmatmul.f32.gmra.mxu0 %v5622
        %v5734 = vpop.f32.mrf.mxu0
        %v5735 = vadd.f32 %v5569, %v5734
        %5736 = vmatmul.f32.gmra.mxu0 %v5625
        %v5737 = vpop.f32.mrf.mxu0
        %v5738 = vadd.f32 %v5569, %v5737
        %5739 = vmatmul.f32.gmra.mxu0 %v5628
        %v5740 = vpop.f32.mrf.mxu0
        %v5741 = vadd.f32 %v5569, %v5740
        %5742 = vmatmul.f32.gmra.mxu0 %v5631
        %v5743 = vpop.f32.mrf.mxu0
        %v5744 = vadd.f32 %v5569, %v5743
        %5745 = vmatmul.f32.gmra.mxu0 %v5634
        %v5746 = vpop.f32.mrf.mxu0
        %v5747 = vadd.f32 %v5569, %v5746
        %5748 = vmatmul.f32.gmra.mxu0 %v5637
        %v5749 = vpop.f32.mrf.mxu0
        %v5750 = vadd.f32 %v5569, %v5749
        %5751 = vmatmul.f32.gmra.mxu0 %v5640
        %v5752 = vpop.f32.mrf.mxu0
        %v5753 = vadd.f32 %v5569, %v5752
        %5754 = vmatmul.f32.gmra.mxu0 %v5643
        %v5755 = vpop.f32.mrf.mxu0
        %v5756 = vadd.f32 %v5569, %v5755
        %5757 = vmatmul.f32.gmra.mxu0 %v5646
        %v5758 = vpop.f32.mrf.mxu0
        %v5759 = vadd.f32 %v5569, %v5758
        %5760 = vmatmul.f32.gmra.mxu0 %v5649
        %v5761 = vpop.f32.mrf.mxu0
        %v5762 = vadd.f32 %v5569, %v5761
        %5763 = vmatmul.f32.gmra.mxu0 %v5652
        %v5764 = vpop.f32.mrf.mxu0
        %v5765 = vadd.f32 %v5569, %v5764
        %5766 = vmatmul.f32.gmra.mxu0 %v5655
        %v5767 = vpop.f32.mrf.mxu0
        %v5768 = vadd.f32 %v5569, %v5767
        %5769 = vmatmul.f32.gmra.mxu0 %v5658
        %v5770 = vpop.f32.mrf.mxu0
        %v5771 = vadd.f32 %v5569, %v5770
        %5772 = vmatmul.f32.gmra.mxu0 %v5661
        %v5773 = vpop.f32.mrf.mxu0
        %v5774 = vadd.f32 %v5569, %v5773
        %5775 = vmatmul.f32.gmra.mxu0 %v5664
        %v5776 = vpop.f32.mrf.mxu0
        %v5777 = vadd.f32 %v5569, %v5776
        %5778 = vdwg.mxu0
        %v5779 = vmax.f32 %v5684, 0.0
        %v5780 = vmax.f32 %v5687, 0.0
        %v5781 = vmax.f32 %v5690, 0.0
        %v5782 = vmax.f32 %v5693, 0.0
        %v5783 = vmax.f32 %v5696, 0.0
        %v5784 = vmax.f32 %v5699, 0.0
        %v5785 = vmax.f32 %v5702, 0.0
        %v5786 = vmax.f32 %v5705, 0.0
        %v5787 = vmax.f32 %v5708, 0.0
        %v5788 = vmax.f32 %v5711, 0.0
        %v5789 = vmax.f32 %v5714, 0.0
        %v5790 = vmax.f32 %v5717, 0.0
        %v5791 = vmax.f32 %v5720, 0.0
        %v5792 = vmax.f32 %v5723, 0.0
        %v5793 = vmax.f32 %v5726, 0.0
        %v5794 = vmax.f32 %v5729, 0.0
        %v5795 = vmax.f32 %v5732, 0.0
        %v5796 = vmax.f32 %v5735, 0.0
        %v5797 = vmax.f32 %v5738, 0.0
        %v5798 = vmax.f32 %v5741, 0.0
        %v5799 = vmax.f32 %v5744, 0.0
        %v5800 = vmax.f32 %v5747, 0.0
        %v5801 = vmax.f32 %v5750, 0.0
        %v5802 = vmax.f32 %v5753, 0.0
        %v5803 = vmax.f32 %v5756, 0.0
        %v5804 = vmax.f32 %v5759, 0.0
        %v5805 = vmax.f32 %v5762, 0.0
        %v5806 = vmax.f32 %v5765, 0.0
        %v5807 = vmax.f32 %v5768, 0.0
        %v5808 = vmax.f32 %v5771, 0.0
        %v5809 = vmax.f32 %v5774, 0.0
        %v5810 = vmax.f32 %v5777, 0.0
        %5811 = vst [vmem:[%s350] sm:$0xff] %v5779
        %5812 = vst [vmem:[%s350 + $0x8] sm:$0xff] %v5780
        %5813 = vst [vmem:[%s350 + $0x10] sm:$0xff] %v5781
        %5814 = vst [vmem:[%s350 + $0x18] sm:$0xff] %v5782
        %5815 = vst [vmem:[%s350 + $0x20] sm:$0xff] %v5783
        %5816 = vst [vmem:[%s350 + $0x28] sm:$0xff] %v5784
        %5817 = vst [vmem:[%s350 + $0x30] sm:$0xff] %v5785
        %5818 = vst [vmem:[%s350 + $0x38] sm:$0xff] %v5786
        %5819 = vst [vmem:[%s350 + $0x40] sm:$0xff] %v5787
        %5820 = vst [vmem:[%s350 + $0x48] sm:$0xff] %v5788
        %5821 = vst [vmem:[%s350 + $0x50] sm:$0xff] %v5789
        %5822 = vst [vmem:[%s350 + $0x58] sm:$0xff] %v5790
        %5823 = vst [vmem:[%s350 + $0x60] sm:$0xff] %v5791
        %5824 = vst [vmem:[%s350 + $0x68] sm:$0xff] %v5792
        %5825 = vst [vmem:[%s350 + $0x70] sm:$0xff] %v5793
        %5826 = vst [vmem:[%s350 + $0x78] sm:$0xff] %v5794
        %5827 = vst [vmem:[%s350 + $0x80] sm:$0xff] %v5795
        %5828 = vst [vmem:[%s350 + $0x88] sm:$0xff] %v5796
        %5829 = vst [vmem:[%s350 + $0x90] sm:$0xff] %v5797
        %5830 = vst [vmem:[%s350 + $0x98] sm:$0xff] %v5798
        %5831 = vst [vmem:[%s350 + $0xa0] sm:$0xff] %v5799
        %5832 = vst [vmem:[%s350 + $0xa8] sm:$0xff] %v5800
        %5833 = vst [vmem:[%s350 + $0xb0] sm:$0xff] %v5801
        %5834 = vst [vmem:[%s350 + $0xb8] sm:$0xff] %v5802
        %5835 = vst [vmem:[%s350 + $0xc0] sm:$0xff] %v5803
        %5836 = vst [vmem:[%s350 + $0xc8] sm:$0xff] %v5804
        %5837 = vst [vmem:[%s350 + $0xd0] sm:$0xff] %v5805
        %5838 = vst [vmem:[%s350 + $0xd8] sm:$0xff] %v5806
        %5839 = vst [vmem:[%s350 + $0xe0] sm:$0xff] %v5807
        %5840 = vst [vmem:[%s350 + $0xe8] sm:$0xff] %v5808
        %5841 = vst [vmem:[%s350 + $0xf0] sm:$0xff] %v5809
        %5842 = vst [vmem:[%s350 + $0xf8] sm:$0xff] %v5810
        %s5843 = sand.u32 %s214, 1
        %s5844 = scalar_lea.sflag [#allocation4], %s5843
        %s5845 = sand.u32 %s214, 1
        %s5846 = smul.addr %s5845, 256
        %s5847 = scalar_lea.vmem [#allocation3], %s5846
        // Predicated region
        $region49: #{tpu_custom_call.1} parent=47 // pred_check
          %p5848 = pneg %p224
        $region50: #{tpu_custom_call.1} parent=47 // pred_check_branch
          %5850 = sbr.rel (%p5848) target = $region52
        $region51: #{tpu_custom_call.1} parent=47 // pred_region
          %s5851 = smul.u32 32, %s26
          %5853 = vsyncadd %s5844, 0
          %s5854 = smul.addr %s25, 64
          %s5855 = sadd.s32 %s5851, %s5854
          %s5856 = smul.addr %s5855, 8
          %s5857 = scalar_lea.hbm %s7, %s5856
          %s5858 = sshll.u32 %s5847, 4
          %s5859 = int_to_ptr.vmem [resolvable:$true] %s5858
          %s5860 = sshll.u32 %s5857, 4
          %s5861 = int_to_ptr.hbm [resolvable:$true] %s5860
          %5866 = dma.vmem_to_hbm [thread:$0]  %s5859, 4096, %s5861, %s5844, 128, 128, 8
        $region52: #{tpu_custom_call.1} parent=47 // pred_fallthru
          _
      $region48: #{tpu_custom_call.1} parent=5 // pred_fallthru
        _
      %p5867 = scmp.le.s32.totalorder 2, %s16
      // Predicated region
      $region53: #{tpu_custom_call.1} parent=5 // pred_check
        %p5868 = pneg %p5867
      $region54: #{tpu_custom_call.1} parent=5 // pred_check_branch
        %5870 = sbr.rel (%p5868) target = $region56
      $region55: #{tpu_custom_call.1} parent=5 // pred_region
        %s5871 = ssub.s32 %s16, 2
        // Predicated region
        $region57: #{tpu_custom_call.1} parent=55 // pred_check
          %p5872 = pneg %p230
        $region58: #{tpu_custom_call.1} parent=55 // pred_check_branch
          %5874 = sbr.rel (%p5872) target = $region60
        $region59: #{tpu_custom_call.1} parent=55 // pred_region
          %s5875 = sand.u32 %s215, 1
          %s5876 = scalar_lea.sflag [#allocation4], %s5875
          %s5877 = sand.u32 %s215, 1
          %s5878 = smul.addr %s5877, 256
          %s5879 = scalar_lea.vmem [#allocation3], %s5878
          %5881 = dma.done %s5876, 4096
        $region60: #{tpu_custom_call.1} parent=55 // pred_fallthru
          _
      $region56: #{tpu_custom_call.1} parent=5 // pred_fallthru
        _
    $region6: #{tpu_custom_call.1} parent=1 // loop_footer
      %s20 = sadd.s32 1, %s16
    $region7: #{tpu_custom_call.1} parent=1 // loop_footer_branch
      %15 = sbr.rel target = $region3
    $region8: #{tpu_custom_call.1} parent=1 // loop_exit
      _
    %5882 = vsyncpa [#allocation4], 1
    %s5883 = scalar_lea.sflag [#allocation4], 1
    %5884 = vsyncpa %s5883, 1

</llo_original>
